<compile_context>
chip_gen: v6e
topology: v6e:2x2x1
jax: 0.10.0
libtpu: 0.0.40
codegen_flags: <defaults>
</compile_context>

<pallas_src>
import jax
import jax.numpy as jnp
from jax.experimental import pallas as pl
from jax.experimental.pallas import tpu as pltpu

D = 8
W = 256
INPUT_CH = 3
OUTPUT_CH = 4
SKIPS = (4,)             # after layer 4: h = cat([input_pts, h], -1)


# ----------------------------------------------------------------------------
# Pallas kernel: full MLP forward for one tile of rows.
# ----------------------------------------------------------------------------
def _clip2nphm_kernel(x_ref,
                      w_in, b0, w1, b1, w2, b2, w3, b3, w4, b4,
                      w5h, b5, w6, b6, w7, b7, wo, bo,
                      o_ref):
    f32 = jnp.float32
    bf16 = jnp.bfloat16

    def lin_relu(h, w_ref, b_ref):
        # h is bf16, weights are bf16, MXU accumulates in f32.
        # Bias + ReLU stay in f32 on the VPU (v5e has no bf16 VPU), then the
        # activation is carried forward in bf16 (next matmul casts anyway).
        return jnp.maximum(
            jnp.dot(h, w_ref[...], preferred_element_type=f32) + b_ref[...],
            0.0).astype(bf16)

    x = x_ref[...]                                        # (tm, 3) f32 -- no bf16 rounding

    # Degenerate K=3 "matmul" done on the VPU as three f32 broadcast MACs.
    # Covers BOTH the layer-0 projection (first 2W columns) and the layer-5
    # skip term x @ W5[:3] (last W columns). MXU has no slack here, VPU does.
    w_in_v = w_in[...]                                    # (3, 2W + W) f32
    xw = (x[:, 0:1] * w_in_v[0:1, :]
          + x[:, 1:2] * w_in_v[1:2, :]
          + x[:, 2:3] * w_in_v[2:3, :])                   # (tm, 768) f32

    h = jnp.maximum(xw[:, :2 * W] + b0[...], 0.0).astype(bf16)   # layer 0: (tm, 512)
    skip = xw[:, 2 * W:]                                          # x @ W5[:3]: (tm, 256) f32

    h = lin_relu(h, w1, b1)                               # layer 1: 512 -> 256
    h = lin_relu(h, w2, b2)                               # layer 2
    h = lin_relu(h, w3, b3)                               # layer 3
    h = lin_relu(h, w4, b4)                               # layer 4 (skip follows)

    # layer 5: cat([input_pts, h]) @ W5 + b5 == x @ W5[:3] + h @ W5[3:] + b5
    h = jnp.maximum(
        skip + jnp.dot(h, w5h[...], preferred_element_type=f32) + b5[...],
        0.0).astype(bf16)

    h = lin_relu(h, w6, b6)                               # layer 6
    h = lin_relu(h, w7, b7)                               # layer 7

    # Output head (no activation); narrow (tm, 4) store, no lane padding.
    o_ref[...] = (jnp.dot(h, wo[...], preferred_element_type=f32)
                  + bo[...]).astype(o_ref.dtype)


# ----------------------------------------------------------------------------
# pallas_call builder + wrapper
# ----------------------------------------------------------------------------
def _round_up(x, m):
    return pl.cdiv(x, m) * m


def _build_pallas_call(kernel_params, tm, n_pad, vmem_limit, single_buffer_weights):
    x_spec = pl.BlockSpec((tm, INPUT_CH), lambda i: (i, 0))
    if single_buffer_weights:
        # Constant index_map -> no re-DMA; single-buffer to save ~1 MiB of VMEM.
        param_specs = [pl.BlockSpec(p.shape, lambda i: (0, 0),
                                    pipeline_mode=pl.Buffered(1))
                       for p in kernel_params]
    else:
        param_specs = [pl.BlockSpec(p.shape, lambda i: (0, 0))
                       for p in kernel_params]
    # Output block last dim equals the full array dim (4) -> legal, no padding.
    out_spec = pl.BlockSpec((tm, OUTPUT_CH), lambda i: (i, 0))

    return pl.pallas_call(
        _clip2nphm_kernel,
        out_shape=jax.ShapeDtypeStruct((n_pad, OUTPUT_CH), jnp.float32),
        grid_spec=pltpu.PrefetchScalarGridSpec(
            num_scalar_prefetch=0,
            grid=(n_pad // tm,),
            in_specs=[x_spec] + param_specs,
            out_specs=out_spec,
        ),
        compiler_params=pltpu.CompilerParams(
            dimension_semantics=("parallel",),   # rows are independent (megacore split)
            vmem_limit_bytes=vmem_limit,
        ),
    )


def clip2nphm_forward(x_flat, kernel_params, *, tm=512):
    """x_flat: (N, INPUT_CH) float32 (any N). Returns (N, OUTPUT_CH) float32.

    tm notes (per-generation): 512 is a safe default everywhere; with bf16
    activations tm=1024-2048 pays off on v6e, cap ~1024 on v7x (64 MiB/TC VMEM)
    and keep >= 2 (ideally even) tiles so both TensorCores get work.
    """
    n = x_flat.shape[0]
    # Shrink tm for small N (sublane-aligned) so tiny batches don't pad to 512 rows.
    tm = max(16, min(_round_up(tm, 16), _round_up(n, 16)))
    n_pad = _round_up(n, tm)
    if n_pad != n:
        x_flat = jnp.pad(x_flat, ((0, n_pad - n), (0, 0)))

    # Only raise the scoped-VMEM limit when the tile actually needs it
    # (48 MiB stays under v7x's 64 MiB/TC physical VMEM).
    vmem_limit = 48 * 1024 * 1024 if tm > 512 else None

    try:
        out = _build_pallas_call(kernel_params, tm, n_pad, vmem_limit,
                                 single_buffer_weights=True)(x_flat, *kernel_params)
    except Exception:
        # pl.Buffered(1) is a pure VMEM optimization; if this jax/backend build
        # rejects buffer_count=1, fall back to default double-buffering.
        out = _build_pallas_call(kernel_params, tm, n_pad, vmem_limit,
                                 single_buffer_weights=False)(x_flat, *kernel_params)

    return out[:n]


# ----------------------------------------------------------------------------
# Deterministic parameter init (PyTorch nn.Linear-style uniform +-1/sqrt(fan_in)),
# stored transposed as (in_features, out_features), f32 master copy.
# ----------------------------------------------------------------------------
def _linear_init(key, fan_in, fan_out):
    kw, kb = jax.random.split(key)
    bound = 1.0 / (fan_in ** 0.5)
    w = jax.random.uniform(kw, (fan_in, fan_out), jnp.float32, -bound, bound)
    b = jax.random.uniform(kb, (1, fan_out), jnp.float32, -bound, bound)
    return w, b


def init_params(key):
    keys = jax.random.split(key, D + 1)
    w0, b0 = _linear_init(keys[0], INPUT_CH, 2 * W)          # layer 0: 3   -> 512
    w1, b1 = _linear_init(keys[1], 2 * W, W)                 # layer 1: 512 -> 256
    w2, b2 = _linear_init(keys[2], W, W)                     # layer 2
    w3, b3 = _linear_init(keys[3], W, W)                     # layer 3
    w4, b4 = _linear_init(keys[4], W, W)                     # layer 4
    w5, b5 = _linear_init(keys[5], W + INPUT_CH, W)          # layer 5: 259 -> 256 (skip)
    w6, b6 = _linear_init(keys[6], W, W)                     # layer 6
    w7, b7 = _linear_init(keys[7], W, W)                     # layer 7
    wo, bo = _linear_init(keys[8], W, OUTPUT_CH)             # output: 256 -> 4
    return (w0, b0, w1, b1, w2, b2, w3, b3, w4, b4,
            w5, b5, w6, b6, w7, b7, wo, bo)


def pack_params(params_f32):
    """Pack/cast the f32 master params into the kernel operand layout:
       * w_in = [w0 | W5[:3]] kept in f32 (consumed by the VPU MACs),
       * all MXU weights in bf16, all biases in f32."""
    (w0, b0, w1, b1, w2, b2, w3, b3, w4, b4,
     w5, b5, w6, b6, w7, b7, wo, bo) = params_f32
    bf16 = jnp.bfloat16
    w5x, w5h = w5[:INPUT_CH], w5[INPUT_CH:]
    w_in = jnp.concatenate([w0, w5x], axis=1)                # (3, 2W + W), f32
    return (w_in, b0,
            w1.astype(bf16), b1,
            w2.astype(bf16), b2,
            w3.astype(bf16), b3,
            w4.astype(bf16), b4,
            w5h.astype(bf16), b5,
            w6.astype(bf16), b6,
            w7.astype(bf16), b7,
            wo.astype(bf16), bo)


# Pure-JAX f32 reference (mirrors the PyTorch forward exactly, with explicit concat).
def reference_forward(x, params_f32):
    (w0, b0, w1, b1, w2, b2, w3, b3, w4, b4,
     w5, b5, w6, b6, w7, b7, wo, bo) = params_f32
    relu = jax.nn.relu
    h = relu(x @ w0 + b0)
    h = relu(h @ w1 + b1)
    h = relu(h @ w2 + b2)
    h = relu(h @ w3 + b3)
    h = relu(h @ w4 + b4)
    h = jnp.concatenate([x, h], axis=-1)                     # skip at i == 4
    h = relu(h @ w5 + b5)
    h = relu(h @ w6 + b6)
    h = relu(h @ w7 + b7)
    return h @ wo + bo


if __name__ == "__main__":
    key = jax.random.PRNGKey(0)
    k_x, k_p = jax.random.split(key)

    B, S = 2, 8                                   # small batch x seq of 3-d points
    x = jax.random.normal(k_x, (B, S, INPUT_CH), jnp.float32)
    params_f32 = init_params(k_p)
    kernel_params = pack_params(params_f32)

    x_flat = x.reshape(B * S, INPUT_CH)
    out = clip2nphm_forward(x_flat, kernel_params, tm=512)
    out = jax.block_until_ready(out).reshape(B, S, OUTPUT_CH)

    ref = reference_forward(x_flat, params_f32).reshape(B, S, OUTPUT_CH)
    assert out.shape == (B, S, OUTPUT_CH)
    # bf16 MXU weights/activations with f32 accumulation (input projection is
    # exact f32 now) -> loosened tolerance vs the f32 reference.
    assert jnp.allclose(out, ref, atol=5e-2, rtol=5e-2), "mismatch vs reference"

    print("KERNEL_OK")
</pallas_src>

<mosaic_0001>
module attributes {stable_mosaic.version = 11 : i64} {
  func.func @_clip2nphm_kernel(%arg0: i32, %arg1: memref<16x3xf32, #tpu.memory_space<vmem>>, %arg2: memref<3x768xf32, #tpu.memory_space<vmem>>, %arg3: memref<1x512xf32, #tpu.memory_space<vmem>>, %arg4: memref<512x256xbf16, #tpu.memory_space<vmem>>, %arg5: memref<1x256xf32, #tpu.memory_space<vmem>>, %arg6: memref<256x256xbf16, #tpu.memory_space<vmem>>, %arg7: memref<1x256xf32, #tpu.memory_space<vmem>>, %arg8: memref<256x256xbf16, #tpu.memory_space<vmem>>, %arg9: memref<1x256xf32, #tpu.memory_space<vmem>>, %arg10: memref<256x256xbf16, #tpu.memory_space<vmem>>, %arg11: memref<1x256xf32, #tpu.memory_space<vmem>>, %arg12: memref<256x256xbf16, #tpu.memory_space<vmem>>, %arg13: memref<1x256xf32, #tpu.memory_space<vmem>>, %arg14: memref<256x256xbf16, #tpu.memory_space<vmem>>, %arg15: memref<1x256xf32, #tpu.memory_space<vmem>>, %arg16: memref<256x256xbf16, #tpu.memory_space<vmem>>, %arg17: memref<1x256xf32, #tpu.memory_space<vmem>>, %arg18: memref<256x4xbf16, #tpu.memory_space<vmem>>, %arg19: memref<1x4xf32, #tpu.memory_space<vmem>>, %arg20: memref<16x4xf32, #tpu.memory_space<vmem>>) attributes {dimension_semantics = [#tpu.dimension_semantics<parallel>], iteration_bounds = array<i64: 1>, scalar_prefetch = 0 : i64, scratch_operands = 0 : i64, tpu.core_type = #tpu.core_type<tc>, window_params = [{transform_indices = @transform_0, window_bounds = array<i64: 16, 3>}, {pipeline_mode = #tpu.pipeline_mode<synchronous>, transform_indices = @transform_1, window_bounds = array<i64: 3, 768>}, {pipeline_mode = #tpu.pipeline_mode<synchronous>, transform_indices = @transform_2, window_bounds = array<i64: 1, 512>}, {pipeline_mode = #tpu.pipeline_mode<synchronous>, transform_indices = @transform_3, window_bounds = array<i64: 512, 256>}, {pipeline_mode = #tpu.pipeline_mode<synchronous>, transform_indices = @transform_4, window_bounds = array<i64: 1, 256>}, {pipeline_mode = #tpu.pipeline_mode<synchronous>, transform_indices = @transform_5, window_bounds = array<i64: 256, 256>}, {pipeline_mode = #tpu.pipeline_mode<synchronous>, transform_indices = @transform_6, window_bounds = array<i64: 1, 256>}, {pipeline_mode = #tpu.pipeline_mode<synchronous>, transform_indices = @transform_7, window_bounds = array<i64: 256, 256>}, {pipeline_mode = #tpu.pipeline_mode<synchronous>, transform_indices = @transform_8, window_bounds = array<i64: 1, 256>}, {pipeline_mode = #tpu.pipeline_mode<synchronous>, transform_indices = @transform_9, window_bounds = array<i64: 256, 256>}, {pipeline_mode = #tpu.pipeline_mode<synchronous>, transform_indices = @transform_10, window_bounds = array<i64: 1, 256>}, {pipeline_mode = #tpu.pipeline_mode<synchronous>, transform_indices = @transform_11, window_bounds = array<i64: 256, 256>}, {pipeline_mode = #tpu.pipeline_mode<synchronous>, transform_indices = @transform_12, window_bounds = array<i64: 1, 256>}, {pipeline_mode = #tpu.pipeline_mode<synchronous>, transform_indices = @transform_13, window_bounds = array<i64: 256, 256>}, {pipeline_mode = #tpu.pipeline_mode<synchronous>, transform_indices = @transform_14, window_bounds = array<i64: 1, 256>}, {pipeline_mode = #tpu.pipeline_mode<synchronous>, transform_indices = @transform_15, window_bounds = array<i64: 256, 256>}, {pipeline_mode = #tpu.pipeline_mode<synchronous>, transform_indices = @transform_16, window_bounds = array<i64: 1, 256>}, {pipeline_mode = #tpu.pipeline_mode<synchronous>, transform_indices = @transform_17, window_bounds = array<i64: 256, 4>}, {pipeline_mode = #tpu.pipeline_mode<synchronous>, transform_indices = @transform_18, window_bounds = array<i64: 1, 4>}, {transform_indices = @transform_19, window_bounds = array<i64: 16, 4>}]} {
    %c0 = arith.constant 0 : index
    %c0_0 = arith.constant 0 : index
    %0 = vector.load %arg1[%c0, %c0_0] : memref<16x3xf32, #tpu.memory_space<vmem>>, vector<16x3xf32>
    %c0_1 = arith.constant 0 : index
    %c0_2 = arith.constant 0 : index
    %1 = vector.load %arg2[%c0_1, %c0_2] : memref<3x768xf32, #tpu.memory_space<vmem>>, vector<3x768xf32>
    %2 = vector.extract_strided_slice %0 {offsets = [0, 0], sizes = [16, 1], strides = [1, 1]} : vector<16x3xf32> to vector<16x1xf32>
    %3 = vector.extract_strided_slice %1 {offsets = [0, 0], sizes = [1, 768], strides = [1, 1]} : vector<3x768xf32> to vector<1x768xf32>
    %4 = vector.broadcast %2 : vector<16x1xf32> to vector<16x768xf32>
    %5 = vector.broadcast %3 : vector<1x768xf32> to vector<16x768xf32>
    %6 = arith.mulf %4, %5 : vector<16x768xf32>
    %7 = vector.extract_strided_slice %0 {offsets = [0, 1], sizes = [16, 1], strides = [1, 1]} : vector<16x3xf32> to vector<16x1xf32>
    %8 = vector.extract_strided_slice %1 {offsets = [1, 0], sizes = [1, 768], strides = [1, 1]} : vector<3x768xf32> to vector<1x768xf32>
    %9 = vector.broadcast %7 : vector<16x1xf32> to vector<16x768xf32>
    %10 = vector.broadcast %8 : vector<1x768xf32> to vector<16x768xf32>
    %11 = arith.mulf %9, %10 : vector<16x768xf32>
    %12 = arith.addf %6, %11 : vector<16x768xf32>
    %13 = vector.extract_strided_slice %0 {offsets = [0, 2], sizes = [16, 1], strides = [1, 1]} : vector<16x3xf32> to vector<16x1xf32>
    %14 = vector.extract_strided_slice %1 {offsets = [2, 0], sizes = [1, 768], strides = [1, 1]} : vector<3x768xf32> to vector<1x768xf32>
    %15 = vector.broadcast %13 : vector<16x1xf32> to vector<16x768xf32>
    %16 = vector.broadcast %14 : vector<1x768xf32> to vector<16x768xf32>
    %17 = arith.mulf %15, %16 : vector<16x768xf32>
    %18 = arith.addf %12, %17 : vector<16x768xf32>
    %19 = vector.extract_strided_slice %18 {offsets = [0, 0], sizes = [16, 512], strides = [1, 1]} : vector<16x768xf32> to vector<16x512xf32>
    %c0_3 = arith.constant 0 : index
    %c0_4 = arith.constant 0 : index
    %20 = vector.load %arg3[%c0_3, %c0_4] : memref<1x512xf32, #tpu.memory_space<vmem>>, vector<1x512xf32>
    %21 = vector.broadcast %20 : vector<1x512xf32> to vector<16x512xf32>
    %22 = arith.addf %19, %21 : vector<16x512xf32>
    %cst = arith.constant 0.000000e+00 : f32
    %23 = vector.broadcast %cst : f32 to vector<16x512xf32>
    %24 = arith.maximumf %22, %23 : vector<16x512xf32>
    %25 = arith.truncf %24 : vector<16x512xf32> to vector<16x512xbf16>
    %26 = vector.extract_strided_slice %18 {offsets = [0, 512], sizes = [16, 256], strides = [1, 1]} : vector<16x768xf32> to vector<16x256xf32>
    %c0_5 = arith.constant 0 : index
    %c0_6 = arith.constant 0 : index
    %27 = vector.load %arg4[%c0_5, %c0_6] : memref<512x256xbf16, #tpu.memory_space<vmem>>, vector<512x256xbf16>
    %cst_7 = arith.constant dense<0.000000e+00> : vector<16x256xf32>
    %28 = tpu.matmul %25, %27, %cst_7 {dimension_numbers = #tpu.dot_dimension_numbers<[1], [0], [0], [1], [0, 0, 1, 1], [], []>} : vector<16x512xbf16>, vector<512x256xbf16>, vector<16x256xf32> -> vector<16x256xf32>
    %c0_8 = arith.constant 0 : index
    %c0_9 = arith.constant 0 : index
    %29 = vector.load %arg5[%c0_8, %c0_9] : memref<1x256xf32, #tpu.memory_space<vmem>>, vector<1x256xf32>
    %30 = vector.broadcast %29 : vector<1x256xf32> to vector<16x256xf32>
    %31 = arith.addf %28, %30 : vector<16x256xf32>
    %cst_10 = arith.constant 0.000000e+00 : f32
    %32 = vector.broadcast %cst_10 : f32 to vector<16x256xf32>
    %33 = arith.maximumf %31, %32 : vector<16x256xf32>
    %34 = arith.truncf %33 : vector<16x256xf32> to vector<16x256xbf16>
    %c0_11 = arith.constant 0 : index
    %c0_12 = arith.constant 0 : index
    %35 = vector.load %arg6[%c0_11, %c0_12] : memref<256x256xbf16, #tpu.memory_space<vmem>>, vector<256x256xbf16>
    %cst_13 = arith.constant dense<0.000000e+00> : vector<16x256xf32>
    %36 = tpu.matmul %34, %35, %cst_13 {dimension_numbers = #tpu.dot_dimension_numbers<[1], [0], [0], [1], [0, 0, 1, 1], [], []>} : vector<16x256xbf16>, vector<256x256xbf16>, vector<16x256xf32> -> vector<16x256xf32>
    %c0_14 = arith.constant 0 : index
    %c0_15 = arith.constant 0 : index
    %37 = vector.load %arg7[%c0_14, %c0_15] : memref<1x256xf32, #tpu.memory_space<vmem>>, vector<1x256xf32>
    %38 = vector.broadcast %37 : vector<1x256xf32> to vector<16x256xf32>
    %39 = arith.addf %36, %38 : vector<16x256xf32>
    %cst_16 = arith.constant 0.000000e+00 : f32
    %40 = vector.broadcast %cst_16 : f32 to vector<16x256xf32>
    %41 = arith.maximumf %39, %40 : vector<16x256xf32>
    %42 = arith.truncf %41 : vector<16x256xf32> to vector<16x256xbf16>
    %c0_17 = arith.constant 0 : index
    %c0_18 = arith.constant 0 : index
    %43 = vector.load %arg8[%c0_17, %c0_18] : memref<256x256xbf16, #tpu.memory_space<vmem>>, vector<256x256xbf16>
    %cst_19 = arith.constant dense<0.000000e+00> : vector<16x256xf32>
    %44 = tpu.matmul %42, %43, %cst_19 {dimension_numbers = #tpu.dot_dimension_numbers<[1], [0], [0], [1], [0, 0, 1, 1], [], []>} : vector<16x256xbf16>, vector<256x256xbf16>, vector<16x256xf32> -> vector<16x256xf32>
    %c0_20 = arith.constant 0 : index
    %c0_21 = arith.constant 0 : index
    %45 = vector.load %arg9[%c0_20, %c0_21] : memref<1x256xf32, #tpu.memory_space<vmem>>, vector<1x256xf32>
    %46 = vector.broadcast %45 : vector<1x256xf32> to vector<16x256xf32>
    %47 = arith.addf %44, %46 : vector<16x256xf32>
    %cst_22 = arith.constant 0.000000e+00 : f32
    %48 = vector.broadcast %cst_22 : f32 to vector<16x256xf32>
    %49 = arith.maximumf %47, %48 : vector<16x256xf32>
    %50 = arith.truncf %49 : vector<16x256xf32> to vector<16x256xbf16>
    %c0_23 = arith.constant 0 : index
    %c0_24 = arith.constant 0 : index
    %51 = vector.load %arg10[%c0_23, %c0_24] : memref<256x256xbf16, #tpu.memory_space<vmem>>, vector<256x256xbf16>
    %cst_25 = arith.constant dense<0.000000e+00> : vector<16x256xf32>
    %52 = tpu.matmul %50, %51, %cst_25 {dimension_numbers = #tpu.dot_dimension_numbers<[1], [0], [0], [1], [0, 0, 1, 1], [], []>} : vector<16x256xbf16>, vector<256x256xbf16>, vector<16x256xf32> -> vector<16x256xf32>
    %c0_26 = arith.constant 0 : index
    %c0_27 = arith.constant 0 : index
    %53 = vector.load %arg11[%c0_26, %c0_27] : memref<1x256xf32, #tpu.memory_space<vmem>>, vector<1x256xf32>
    %54 = vector.broadcast %53 : vector<1x256xf32> to vector<16x256xf32>
    %55 = arith.addf %52, %54 : vector<16x256xf32>
    %cst_28 = arith.constant 0.000000e+00 : f32
    %56 = vector.broadcast %cst_28 : f32 to vector<16x256xf32>
    %57 = arith.maximumf %55, %56 : vector<16x256xf32>
    %58 = arith.truncf %57 : vector<16x256xf32> to vector<16x256xbf16>
    %c0_29 = arith.constant 0 : index
    %c0_30 = arith.constant 0 : index
    %59 = vector.load %arg12[%c0_29, %c0_30] : memref<256x256xbf16, #tpu.memory_space<vmem>>, vector<256x256xbf16>
    %cst_31 = arith.constant dense<0.000000e+00> : vector<16x256xf32>
    %60 = tpu.matmul %58, %59, %cst_31 {dimension_numbers = #tpu.dot_dimension_numbers<[1], [0], [0], [1], [0, 0, 1, 1], [], []>} : vector<16x256xbf16>, vector<256x256xbf16>, vector<16x256xf32> -> vector<16x256xf32>
    %61 = arith.addf %26, %60 : vector<16x256xf32>
    %c0_32 = arith.constant 0 : index
    %c0_33 = arith.constant 0 : index
    %62 = vector.load %arg13[%c0_32, %c0_33] : memref<1x256xf32, #tpu.memory_space<vmem>>, vector<1x256xf32>
    %63 = vector.broadcast %62 : vector<1x256xf32> to vector<16x256xf32>
    %64 = arith.addf %61, %63 : vector<16x256xf32>
    %cst_34 = arith.constant 0.000000e+00 : f32
    %65 = vector.broadcast %cst_34 : f32 to vector<16x256xf32>
    %66 = arith.maximumf %64, %65 : vector<16x256xf32>
    %67 = arith.truncf %66 : vector<16x256xf32> to vector<16x256xbf16>
    %c0_35 = arith.constant 0 : index
    %c0_36 = arith.constant 0 : index
    %68 = vector.load %arg14[%c0_35, %c0_36] : memref<256x256xbf16, #tpu.memory_space<vmem>>, vector<256x256xbf16>
    %cst_37 = arith.constant dense<0.000000e+00> : vector<16x256xf32>
    %69 = tpu.matmul %67, %68, %cst_37 {dimension_numbers = #tpu.dot_dimension_numbers<[1], [0], [0], [1], [0, 0, 1, 1], [], []>} : vector<16x256xbf16>, vector<256x256xbf16>, vector<16x256xf32> -> vector<16x256xf32>
    %c0_38 = arith.constant 0 : index
    %c0_39 = arith.constant 0 : index
    %70 = vector.load %arg15[%c0_38, %c0_39] : memref<1x256xf32, #tpu.memory_space<vmem>>, vector<1x256xf32>
    %71 = vector.broadcast %70 : vector<1x256xf32> to vector<16x256xf32>
    %72 = arith.addf %69, %71 : vector<16x256xf32>
    %cst_40 = arith.constant 0.000000e+00 : f32
    %73 = vector.broadcast %cst_40 : f32 to vector<16x256xf32>
    %74 = arith.maximumf %72, %73 : vector<16x256xf32>
    %75 = arith.truncf %74 : vector<16x256xf32> to vector<16x256xbf16>
    %c0_41 = arith.constant 0 : index
    %c0_42 = arith.constant 0 : index
    %76 = vector.load %arg16[%c0_41, %c0_42] : memref<256x256xbf16, #tpu.memory_space<vmem>>, vector<256x256xbf16>
    %cst_43 = arith.constant dense<0.000000e+00> : vector<16x256xf32>
    %77 = tpu.matmul %75, %76, %cst_43 {dimension_numbers = #tpu.dot_dimension_numbers<[1], [0], [0], [1], [0, 0, 1, 1], [], []>} : vector<16x256xbf16>, vector<256x256xbf16>, vector<16x256xf32> -> vector<16x256xf32>
    %c0_44 = arith.constant 0 : index
    %c0_45 = arith.constant 0 : index
    %78 = vector.load %arg17[%c0_44, %c0_45] : memref<1x256xf32, #tpu.memory_space<vmem>>, vector<1x256xf32>
    %79 = vector.broadcast %78 : vector<1x256xf32> to vector<16x256xf32>
    %80 = arith.addf %77, %79 : vector<16x256xf32>
    %cst_46 = arith.constant 0.000000e+00 : f32
    %81 = vector.broadcast %cst_46 : f32 to vector<16x256xf32>
    %82 = arith.maximumf %80, %81 : vector<16x256xf32>
    %83 = arith.truncf %82 : vector<16x256xf32> to vector<16x256xbf16>
    %c0_47 = arith.constant 0 : index
    %c0_48 = arith.constant 0 : index
    %84 = vector.load %arg18[%c0_47, %c0_48] : memref<256x4xbf16, #tpu.memory_space<vmem>>, vector<256x4xbf16>
    %cst_49 = arith.constant dense<0.000000e+00> : vector<16x4xf32>
    %85 = tpu.matmul %83, %84, %cst_49 {dimension_numbers = #tpu.dot_dimension_numbers<[1], [0], [0], [1], [0, 0, 1, 1], [], []>} : vector<16x256xbf16>, vector<256x4xbf16>, vector<16x4xf32> -> vector<16x4xf32>
    %c0_50 = arith.constant 0 : index
    %c0_51 = arith.constant 0 : index
    %86 = vector.load %arg19[%c0_50, %c0_51] : memref<1x4xf32, #tpu.memory_space<vmem>>, vector<1x4xf32>
    %87 = vector.broadcast %86 : vector<1x4xf32> to vector<16x4xf32>
    %88 = arith.addf %85, %87 : vector<16x4xf32>
    %c0_52 = arith.constant 0 : index
    %c0_53 = arith.constant 0 : index
    %89 = vector.load %arg20[%c0_52, %c0_53] : memref<16x4xf32, #tpu.memory_space<vmem>>, vector<16x4xf32>
    tpu.vector_store %arg20[%c0_52, %c0_53], %88 {strides = array<i32>} : memref<16x4xf32, #tpu.memory_space<vmem>>, vector<16x4xf32>,
    return
  }
  func.func @transform_0(%arg0: i32) -> (i32, i32) {
    %c0_i32 = arith.constant 0 : i32
    %c0_i32_0 = arith.constant 0 : i32
    return %arg0, %c0_i32 : i32, i32
  }
  func.func @transform_1(%arg0: i32) -> (i32, i32) {
    %c0_i32 = arith.constant 0 : i32
    %c0_i32_0 = arith.constant 0 : i32
    %c0_i32_1 = arith.constant 0 : i32
    return %c0_i32, %c0_i32_0 : i32, i32
  }
  func.func @transform_2(%arg0: i32) -> (i32, i32) {
    %c0_i32 = arith.constant 0 : i32
    %c0_i32_0 = arith.constant 0 : i32
    %c0_i32_1 = arith.constant 0 : i32
    return %c0_i32, %c0_i32_0 : i32, i32
  }
  func.func @transform_3(%arg0: i32) -> (i32, i32) {
    %c0_i32 = arith.constant 0 : i32
    %c0_i32_0 = arith.constant 0 : i32
    %c0_i32_1 = arith.constant 0 : i32
    return %c0_i32, %c0_i32_0 : i32, i32
  }
  func.func @transform_4(%arg0: i32) -> (i32, i32) {
    %c0_i32 = arith.constant 0 : i32
    %c0_i32_0 = arith.constant 0 : i32
    %c0_i32_1 = arith.constant 0 : i32
    return %c0_i32, %c0_i32_0 : i32, i32
  }
  func.func @transform_5(%arg0: i32) -> (i32, i32) {
    %c0_i32 = arith.constant 0 : i32
    %c0_i32_0 = arith.constant 0 : i32
    %c0_i32_1 = arith.constant 0 : i32
    return %c0_i32, %c0_i32_0 : i32, i32
  }
  func.func @transform_6(%arg0: i32) -> (i32, i32) {
    %c0_i32 = arith.constant 0 : i32
    %c0_i32_0 = arith.constant 0 : i32
    %c0_i32_1 = arith.constant 0 : i32
    return %c0_i32, %c0_i32_0 : i32, i32
  }
  func.func @transform_7(%arg0: i32) -> (i32, i32) {
    %c0_i32 = arith.constant 0 : i32
    %c0_i32_0 = arith.constant 0 : i32
    %c0_i32_1 = arith.constant 0 : i32
    return %c0_i32, %c0_i32_0 : i32, i32
  }
  func.func @transform_8(%arg0: i32) -> (i32, i32) {
    %c0_i32 = arith.constant 0 : i32
    %c0_i32_0 = arith.constant 0 : i32
    %c0_i32_1 = arith.constant 0 : i32
    return %c0_i32, %c0_i32_0 : i32, i32
  }
  func.func @transform_9(%arg0: i32) -> (i32, i32) {
    %c0_i32 = arith.constant 0 : i32
    %c0_i32_0 = arith.constant 0 : i32
    %c0_i32_1 = arith.constant 0 : i32
    return %c0_i32, %c0_i32_0 : i32, i32
  }
  func.func @transform_10(%arg0: i32) -> (i32, i32) {
    %c0_i32 = arith.constant 0 : i32
    %c0_i32_0 = arith.constant 0 : i32
    %c0_i32_1 = arith.constant 0 : i32
    return %c0_i32, %c0_i32_0 : i32, i32
  }
  func.func @transform_11(%arg0: i32) -> (i32, i32) {
    %c0_i32 = arith.constant 0 : i32
    %c0_i32_0 = arith.constant 0 : i32
    %c0_i32_1 = arith.constant 0 : i32
    return %c0_i32, %c0_i32_0 : i32, i32
  }
  func.func @transform_12(%arg0: i32) -> (i32, i32) {
    %c0_i32 = arith.constant 0 : i32
    %c0_i32_0 = arith.constant 0 : i32
    %c0_i32_1 = arith.constant 0 : i32
    return %c0_i32, %c0_i32_0 : i32, i32
  }
  func.func @transform_13(%arg0: i32) -> (i32, i32) {
    %c0_i32 = arith.constant 0 : i32
    %c0_i32_0 = arith.constant 0 : i32
    %c0_i32_1 = arith.constant 0 : i32
    return %c0_i32, %c0_i32_0 : i32, i32
  }
  func.func @transform_14(%arg0: i32) -> (i32, i32) {
    %c0_i32 = arith.constant 0 : i32
    %c0_i32_0 = arith.constant 0 : i32
    %c0_i32_1 = arith.constant 0 : i32
    return %c0_i32, %c0_i32_0 : i32, i32
  }
  func.func @transform_15(%arg0: i32) -> (i32, i32) {
    %c0_i32 = arith.constant 0 : i32
    %c0_i32_0 = arith.constant 0 : i32
    %c0_i32_1 = arith.constant 0 : i32
    return %c0_i32, %c0_i32_0 : i32, i32
  }
  func.func @transform_16(%arg0: i32) -> (i32, i32) {
    %c0_i32 = arith.constant 0 : i32
    %c0_i32_0 = arith.constant 0 : i32
    %c0_i32_1 = arith.constant 0 : i32
    return %c0_i32, %c0_i32_0 : i32, i32
  }
  func.func @transform_17(%arg0: i32) -> (i32, i32) {
    %c0_i32 = arith.constant 0 : i32
    %c0_i32_0 = arith.constant 0 : i32
    %c0_i32_1 = arith.constant 0 : i32
    return %c0_i32, %c0_i32_0 : i32, i32
  }
  func.func @transform_18(%arg0: i32) -> (i32, i32) {
    %c0_i32 = arith.constant 0 : i32
    %c0_i32_0 = arith.constant 0 : i32
    %c0_i32_1 = arith.constant 0 : i32
    return %c0_i32, %c0_i32_0 : i32, i32
  }
  func.func @transform_19(%arg0: i32) -> (i32, i32) {
    %c0_i32 = arith.constant 0 : i32
    %c0_i32_0 = arith.constant 0 : i32
    return %arg0, %c0_i32 : i32, i32
  }
}

module attributes {stable_mosaic.version = 11 : i64} {
  func.func @_clip2nphm_kernel(%arg0: i32, %arg1: memref<16x3xf32, #tpu.memory_space<vmem>>, %arg2: memref<3x768xf32, #tpu.memory_space<vmem>>, %arg3: memref<1x512xf32, #tpu.memory_space<vmem>>, %arg4: memref<512x256xbf16, #tpu.memory_space<vmem>>, %arg5: memref<1x256xf32, #tpu.memory_space<vmem>>, %arg6: memref<256x256xbf16, #tpu.memory_space<vmem>>, %arg7: memref<1x256xf32, #tpu.memory_space<vmem>>, %arg8: memref<256x256xbf16, #tpu.memory_space<vmem>>, %arg9: memref<1x256xf32, #tpu.memory_space<vmem>>, %arg10: memref<256x256xbf16, #tpu.memory_space<vmem>>, %arg11: memref<1x256xf32, #tpu.memory_space<vmem>>, %arg12: memref<256x256xbf16, #tpu.memory_space<vmem>>, %arg13: memref<1x256xf32, #tpu.memory_space<vmem>>, %arg14: memref<256x256xbf16, #tpu.memory_space<vmem>>, %arg15: memref<1x256xf32, #tpu.memory_space<vmem>>, %arg16: memref<256x256xbf16, #tpu.memory_space<vmem>>, %arg17: memref<1x256xf32, #tpu.memory_space<vmem>>, %arg18: memref<256x4xbf16, #tpu.memory_space<vmem>>, %arg19: memref<1x4xf32, #tpu.memory_space<vmem>>, %arg20: memref<16x4xf32, #tpu.memory_space<vmem>>) attributes {dimension_semantics = [#tpu.dimension_semantics<parallel>], iteration_bounds = array<i64: 1>, scalar_prefetch = 0 : i64, scratch_operands = 0 : i64, tpu.core_type = #tpu.core_type<tc>, window_params = [{transform_indices = @transform_0, window_bounds = array<i64: 16, 3>}, {pipeline_mode = #tpu.pipeline_mode<synchronous>, transform_indices = @transform_1, window_bounds = array<i64: 3, 768>}, {pipeline_mode = #tpu.pipeline_mode<synchronous>, transform_indices = @transform_2, window_bounds = array<i64: 1, 512>}, {pipeline_mode = #tpu.pipeline_mode<synchronous>, transform_indices = @transform_3, window_bounds = array<i64: 512, 256>}, {pipeline_mode = #tpu.pipeline_mode<synchronous>, transform_indices = @transform_4, window_bounds = array<i64: 1, 256>}, {pipeline_mode = #tpu.pipeline_mode<synchronous>, transform_indices = @transform_5, window_bounds = array<i64: 256, 256>}, {pipeline_mode = #tpu.pipeline_mode<synchronous>, transform_indices = @transform_6, window_bounds = array<i64: 1, 256>}, {pipeline_mode = #tpu.pipeline_mode<synchronous>, transform_indices = @transform_7, window_bounds = array<i64: 256, 256>}, {pipeline_mode = #tpu.pipeline_mode<synchronous>, transform_indices = @transform_8, window_bounds = array<i64: 1, 256>}, {pipeline_mode = #tpu.pipeline_mode<synchronous>, transform_indices = @transform_9, window_bounds = array<i64: 256, 256>}, {pipeline_mode = #tpu.pipeline_mode<synchronous>, transform_indices = @transform_10, window_bounds = array<i64: 1, 256>}, {pipeline_mode = #tpu.pipeline_mode<synchronous>, transform_indices = @transform_11, window_bounds = array<i64: 256, 256>}, {pipeline_mode = #tpu.pipeline_mode<synchronous>, transform_indices = @transform_12, window_bounds = array<i64: 1, 256>}, {pipeline_mode = #tpu.pipeline_mode<synchronous>, transform_indices = @transform_13, window_bounds = array<i64: 256, 256>}, {pipeline_mode = #tpu.pipeline_mode<synchronous>, transform_indices = @transform_14, window_bounds = array<i64: 1, 256>}, {pipeline_mode = #tpu.pipeline_mode<synchronous>, transform_indices = @transform_15, window_bounds = array<i64: 256, 256>}, {pipeline_mode = #tpu.pipeline_mode<synchronous>, transform_indices = @transform_16, window_bounds = array<i64: 1, 256>}, {pipeline_mode = #tpu.pipeline_mode<synchronous>, transform_indices = @transform_17, window_bounds = array<i64: 256, 4>}, {pipeline_mode = #tpu.pipeline_mode<synchronous>, transform_indices = @transform_18, window_bounds = array<i64: 1, 4>}, {transform_indices = @transform_19, window_bounds = array<i64: 16, 4>}]} {
    %c0 = arith.constant 0 : index
    %c0_0 = arith.constant 0 : index
    %0 = vector.load %arg1[%c0, %c0_0] : memref<16x3xf32, #tpu.memory_space<vmem>>, vector<16x3xf32>
    %c0_1 = arith.constant 0 : index
    %c0_2 = arith.constant 0 : index
    %1 = vector.load %arg2[%c0_1, %c0_2] : memref<3x768xf32, #tpu.memory_space<vmem>>, vector<3x768xf32>
    %2 = vector.extract_strided_slice %0 {offsets = [0, 0], sizes = [16, 1], strides = [1, 1]} : vector<16x3xf32> to vector<16x1xf32>
    %3 = vector.extract_strided_slice %1 {offsets = [0, 0], sizes = [1, 768], strides = [1, 1]} : vector<3x768xf32> to vector<1x768xf32>
    %4 = vector.broadcast %2 : vector<16x1xf32> to vector<16x768xf32>
    %5 = vector.broadcast %3 : vector<1x768xf32> to vector<16x768xf32>
    %6 = arith.mulf %4, %5 : vector<16x768xf32>
    %7 = vector.extract_strided_slice %0 {offsets = [0, 1], sizes = [16, 1], strides = [1, 1]} : vector<16x3xf32> to vector<16x1xf32>
    %8 = vector.extract_strided_slice %1 {offsets = [1, 0], sizes = [1, 768], strides = [1, 1]} : vector<3x768xf32> to vector<1x768xf32>
    %9 = vector.broadcast %7 : vector<16x1xf32> to vector<16x768xf32>
    %10 = vector.broadcast %8 : vector<1x768xf32> to vector<16x768xf32>
    %11 = arith.mulf %9, %10 : vector<16x768xf32>
    %12 = arith.addf %6, %11 : vector<16x768xf32>
    %13 = vector.extract_strided_slice %0 {offsets = [0, 2], sizes = [16, 1], strides = [1, 1]} : vector<16x3xf32> to vector<16x1xf32>
    %14 = vector.extract_strided_slice %1 {offsets = [2, 0], sizes = [1, 768], strides = [1, 1]} : vector<3x768xf32> to vector<1x768xf32>
    %15 = vector.broadcast %13 : vector<16x1xf32> to vector<16x768xf32>
    %16 = vector.broadcast %14 : vector<1x768xf32> to vector<16x768xf32>
    %17 = arith.mulf %15, %16 : vector<16x768xf32>
    %18 = arith.addf %12, %17 : vector<16x768xf32>
    %19 = vector.extract_strided_slice %18 {offsets = [0, 0], sizes = [16, 512], strides = [1, 1]} : vector<16x768xf32> to vector<16x512xf32>
    %c0_3 = arith.constant 0 : index
    %c0_4 = arith.constant 0 : index
    %20 = vector.load %arg3[%c0_3, %c0_4] : memref<1x512xf32, #tpu.memory_space<vmem>>, vector<1x512xf32>
    %21 = vector.broadcast %20 : vector<1x512xf32> to vector<16x512xf32>
    %22 = arith.addf %19, %21 : vector<16x512xf32>
    %cst = arith.constant 0.000000e+00 : f32
    %23 = vector.broadcast %cst : f32 to vector<16x512xf32>
    %24 = arith.maximumf %22, %23 : vector<16x512xf32>
    %25 = arith.truncf %24 : vector<16x512xf32> to vector<16x512xbf16>
    %26 = vector.extract_strided_slice %18 {offsets = [0, 512], sizes = [16, 256], strides = [1, 1]} : vector<16x768xf32> to vector<16x256xf32>
    %c0_5 = arith.constant 0 : index
    %c0_6 = arith.constant 0 : index
    %27 = vector.load %arg4[%c0_5, %c0_6] : memref<512x256xbf16, #tpu.memory_space<vmem>>, vector<512x256xbf16>
    %cst_7 = arith.constant dense<0.000000e+00> : vector<16x256xf32>
    %28 = tpu.matmul %25, %27, %cst_7 {dimension_numbers = #tpu.dot_dimension_numbers<[1], [0], [0], [1], [0, 0, 1, 1], [], []>} : vector<16x512xbf16>, vector<512x256xbf16>, vector<16x256xf32> -> vector<16x256xf32>
    %c0_8 = arith.constant 0 : index
    %c0_9 = arith.constant 0 : index
    %29 = vector.load %arg5[%c0_8, %c0_9] : memref<1x256xf32, #tpu.memory_space<vmem>>, vector<1x256xf32>
    %30 = vector.broadcast %29 : vector<1x256xf32> to vector<16x256xf32>
    %31 = arith.addf %28, %30 : vector<16x256xf32>
    %cst_10 = arith.constant 0.000000e+00 : f32
    %32 = vector.broadcast %cst_10 : f32 to vector<16x256xf32>
    %33 = arith.maximumf %31, %32 : vector<16x256xf32>
    %34 = arith.truncf %33 : vector<16x256xf32> to vector<16x256xbf16>
    %c0_11 = arith.constant 0 : index
    %c0_12 = arith.constant 0 : index
    %35 = vector.load %arg6[%c0_11, %c0_12] : memref<256x256xbf16, #tpu.memory_space<vmem>>, vector<256x256xbf16>
    %cst_13 = arith.constant dense<0.000000e+00> : vector<16x256xf32>
    %36 = tpu.matmul %34, %35, %cst_13 {dimension_numbers = #tpu.dot_dimension_numbers<[1], [0], [0], [1], [0, 0, 1, 1], [], []>} : vector<16x256xbf16>, vector<256x256xbf16>, vector<16x256xf32> -> vector<16x256xf32>
    %c0_14 = arith.constant 0 : index
    %c0_15 = arith.constant 0 : index
    %37 = vector.load %arg7[%c0_14, %c0_15] : memref<1x256xf32, #tpu.memory_space<vmem>>, vector<1x256xf32>
    %38 = vector.broadcast %37 : vector<1x256xf32> to vector<16x256xf32>
    %39 = arith.addf %36, %38 : vector<16x256xf32>
    %cst_16 = arith.constant 0.000000e+00 : f32
    %40 = vector.broadcast %cst_16 : f32 to vector<16x256xf32>
    %41 = arith.maximumf %39, %40 : vector<16x256xf32>
    %42 = arith.truncf %41 : vector<16x256xf32> to vector<16x256xbf16>
    %c0_17 = arith.constant 0 : index
    %c0_18 = arith.constant 0 : index
    %43 = vector.load %arg8[%c0_17, %c0_18] : memref<256x256xbf16, #tpu.memory_space<vmem>>, vector<256x256xbf16>
    %cst_19 = arith.constant dense<0.000000e+00> : vector<16x256xf32>
    %44 = tpu.matmul %42, %43, %cst_19 {dimension_numbers = #tpu.dot_dimension_numbers<[1], [0], [0], [1], [0, 0, 1, 1], [], []>} : vector<16x256xbf16>, vector<256x256xbf16>, vector<16x256xf32> -> vector<16x256xf32>
    %c0_20 = arith.constant 0 : index
    %c0_21 = arith.constant 0 : index
    %45 = vector.load %arg9[%c0_20, %c0_21] : memref<1x256xf32, #tpu.memory_space<vmem>>, vector<1x256xf32>
    %46 = vector.broadcast %45 : vector<1x256xf32> to vector<16x256xf32>
    %47 = arith.addf %44, %46 : vector<16x256xf32>
    %cst_22 = arith.constant 0.000000e+00 : f32
    %48 = vector.broadcast %cst_22 : f32 to vector<16x256xf32>
    %49 = arith.maximumf %47, %48 : vector<16x256xf32>
    %50 = arith.truncf %49 : vector<16x256xf32> to vector<16x256xbf16>
    %c0_23 = arith.constant 0 : index
    %c0_24 = arith.constant 0 : index
    %51 = vector.load %arg10[%c0_23, %c0_24] : memref<256x256xbf16, #tpu.memory_space<vmem>>, vector<256x256xbf16>
    %cst_25 = arith.constant dense<0.000000e+00> : vector<16x256xf32>
    %52 = tpu.matmul %50, %51, %cst_25 {dimension_numbers = #tpu.dot_dimension_numbers<[1], [0], [0], [1], [0, 0, 1, 1], [], []>} : vector<16x256xbf16>, vector<256x256xbf16>, vector<16x256xf32> -> vector<16x256xf32>
    %c0_26 = arith.constant 0 : index
    %c0_27 = arith.constant 0 : index
    %53 = vector.load %arg11[%c0_26, %c0_27] : memref<1x256xf32, #tpu.memory_space<vmem>>, vector<1x256xf32>
    %54 = vector.broadcast %53 : vector<1x256xf32> to vector<16x256xf32>
    %55 = arith.addf %52, %54 : vector<16x256xf32>
    %cst_28 = arith.constant 0.000000e+00 : f32
    %56 = vector.broadcast %cst_28 : f32 to vector<16x256xf32>
    %57 = arith.maximumf %55, %56 : vector<16x256xf32>
    %58 = arith.truncf %57 : vector<16x256xf32> to vector<16x256xbf16>
    %c0_29 = arith.constant 0 : index
    %c0_30 = arith.constant 0 : index
    %59 = vector.load %arg12[%c0_29, %c0_30] : memref<256x256xbf16, #tpu.memory_space<vmem>>, vector<256x256xbf16>
    %cst_31 = arith.constant dense<0.000000e+00> : vector<16x256xf32>
    %60 = tpu.matmul %58, %59, %cst_31 {dimension_numbers = #tpu.dot_dimension_numbers<[1], [0], [0], [1], [0, 0, 1, 1], [], []>} : vector<16x256xbf16>, vector<256x256xbf16>, vector<16x256xf32> -> vector<16x256xf32>
    %61 = arith.addf %26, %60 : vector<16x256xf32>
    %c0_32 = arith.constant 0 : index
    %c0_33 = arith.constant 0 : index
    %62 = vector.load %arg13[%c0_32, %c0_33] : memref<1x256xf32, #tpu.memory_space<vmem>>, vector<1x256xf32>
    %63 = vector.broadcast %62 : vector<1x256xf32> to vector<16x256xf32>
    %64 = arith.addf %61, %63 : vector<16x256xf32>
    %cst_34 = arith.constant 0.000000e+00 : f32
    %65 = vector.broadcast %cst_34 : f32 to vector<16x256xf32>
    %66 = arith.maximumf %64, %65 : vector<16x256xf32>
    %67 = arith.truncf %66 : vector<16x256xf32> to vector<16x256xbf16>
    %c0_35 = arith.constant 0 : index
    %c0_36 = arith.constant 0 : index
    %68 = vector.load %arg14[%c0_35, %c0_36] : memref<256x256xbf16, #tpu.memory_space<vmem>>, vector<256x256xbf16>
    %cst_37 = arith.constant dense<0.000000e+00> : vector<16x256xf32>
    %69 = tpu.matmul %67, %68, %cst_37 {dimension_numbers = #tpu.dot_dimension_numbers<[1], [0], [0], [1], [0, 0, 1, 1], [], []>} : vector<16x256xbf16>, vector<256x256xbf16>, vector<16x256xf32> -> vector<16x256xf32>
    %c0_38 = arith.constant 0 : index
    %c0_39 = arith.constant 0 : index
    %70 = vector.load %arg15[%c0_38, %c0_39] : memref<1x256xf32, #tpu.memory_space<vmem>>, vector<1x256xf32>
    %71 = vector.broadcast %70 : vector<1x256xf32> to vector<16x256xf32>
    %72 = arith.addf %69, %71 : vector<16x256xf32>
    %cst_40 = arith.constant 0.000000e+00 : f32
    %73 = vector.broadcast %cst_40 : f32 to vector<16x256xf32>
    %74 = arith.maximumf %72, %73 : vector<16x256xf32>
    %75 = arith.truncf %74 : vector<16x256xf32> to vector<16x256xbf16>
    %c0_41 = arith.constant 0 : index
    %c0_42 = arith.constant 0 : index
    %76 = vector.load %arg16[%c0_41, %c0_42] : memref<256x256xbf16, #tpu.memory_space<vmem>>, vector<256x256xbf16>
    %cst_43 = arith.constant dense<0.000000e+00> : vector<16x256xf32>
    %77 = tpu.matmul %75, %76, %cst_43 {dimension_numbers = #tpu.dot_dimension_numbers<[1], [0], [0], [1], [0, 0, 1, 1], [], []>} : vector<16x256xbf16>, vector<256x256xbf16>, vector<16x256xf32> -> vector<16x256xf32>
    %c0_44 = arith.constant 0 : index
    %c0_45 = arith.constant 0 : index
    %78 = vector.load %arg17[%c0_44, %c0_45] : memref<1x256xf32, #tpu.memory_space<vmem>>, vector<1x256xf32>
    %79 = vector.broadcast %78 : vector<1x256xf32> to vector<16x256xf32>
    %80 = arith.addf %77, %79 : vector<16x256xf32>
    %cst_46 = arith.constant 0.000000e+00 : f32
    %81 = vector.broadcast %cst_46 : f32 to vector<16x256xf32>
    %82 = arith.maximumf %80, %81 : vector<16x256xf32>
    %83 = arith.truncf %82 : vector<16x256xf32> to vector<16x256xbf16>
    %c0_47 = arith.constant 0 : index
    %c0_48 = arith.constant 0 : index
    %84 = vector.load %arg18[%c0_47, %c0_48] : memref<256x4xbf16, #tpu.memory_space<vmem>>, vector<256x4xbf16>
    %cst_49 = arith.constant dense<0.000000e+00> : vector<16x4xf32>
    %85 = tpu.matmul %83, %84, %cst_49 {dimension_numbers = #tpu.dot_dimension_numbers<[1], [0], [0], [1], [0, 0, 1, 1], [], []>} : vector<16x256xbf16>, vector<256x4xbf16>, vector<16x4xf32> -> vector<16x4xf32>
    %c0_50 = arith.constant 0 : index
    %c0_51 = arith.constant 0 : index
    %86 = vector.load %arg19[%c0_50, %c0_51] : memref<1x4xf32, #tpu.memory_space<vmem>>, vector<1x4xf32>
    %87 = vector.broadcast %86 : vector<1x4xf32> to vector<16x4xf32>
    %88 = arith.addf %85, %87 : vector<16x4xf32>
    %c0_52 = arith.constant 0 : index
    %c0_53 = arith.constant 0 : index
    %89 = vector.load %arg20[%c0_52, %c0_53] : memref<16x4xf32, #tpu.memory_space<vmem>>, vector<16x4xf32>
    tpu.vector_store %arg20[%c0_52, %c0_53], %88 {strides = array<i32>} : memref<16x4xf32, #tpu.memory_space<vmem>>, vector<16x4xf32>,
    return
  }
  func.func @transform_0(%arg0: i32) -> (i32, i32) {
    %c0_i32 = arith.constant 0 : i32
    %c0_i32_0 = arith.constant 0 : i32
    return %arg0, %c0_i32 : i32, i32
  }
  func.func @transform_1(%arg0: i32) -> (i32, i32) {
    %c0_i32 = arith.constant 0 : i32
    %c0_i32_0 = arith.constant 0 : i32
    %c0_i32_1 = arith.constant 0 : i32
    return %c0_i32, %c0_i32_0 : i32, i32
  }
  func.func @transform_2(%arg0: i32) -> (i32, i32) {
    %c0_i32 = arith.constant 0 : i32
    %c0_i32_0 = arith.constant 0 : i32
    %c0_i32_1 = arith.constant 0 : i32
    return %c0_i32, %c0_i32_0 : i32, i32
  }
  func.func @transform_3(%arg0: i32) -> (i32, i32) {
    %c0_i32 = arith.constant 0 : i32
    %c0_i32_0 = arith.constant 0 : i32
    %c0_i32_1 = arith.constant 0 : i32
    return %c0_i32, %c0_i32_0 : i32, i32
  }
  func.func @transform_4(%arg0: i32) -> (i32, i32) {
    %c0_i32 = arith.constant 0 : i32
    %c0_i32_0 = arith.constant 0 : i32
    %c0_i32_1 = arith.constant 0 : i32
    return %c0_i32, %c0_i32_0 : i32, i32
  }
  func.func @transform_5(%arg0: i32) -> (i32, i32) {
    %c0_i32 = arith.constant 0 : i32
    %c0_i32_0 = arith.constant 0 : i32
    %c0_i32_1 = arith.constant 0 : i32
    return %c0_i32, %c0_i32_0 : i32, i32
  }
  func.func @transform_6(%arg0: i32) -> (i32, i32) {
    %c0_i32 = arith.constant 0 : i32
    %c0_i32_0 = arith.constant 0 : i32
    %c0_i32_1 = arith.constant 0 : i32
    return %c0_i32, %c0_i32_0 : i32, i32
  }
  func.func @transform_7(%arg0: i32) -> (i32, i32) {
    %c0_i32 = arith.constant 0 : i32
    %c0_i32_0 = arith.constant 0 : i32
    %c0_i32_1 = arith.constant 0 : i32
    return %c0_i32, %c0_i32_0 : i32, i32
  }
  func.func @transform_8(%arg0: i32) -> (i32, i32) {
    %c0_i32 = arith.constant 0 : i32
    %c0_i32_0 = arith.constant 0 : i32
    %c0_i32_1 = arith.constant 0 : i32
    return %c0_i32, %c0_i32_0 : i32, i32
  }
  func.func @transform_9(%arg0: i32) -> (i32, i32) {
    %c0_i32 = arith.constant 0 : i32
    %c0_i32_0 = arith.constant 0 : i32
    %c0_i32_1 = arith.constant 0 : i32
    return %c0_i32, %c0_i32_0 : i32, i32
  }
  func.func @transform_10(%arg0: i32) -> (i32, i32) {
    %c0_i32 = arith.constant 0 : i32
    %c0_i32_0 = arith.constant 0 : i32
    %c0_i32_1 = arith.constant 0 : i32
    return %c0_i32, %c0_i32_0 : i32, i32
  }
  func.func @transform_11(%arg0: i32) -> (i32, i32) {
    %c0_i32 = arith.constant 0 : i32
    %c0_i32_0 = arith.constant 0 : i32
    %c0_i32_1 = arith.constant 0 : i32
    return %c0_i32, %c0_i32_0 : i32, i32
  }
  func.func @transform_12(%arg0: i32) -> (i32, i32) {
    %c0_i32 = arith.constant 0 : i32
    %c0_i32_0 = arith.constant 0 : i32
    %c0_i32_1 = arith.constant 0 : i32
    return %c0_i32, %c0_i32_0 : i32, i32
  }
  func.func @transform_13(%arg0: i32) -> (i32, i32) {
    %c0_i32 = arith.constant 0 : i32
    %c0_i32_0 = arith.constant 0 : i32
    %c0_i32_1 = arith.constant 0 : i32
    return %c0_i32, %c0_i32_0 : i32, i32
  }
  func.func @transform_14(%arg0: i32) -> (i32, i32) {
    %c0_i32 = arith.constant 0 : i32
    %c0_i32_0 = arith.constant 0 : i32
    %c0_i32_1 = arith.constant 0 : i32
    return %c0_i32, %c0_i32_0 : i32, i32
  }
  func.func @transform_15(%arg0: i32) -> (i32, i32) {
    %c0_i32 = arith.constant 0 : i32
    %c0_i32_0 = arith.constant 0 : i32
    %c0_i32_1 = arith.constant 0 : i32
    return %c0_i32, %c0_i32_0 : i32, i32
  }
  func.func @transform_16(%arg0: i32) -> (i32, i32) {
    %c0_i32 = arith.constant 0 : i32
    %c0_i32_0 = arith.constant 0 : i32
    %c0_i32_1 = arith.constant 0 : i32
    return %c0_i32, %c0_i32_0 : i32, i32
  }
  func.func @transform_17(%arg0: i32) -> (i32, i32) {
    %c0_i32 = arith.constant 0 : i32
    %c0_i32_0 = arith.constant 0 : i32
    %c0_i32_1 = arith.constant 0 : i32
    return %c0_i32, %c0_i32_0 : i32, i32
  }
  func.func @transform_18(%arg0: i32) -> (i32, i32) {
    %c0_i32 = arith.constant 0 : i32
    %c0_i32_0 = arith.constant 0 : i32
    %c0_i32_1 = arith.constant 0 : i32
    return %c0_i32, %c0_i32_0 : i32, i32
  }
  func.func @transform_19(%arg0: i32) -> (i32, i32) {
    %c0_i32 = arith.constant 0 : i32
    %c0_i32_0 = arith.constant 0 : i32
    return %arg0, %c0_i32 : i32, i32
  }
}

</mosaic_0001>

<llo_original>
// kernel: tpu_custom_call.1
$region0: #{tpu_custom_call.1}
  #allocation0 [shape = 'u32[]', space=smem, size = 0x4, offset = 0x4, fixed_abs, tag = 'smem constant byte address 0x4 - core index']
  #allocation1 [shape = 'u32[144,128]{1,0:T(1,128)}', space=vmem, size = 0x12000, scoped, tag = 'internal scratch']
  %s0 = inlined_call_operand.vmem [shape: f32[16,3], index: 0, kind: input, shape index: {}]
  %s1 = inlined_call_operand.vmem [shape: f32[3,768], index: 1, kind: input, shape index: {}]
  %s2 = inlined_call_operand.vmem [shape: f32[1,512], index: 2, kind: input, shape index: {}]
  %s3 = inlined_call_operand.hbm [shape: bf16[512,256], index: 3, kind: input, shape index: {}]
  %s4 = inlined_call_operand.vmem [shape: f32[1,256], index: 4, kind: input, shape index: {}]
  %s5 = inlined_call_operand.hbm [shape: bf16[256,256], index: 5, kind: input, shape index: {}]
  %s6 = inlined_call_operand.vmem [shape: f32[1,256], index: 6, kind: input, shape index: {}]
  %s7 = inlined_call_operand.hbm [shape: bf16[256,256], index: 7, kind: input, shape index: {}]
  %s8 = inlined_call_operand.vmem [shape: f32[1,256], index: 8, kind: input, shape index: {}]
  %s9 = inlined_call_operand.hbm [shape: bf16[256,256], index: 9, kind: input, shape index: {}]
  %s10 = inlined_call_operand.vmem [shape: f32[1,256], index: 10, kind: input, shape index: {}]
  %s11 = inlined_call_operand.hbm [shape: bf16[256,256], index: 11, kind: input, shape index: {}]
  %s12 = inlined_call_operand.vmem [shape: f32[1,256], index: 12, kind: input, shape index: {}]
  %s13 = inlined_call_operand.hbm [shape: bf16[256,256], index: 13, kind: input, shape index: {}]
  %s14 = inlined_call_operand.vmem [shape: f32[1,256], index: 14, kind: input, shape index: {}]
  %s15 = inlined_call_operand.hbm [shape: bf16[256,256], index: 15, kind: input, shape index: {}]
  %s16 = inlined_call_operand.vmem [shape: f32[1,256], index: 16, kind: input, shape index: {}]
  %s17 = inlined_call_operand.vmem [shape: bf16[256,4], index: 17, kind: input, shape index: {}]
  %s18 = inlined_call_operand.vmem [shape: f32[1,4], index: 18, kind: input, shape index: {}]
  %s19 = inlined_call_operand.vmem [shape: f32[16,4], index: 19, kind: output, shape index: {}]
  %s20 = sld [smem:[#allocation0]]
  $region114: #{tpu_custom_call.1} parent=0
    _
  %s22 = ssub.s32 1, %s20
  %s23 = scalar_select 0, %s22, %s20
  $region1: #{tpu_custom_call.1} parent=0
    #allocation2 [shape = 'u8[262144]{0}', space=vmem, size = 0x40000, scoped, tag = 'input window, operand 3, single buffered']
    #allocation3 [shape = 's32[1]{0}', space=sflag, size = 0x4, scoped, tag = 'scoped memory for tpu_custom_call.1']
    #allocation4 [shape = 'u8[131072]{0}', space=vmem, size = 0x20000, scoped, tag = 'input window, operand 5, single buffered']
    #allocation5 [shape = 's32[1]{0}', space=sflag, size = 0x4, scoped, tag = 'scoped memory for tpu_custom_call.1']
    #allocation6 [shape = 'u8[131072]{0}', space=vmem, size = 0x20000, scoped, tag = 'input window, operand 7, single buffered']
    #allocation7 [shape = 'u8[131072]{0}', space=vmem, size = 0x20000, scoped, tag = 'input window, operand 9, single buffered']
    #allocation8 [shape = 's32[1]{0}', space=sflag, size = 0x4, scoped, tag = 'scoped memory for tpu_custom_call.1']
    #allocation9 [shape = 'u8[131072]{0}', space=vmem, size = 0x20000, scoped, tag = 'input window, operand 11, single buffered']
    #allocation10 [shape = 'u8[131072]{0}', space=vmem, size = 0x20000, scoped, tag = 'input window, operand 13, single buffered']
    #allocation11 [shape = 's32[1]{0}', space=sflag, size = 0x4, scoped, tag = 'scoped memory for tpu_custom_call.1']
    #allocation12 [shape = 'u8[131072]{0}', space=vmem, size = 0x20000, scoped, tag = 'input window, operand 15, single buffered']
    %24 = vsyncpa [#allocation3], 0
    %25 = vsyncpa [#allocation5], 0
    %26 = vsyncpa [#allocation8], 0
    %27 = vsyncpa [#allocation11], 0
    // Predicated region
    $region2: #{tpu_custom_call.1} parent=1 // pred_check
      _
    $region3: #{tpu_custom_call.1} parent=1 // pred_check_branch
      %29 = sbr.rel (0) target = $region5
    $region4: #{tpu_custom_call.1} parent=1 // pred_region
      _
    $region5: #{tpu_custom_call.1} parent=1 // pred_fallthru
      _
    // Predicated region
    $region6: #{tpu_custom_call.1} parent=1 // pred_check
      _
    $region7: #{tpu_custom_call.1} parent=1 // pred_check_branch
      %31 = sbr.rel (0) target = $region9
    $region8: #{tpu_custom_call.1} parent=1 // pred_region
      _
    $region9: #{tpu_custom_call.1} parent=1 // pred_fallthru
      _
    // Predicated region
    $region10: #{tpu_custom_call.1} parent=1 // pred_check
      _
    $region11: #{tpu_custom_call.1} parent=1 // pred_check_branch
      %33 = sbr.rel (0) target = $region13
    $region12: #{tpu_custom_call.1} parent=1 // pred_region
      _
    $region13: #{tpu_custom_call.1} parent=1 // pred_fallthru
      _
    // Predicated region
    $region14: #{tpu_custom_call.1} parent=1 // pred_check
      _
    $region15: #{tpu_custom_call.1} parent=1 // pred_check_branch
      %35 = sbr.rel (0) target = $region17
    $region16: #{tpu_custom_call.1} parent=1 // pred_region
      %s37 = ssub.s32 8192, 8192
      %38 = vsyncadd [#allocation3], %s37
      %s39 = sshll.u32 [#allocation2], 4
      %s40 = int_to_ptr.vmem [resolvable:$true] %s39
      %45 = dma.hbm_to_vmem [thread:$0]  %s3, 8192, %s40, [#allocation3], 128, 128, 8
    $region17: #{tpu_custom_call.1} parent=1 // pred_fallthru
      _
    // Predicated region
    $region18: #{tpu_custom_call.1} parent=1 // pred_check
      _
    $region19: #{tpu_custom_call.1} parent=1 // pred_check_branch
      %47 = sbr.rel (0) target = $region21
    $region20: #{tpu_custom_call.1} parent=1 // pred_region
      _
    $region21: #{tpu_custom_call.1} parent=1 // pred_fallthru
      _
    // Predicated region
    $region22: #{tpu_custom_call.1} parent=1 // pred_check
      _
    $region23: #{tpu_custom_call.1} parent=1 // pred_check_branch
      %49 = sbr.rel (0) target = $region25
    $region24: #{tpu_custom_call.1} parent=1 // pred_region
      %s51 = ssub.s32 4096, 4096
      %52 = vsyncadd [#allocation5], %s51
      %s53 = sshll.u32 [#allocation4], 4
      %s54 = int_to_ptr.vmem [resolvable:$true] %s53
      %59 = dma.hbm_to_vmem [thread:$0]  %s5, 4096, %s54, [#allocation5], 128, 128, 8
    $region25: #{tpu_custom_call.1} parent=1 // pred_fallthru
      _
    // Predicated region
    $region26: #{tpu_custom_call.1} parent=1 // pred_check
      _
    $region27: #{tpu_custom_call.1} parent=1 // pred_check_branch
      %61 = sbr.rel (0) target = $region29
    $region28: #{tpu_custom_call.1} parent=1 // pred_region
      _
    $region29: #{tpu_custom_call.1} parent=1 // pred_fallthru
      _
    // Predicated region
    $region30: #{tpu_custom_call.1} parent=1 // pred_check
      _
    $region31: #{tpu_custom_call.1} parent=1 // pred_check_branch
      %63 = sbr.rel (0) target = $region33
    $region32: #{tpu_custom_call.1} parent=1 // pred_region
      %s65 = ssub.s32 4096, 4096
      %66 = vsyncadd [#allocation5], %s65
      %s67 = sshll.u32 [#allocation6], 4
      %s68 = int_to_ptr.vmem [resolvable:$true] %s67
      %73 = dma.hbm_to_vmem [thread:$0]  %s7, 4096, %s68, [#allocation5], 128, 128, 8
    $region33: #{tpu_custom_call.1} parent=1 // pred_fallthru
      _
    // Predicated region
    $region34: #{tpu_custom_call.1} parent=1 // pred_check
      _
    $region35: #{tpu_custom_call.1} parent=1 // pred_check_branch
      %75 = sbr.rel (0) target = $region37
    $region36: #{tpu_custom_call.1} parent=1 // pred_region
      _
    $region37: #{tpu_custom_call.1} parent=1 // pred_fallthru
      _
    // Predicated region
    $region38: #{tpu_custom_call.1} parent=1 // pred_check
      _
    $region39: #{tpu_custom_call.1} parent=1 // pred_check_branch
      %77 = sbr.rel (0) target = $region41
    $region40: #{tpu_custom_call.1} parent=1 // pred_region
      %s79 = ssub.s32 4096, 4096
      %80 = vsyncadd [#allocation8], %s79
      %s81 = sshll.u32 [#allocation7], 4
      %s82 = int_to_ptr.vmem [resolvable:$true] %s81
      %87 = dma.hbm_to_vmem [thread:$0]  %s9, 4096, %s82, [#allocation8], 128, 128, 8
    $region41: #{tpu_custom_call.1} parent=1 // pred_fallthru
      _
    // Predicated region
    $region42: #{tpu_custom_call.1} parent=1 // pred_check
      _
    $region43: #{tpu_custom_call.1} parent=1 // pred_check_branch
      %89 = sbr.rel (0) target = $region45
    $region44: #{tpu_custom_call.1} parent=1 // pred_region
      _
    $region45: #{tpu_custom_call.1} parent=1 // pred_fallthru
      _
    // Predicated region
    $region46: #{tpu_custom_call.1} parent=1 // pred_check
      _
    $region47: #{tpu_custom_call.1} parent=1 // pred_check_branch
      %91 = sbr.rel (0) target = $region49
    $region48: #{tpu_custom_call.1} parent=1 // pred_region
      %s93 = ssub.s32 4096, 4096
      %94 = vsyncadd [#allocation8], %s93
      %s95 = sshll.u32 [#allocation9], 4
      %s96 = int_to_ptr.vmem [resolvable:$true] %s95
      %101 = dma.hbm_to_vmem [thread:$0]  %s11, 4096, %s96, [#allocation8], 128, 128, 8
    $region49: #{tpu_custom_call.1} parent=1 // pred_fallthru
      _
    // Predicated region
    $region50: #{tpu_custom_call.1} parent=1 // pred_check
      _
    $region51: #{tpu_custom_call.1} parent=1 // pred_check_branch
      %103 = sbr.rel (0) target = $region53
    $region52: #{tpu_custom_call.1} parent=1 // pred_region
      _
    $region53: #{tpu_custom_call.1} parent=1 // pred_fallthru
      _
    // Predicated region
    $region54: #{tpu_custom_call.1} parent=1 // pred_check
      _
    $region55: #{tpu_custom_call.1} parent=1 // pred_check_branch
      %105 = sbr.rel (0) target = $region57
    $region56: #{tpu_custom_call.1} parent=1 // pred_region
      %s107 = ssub.s32 4096, 4096
      %108 = vsyncadd [#allocation11], %s107
      %s109 = sshll.u32 [#allocation10], 4
      %s110 = int_to_ptr.vmem [resolvable:$true] %s109
      %115 = dma.hbm_to_vmem [thread:$0]  %s13, 4096, %s110, [#allocation11], 128, 128, 8
    $region57: #{tpu_custom_call.1} parent=1 // pred_fallthru
      _
    // Predicated region
    $region58: #{tpu_custom_call.1} parent=1 // pred_check
      _
    $region59: #{tpu_custom_call.1} parent=1 // pred_check_branch
      %117 = sbr.rel (0) target = $region61
    $region60: #{tpu_custom_call.1} parent=1 // pred_region
      _
    $region61: #{tpu_custom_call.1} parent=1 // pred_fallthru
      _
    // Predicated region
    $region62: #{tpu_custom_call.1} parent=1 // pred_check
      _
    $region63: #{tpu_custom_call.1} parent=1 // pred_check_branch
      %119 = sbr.rel (0) target = $region65
    $region64: #{tpu_custom_call.1} parent=1 // pred_region
      %s121 = ssub.s32 4096, 4096
      %122 = vsyncadd [#allocation11], %s121
      %s123 = sshll.u32 [#allocation12], 4
      %s124 = int_to_ptr.vmem [resolvable:$true] %s123
      %129 = dma.hbm_to_vmem [thread:$0]  %s15, 4096, %s124, [#allocation11], 128, 128, 8
    $region65: #{tpu_custom_call.1} parent=1 // pred_fallthru
      _
    // Predicated region
    $region66: #{tpu_custom_call.1} parent=1 // pred_check
      _
    $region67: #{tpu_custom_call.1} parent=1 // pred_check_branch
      %131 = sbr.rel (0) target = $region69
    $region68: #{tpu_custom_call.1} parent=1 // pred_region
      _
    $region69: #{tpu_custom_call.1} parent=1 // pred_fallthru
      _
    // Predicated region
    $region70: #{tpu_custom_call.1} parent=1 // pred_check
      _
    $region71: #{tpu_custom_call.1} parent=1 // pred_check_branch
      %133 = sbr.rel (0) target = $region73
    $region72: #{tpu_custom_call.1} parent=1 // pred_region
      _
    $region73: #{tpu_custom_call.1} parent=1 // pred_fallthru
      _
    // Predicated region
    $region74: #{tpu_custom_call.1} parent=1 // pred_check
      _
    $region75: #{tpu_custom_call.1} parent=1 // pred_check_branch
      %135 = sbr.rel (0) target = $region77
    $region76: #{tpu_custom_call.1} parent=1 // pred_region
      _
    $region77: #{tpu_custom_call.1} parent=1 // pred_fallthru
      _
    // Predicated region
    $region78: #{tpu_custom_call.1} parent=1 // pred_check
      _
    $region79: #{tpu_custom_call.1} parent=1 // pred_check_branch
      %137 = sbr.rel (0) target = $region81
    $region80: #{tpu_custom_call.1} parent=1 // pred_region
      %138 = dma.done [#allocation3], 8192
    $region81: #{tpu_custom_call.1} parent=1 // pred_fallthru
      _
    // Predicated region
    $region82: #{tpu_custom_call.1} parent=1 // pred_check
      _
    $region83: #{tpu_custom_call.1} parent=1 // pred_check_branch
      %140 = sbr.rel (0) target = $region85
    $region84: #{tpu_custom_call.1} parent=1 // pred_region
      %141 = dma.done [#allocation5], 4096
    $region85: #{tpu_custom_call.1} parent=1 // pred_fallthru
      _
    // Predicated region
    $region86: #{tpu_custom_call.1} parent=1 // pred_check
      _
    $region87: #{tpu_custom_call.1} parent=1 // pred_check_branch
      %143 = sbr.rel (0) target = $region89
    $region88: #{tpu_custom_call.1} parent=1 // pred_region
      %144 = dma.done [#allocation5], 4096
    $region89: #{tpu_custom_call.1} parent=1 // pred_fallthru
      _
    // Predicated region
    $region90: #{tpu_custom_call.1} parent=1 // pred_check
      _
    $region91: #{tpu_custom_call.1} parent=1 // pred_check_branch
      %146 = sbr.rel (0) target = $region93
    $region92: #{tpu_custom_call.1} parent=1 // pred_region
      %147 = dma.done [#allocation8], 4096
    $region93: #{tpu_custom_call.1} parent=1 // pred_fallthru
      _
    // Predicated region
    $region94: #{tpu_custom_call.1} parent=1 // pred_check
      _
    $region95: #{tpu_custom_call.1} parent=1 // pred_check_branch
      %149 = sbr.rel (0) target = $region97
    $region96: #{tpu_custom_call.1} parent=1 // pred_region
      %150 = dma.done [#allocation8], 4096
    $region97: #{tpu_custom_call.1} parent=1 // pred_fallthru
      _
    // Predicated region
    $region98: #{tpu_custom_call.1} parent=1 // pred_check
      _
    $region99: #{tpu_custom_call.1} parent=1 // pred_check_branch
      %152 = sbr.rel (0) target = $region101
    $region100: #{tpu_custom_call.1} parent=1 // pred_region
      %153 = dma.done [#allocation11], 4096
    $region101: #{tpu_custom_call.1} parent=1 // pred_fallthru
      _
    // Predicated region
    $region102: #{tpu_custom_call.1} parent=1 // pred_check
      _
    $region103: #{tpu_custom_call.1} parent=1 // pred_check_branch
      %155 = sbr.rel (0) target = $region105
    $region104: #{tpu_custom_call.1} parent=1 // pred_region
      %156 = dma.done [#allocation11], 4096
    $region105: #{tpu_custom_call.1} parent=1 // pred_fallthru
      _
    %v158 = vld [vmem:[%s0] sm:$0xff]
    %v159 = vld [vmem:[%s0 + $0x8] sm:$0xff]
    %v160 = vld [vmem:[%s1] sm:$0x77]
    %v161 = vld [vmem:[%s1 + $0x8] sm:$0x77]
    %v162 = vld [vmem:[%s1 + $0x10] sm:$0x77]
    %164 = vset.pattern.permute.xlu0 0
    %165 = vperm.xlu0 %164, %v158
    %v166 = vpop.permute.xlu0 %165
    %169 = vset.pattern.permute.xlu0 0
    %170 = vperm.xlu0 %169, %v159
    %v171 = vpop.permute.xlu0 %170
    %v176 = vlaneseq
    %v177 = vshrl.u32 %v176, 7
    %v178 = vsub.s32 0, %v177
    %v179 = vrot.slane %v160, %v178
    %v180 = vlaneseq
    %v181 = vshrl.u32 %v180, 7
    %v182 = vsub.s32 4, %v181
    %v183 = vrot.slane %v160, %v182
    %v184 = vlaneseq
    %v185 = vshrl.u32 %v184, 7
    %v186 = vsub.s32 0, %v185
    %v187 = vrot.slane %v161, %v186
    %v188 = vlaneseq
    %v189 = vshrl.u32 %v188, 7
    %v190 = vsub.s32 4, %v189
    %v191 = vrot.slane %v161, %v190
    %v192 = vlaneseq
    %v193 = vshrl.u32 %v192, 7
    %v194 = vsub.s32 0, %v193
    %v195 = vrot.slane %v162, %v194
    %v196 = vlaneseq
    %v197 = vshrl.u32 %v196, 7
    %v198 = vsub.s32 4, %v197
    %v199 = vrot.slane %v162, %v198
    %v206 = vlaneseq
    %v207 = vshrl.u32 %v206, 7
    %v208 = vsub.s32 0, %v207
    %v209 = vrot.slane %v179, %v208
    %v210 = vlaneseq
    %v211 = vshrl.u32 %v210, 7
    %v212 = vsub.s32 0, %v211
    %v213 = vrot.slane %v183, %v212
    %v214 = vlaneseq
    %v215 = vshrl.u32 %v214, 7
    %v216 = vsub.s32 0, %v215
    %v217 = vrot.slane %v187, %v216
    %v218 = vlaneseq
    %v219 = vshrl.u32 %v218, 7
    %v220 = vsub.s32 0, %v219
    %v221 = vrot.slane %v191, %v220
    %v222 = vlaneseq
    %v223 = vshrl.u32 %v222, 7
    %v224 = vsub.s32 0, %v223
    %v225 = vrot.slane %v195, %v224
    %v226 = vlaneseq
    %v227 = vshrl.u32 %v226, 7
    %v228 = vsub.s32 0, %v227
    %v229 = vrot.slane %v199, %v228
    %v230 = vmul.f32 %v166, %v209
    %v231 = vmul.f32 %v166, %v213
    %v232 = vmul.f32 %v166, %v217
    %v233 = vmul.f32 %v166, %v221
    %v234 = vmul.f32 %v166, %v225
    %v235 = vmul.f32 %v166, %v229
    %v236 = vmul.f32 %v171, %v209
    %v237 = vmul.f32 %v171, %v213
    %v238 = vmul.f32 %v171, %v217
    %v239 = vmul.f32 %v171, %v221
    %v240 = vmul.f32 %v171, %v225
    %v241 = vmul.f32 %v171, %v229
    %242 = vset.pattern.permute.xlu0 1
    %243 = vperm.xlu0 %242, %v158
    %v244 = vpop.permute.xlu0 %243
    %246 = vset.pattern.permute.xlu0 1
    %247 = vperm.xlu0 %246, %v159
    %v248 = vpop.permute.xlu0 %247
    %v250 = vlaneseq
    %v251 = vshrl.u32 %v250, 7
    %v252 = vsub.s32 1, %v251
    %v253 = vrot.slane %v160, %v252
    %v254 = vlaneseq
    %v255 = vshrl.u32 %v254, 7
    %v256 = vsub.s32 5, %v255
    %v257 = vrot.slane %v160, %v256
    %v258 = vlaneseq
    %v259 = vshrl.u32 %v258, 7
    %v260 = vsub.s32 1, %v259
    %v261 = vrot.slane %v161, %v260
    %v262 = vlaneseq
    %v263 = vshrl.u32 %v262, 7
    %v264 = vsub.s32 5, %v263
    %v265 = vrot.slane %v161, %v264
    %v266 = vlaneseq
    %v267 = vshrl.u32 %v266, 7
    %v268 = vsub.s32 1, %v267
    %v269 = vrot.slane %v162, %v268
    %v270 = vlaneseq
    %v271 = vshrl.u32 %v270, 7
    %v272 = vsub.s32 5, %v271
    %v273 = vrot.slane %v162, %v272
    %v280 = vlaneseq
    %v281 = vshrl.u32 %v280, 7
    %v282 = vsub.s32 1, %v281
    %v283 = vrot.slane %v253, %v282
    %v284 = vlaneseq
    %v285 = vshrl.u32 %v284, 7
    %v286 = vsub.s32 1, %v285
    %v287 = vrot.slane %v257, %v286
    %v288 = vlaneseq
    %v289 = vshrl.u32 %v288, 7
    %v290 = vsub.s32 1, %v289
    %v291 = vrot.slane %v261, %v290
    %v292 = vlaneseq
    %v293 = vshrl.u32 %v292, 7
    %v294 = vsub.s32 1, %v293
    %v295 = vrot.slane %v265, %v294
    %v296 = vlaneseq
    %v297 = vshrl.u32 %v296, 7
    %v298 = vsub.s32 1, %v297
    %v299 = vrot.slane %v269, %v298
    %v300 = vlaneseq
    %v301 = vshrl.u32 %v300, 7
    %v302 = vsub.s32 1, %v301
    %v303 = vrot.slane %v273, %v302
    %v304 = vmul.f32 %v244, %v283
    %v305 = vmul.f32 %v244, %v287
    %v306 = vmul.f32 %v244, %v291
    %v307 = vmul.f32 %v244, %v295
    %v308 = vmul.f32 %v244, %v299
    %v309 = vmul.f32 %v244, %v303
    %v310 = vmul.f32 %v248, %v283
    %v311 = vmul.f32 %v248, %v287
    %v312 = vmul.f32 %v248, %v291
    %v313 = vmul.f32 %v248, %v295
    %v314 = vmul.f32 %v248, %v299
    %v315 = vmul.f32 %v248, %v303
    %v316 = vadd.f32 %v230, %v304
    %v317 = vadd.f32 %v231, %v305
    %v318 = vadd.f32 %v232, %v306
    %v319 = vadd.f32 %v233, %v307
    %v320 = vadd.f32 %v234, %v308
    %v321 = vadd.f32 %v235, %v309
    %v322 = vadd.f32 %v236, %v310
    %v323 = vadd.f32 %v237, %v311
    %v324 = vadd.f32 %v238, %v312
    %v325 = vadd.f32 %v239, %v313
    %v326 = vadd.f32 %v240, %v314
    %v327 = vadd.f32 %v241, %v315
    %328 = vset.pattern.permute.xlu0 2
    %329 = vperm.xlu0 %328, %v158
    %v330 = vpop.permute.xlu0 %329
    %332 = vset.pattern.permute.xlu0 2
    %333 = vperm.xlu0 %332, %v159
    %v334 = vpop.permute.xlu0 %333
    %v336 = vlaneseq
    %v337 = vshrl.u32 %v336, 7
    %v338 = vsub.s32 2, %v337
    %v339 = vrot.slane %v160, %v338
    %v340 = vlaneseq
    %v341 = vshrl.u32 %v340, 7
    %v342 = vsub.s32 6, %v341
    %v343 = vrot.slane %v160, %v342
    %v344 = vlaneseq
    %v345 = vshrl.u32 %v344, 7
    %v346 = vsub.s32 2, %v345
    %v347 = vrot.slane %v161, %v346
    %v348 = vlaneseq
    %v349 = vshrl.u32 %v348, 7
    %v350 = vsub.s32 6, %v349
    %v351 = vrot.slane %v161, %v350
    %v352 = vlaneseq
    %v353 = vshrl.u32 %v352, 7
    %v354 = vsub.s32 2, %v353
    %v355 = vrot.slane %v162, %v354
    %v356 = vlaneseq
    %v357 = vshrl.u32 %v356, 7
    %v358 = vsub.s32 6, %v357
    %v359 = vrot.slane %v162, %v358
    %v366 = vlaneseq
    %v367 = vshrl.u32 %v366, 7
    %v368 = vsub.s32 2, %v367
    %v369 = vrot.slane %v339, %v368
    %v370 = vlaneseq
    %v371 = vshrl.u32 %v370, 7
    %v372 = vsub.s32 2, %v371
    %v373 = vrot.slane %v343, %v372
    %v374 = vlaneseq
    %v375 = vshrl.u32 %v374, 7
    %v376 = vsub.s32 2, %v375
    %v377 = vrot.slane %v347, %v376
    %v378 = vlaneseq
    %v379 = vshrl.u32 %v378, 7
    %v380 = vsub.s32 2, %v379
    %v381 = vrot.slane %v351, %v380
    %v382 = vlaneseq
    %v383 = vshrl.u32 %v382, 7
    %v384 = vsub.s32 2, %v383
    %v385 = vrot.slane %v355, %v384
    %v386 = vlaneseq
    %v387 = vshrl.u32 %v386, 7
    %v388 = vsub.s32 2, %v387
    %v389 = vrot.slane %v359, %v388
    %v390 = vmul.f32 %v330, %v369
    %v391 = vmul.f32 %v330, %v373
    %v392 = vmul.f32 %v330, %v377
    %v393 = vmul.f32 %v330, %v381
    %v394 = vmul.f32 %v330, %v385
    %v395 = vmul.f32 %v330, %v389
    %v396 = vmul.f32 %v334, %v369
    %v397 = vmul.f32 %v334, %v373
    %v398 = vmul.f32 %v334, %v377
    %v399 = vmul.f32 %v334, %v381
    %v400 = vmul.f32 %v334, %v385
    %v401 = vmul.f32 %v334, %v389
    %v402 = vadd.f32 %v316, %v390
    %v403 = vadd.f32 %v317, %v391
    %v404 = vadd.f32 %v318, %v392
    %v405 = vadd.f32 %v319, %v393
    %v406 = vadd.f32 %v320, %v394
    %v407 = vadd.f32 %v321, %v395
    %v408 = vadd.f32 %v322, %v396
    %v409 = vadd.f32 %v323, %v397
    %v410 = vadd.f32 %v324, %v398
    %v411 = vadd.f32 %v325, %v399
    %v412 = vadd.f32 %v326, %v400
    %v413 = vadd.f32 %v327, %v401
    %v414 = vld [vmem:[%s2] sm:$0xf]
    %v416 = vlaneseq
    %v417 = vshrl.u32 %v416, 7
    %v418 = vsub.s32 0, %v417
    %v419 = vrot.slane %v414, %v418
    %v420 = vlaneseq
    %v421 = vshrl.u32 %v420, 7
    %v422 = vsub.s32 1, %v421
    %v423 = vrot.slane %v414, %v422
    %v424 = vlaneseq
    %v425 = vshrl.u32 %v424, 7
    %v426 = vsub.s32 2, %v425
    %v427 = vrot.slane %v414, %v426
    %v428 = vlaneseq
    %v429 = vshrl.u32 %v428, 7
    %v430 = vsub.s32 3, %v429
    %v431 = vrot.slane %v414, %v430
    %v436 = vadd.f32 %v402, %v419
    %v437 = vadd.f32 %v403, %v423
    %v438 = vadd.f32 %v404, %v427
    %v439 = vadd.f32 %v405, %v431
    %v440 = vadd.f32 %v408, %v419
    %v441 = vadd.f32 %v409, %v423
    %v442 = vadd.f32 %v410, %v427
    %v443 = vadd.f32 %v411, %v431
    %v444 = vmax.f32 %v436, 0.0
    %v445 = vmax.f32 %v437, 0.0
    %v446 = vmax.f32 %v438, 0.0
    %v447 = vmax.f32 %v439, 0.0
    %v448 = vmax.f32 %v440, 0.0
    %v449 = vmax.f32 %v441, 0.0
    %v450 = vmax.f32 %v442, 0.0
    %v451 = vmax.f32 %v443, 0.0
    %v452 = vpack.c.bf16 %v448, %v444
    %v453 = vpack.c.bf16 %v449, %v445
    %v454 = vpack.c.bf16 %v450, %v446
    %v455 = vpack.c.bf16 %v451, %v447
    %v456 = vld [vmem:[#allocation2] sm:$0xff]
    %v457 = vld [vmem:[#allocation2 + $0x8] sm:$0xff]
    %v458 = vld [vmem:[#allocation2 + $0x10] sm:$0xff]
    %v459 = vld [vmem:[#allocation2 + $0x18] sm:$0xff]
    %v460 = vld [vmem:[#allocation2 + $0x20] sm:$0xff]
    %v461 = vld [vmem:[#allocation2 + $0x28] sm:$0xff]
    %v462 = vld [vmem:[#allocation2 + $0x30] sm:$0xff]
    %v463 = vld [vmem:[#allocation2 + $0x38] sm:$0xff]
    %v464 = vld [vmem:[#allocation2 + $0x40] sm:$0xff]
    %v465 = vld [vmem:[#allocation2 + $0x48] sm:$0xff]
    %v466 = vld [vmem:[#allocation2 + $0x50] sm:$0xff]
    %v467 = vld [vmem:[#allocation2 + $0x58] sm:$0xff]
    %v468 = vld [vmem:[#allocation2 + $0x60] sm:$0xff]
    %v469 = vld [vmem:[#allocation2 + $0x68] sm:$0xff]
    %v470 = vld [vmem:[#allocation2 + $0x70] sm:$0xff]
    %v471 = vld [vmem:[#allocation2 + $0x78] sm:$0xff]
    %v472 = vld [vmem:[#allocation2 + $0x80] sm:$0xff]
    %v473 = vld [vmem:[#allocation2 + $0x88] sm:$0xff]
    %v474 = vld [vmem:[#allocation2 + $0x90] sm:$0xff]
    %v475 = vld [vmem:[#allocation2 + $0x98] sm:$0xff]
    %v476 = vld [vmem:[#allocation2 + $0xa0] sm:$0xff]
    %v477 = vld [vmem:[#allocation2 + $0xa8] sm:$0xff]
    %v478 = vld [vmem:[#allocation2 + $0xb0] sm:$0xff]
    %v479 = vld [vmem:[#allocation2 + $0xb8] sm:$0xff]
    %v480 = vld [vmem:[#allocation2 + $0xc0] sm:$0xff]
    %v481 = vld [vmem:[#allocation2 + $0xc8] sm:$0xff]
    %v482 = vld [vmem:[#allocation2 + $0xd0] sm:$0xff]
    %v483 = vld [vmem:[#allocation2 + $0xd8] sm:$0xff]
    %v484 = vld [vmem:[#allocation2 + $0xe0] sm:$0xff]
    %v485 = vld [vmem:[#allocation2 + $0xe8] sm:$0xff]
    %v486 = vld [vmem:[#allocation2 + $0xf0] sm:$0xff]
    %v487 = vld [vmem:[#allocation2 + $0xf8] sm:$0xff]
    %v488 = vld [vmem:[#allocation2 + $0x100] sm:$0xff]
    %v489 = vld [vmem:[#allocation2 + $0x108] sm:$0xff]
    %v490 = vld [vmem:[#allocation2 + $0x110] sm:$0xff]
    %v491 = vld [vmem:[#allocation2 + $0x118] sm:$0xff]
    %v492 = vld [vmem:[#allocation2 + $0x120] sm:$0xff]
    %v493 = vld [vmem:[#allocation2 + $0x128] sm:$0xff]
    %v494 = vld [vmem:[#allocation2 + $0x130] sm:$0xff]
    %v495 = vld [vmem:[#allocation2 + $0x138] sm:$0xff]
    %v496 = vld [vmem:[#allocation2 + $0x140] sm:$0xff]
    %v497 = vld [vmem:[#allocation2 + $0x148] sm:$0xff]
    %v498 = vld [vmem:[#allocation2 + $0x150] sm:$0xff]
    %v499 = vld [vmem:[#allocation2 + $0x158] sm:$0xff]
    %v500 = vld [vmem:[#allocation2 + $0x160] sm:$0xff]
    %v501 = vld [vmem:[#allocation2 + $0x168] sm:$0xff]
    %v502 = vld [vmem:[#allocation2 + $0x170] sm:$0xff]
    %v503 = vld [vmem:[#allocation2 + $0x178] sm:$0xff]
    %v504 = vld [vmem:[#allocation2 + $0x180] sm:$0xff]
    %v505 = vld [vmem:[#allocation2 + $0x188] sm:$0xff]
    %v506 = vld [vmem:[#allocation2 + $0x190] sm:$0xff]
    %v507 = vld [vmem:[#allocation2 + $0x198] sm:$0xff]
    %v508 = vld [vmem:[#allocation2 + $0x1a0] sm:$0xff]
    %v509 = vld [vmem:[#allocation2 + $0x1a8] sm:$0xff]
    %v510 = vld [vmem:[#allocation2 + $0x1b0] sm:$0xff]
    %v511 = vld [vmem:[#allocation2 + $0x1b8] sm:$0xff]
    %v512 = vld [vmem:[#allocation2 + $0x1c0] sm:$0xff]
    %v513 = vld [vmem:[#allocation2 + $0x1c8] sm:$0xff]
    %v514 = vld [vmem:[#allocation2 + $0x1d0] sm:$0xff]
    %v515 = vld [vmem:[#allocation2 + $0x1d8] sm:$0xff]
    %v516 = vld [vmem:[#allocation2 + $0x1e0] sm:$0xff]
    %v517 = vld [vmem:[#allocation2 + $0x1e8] sm:$0xff]
    %v518 = vld [vmem:[#allocation2 + $0x1f0] sm:$0xff]
    %v519 = vld [vmem:[#allocation2 + $0x1f8] sm:$0xff]
    %v520 = vld [vmem:[%s4] sm:$0x3]
    %v522 = vlaneseq
    %v523 = vshrl.u32 %v522, 7
    %v524 = vsub.s32 0, %v523
    %v525 = vrot.slane %v520, %v524
    %v526 = vlaneseq
    %v527 = vshrl.u32 %v526, 7
    %v528 = vsub.s32 1, %v527
    %v529 = vrot.slane %v520, %v528
    %v596 = vunpack.c.l.b16 %v456
    %v597 = vunpack.c.h.b16 %v456
    %v598 = vunpack.c.l.b16 %v457
    %v599 = vunpack.c.h.b16 %v457
    %v600 = vunpack.c.l.b16 %v458
    %v601 = vunpack.c.h.b16 %v458
    %v602 = vunpack.c.l.b16 %v459
    %v603 = vunpack.c.h.b16 %v459
    %v604 = vunpack.c.l.b16 %v460
    %v605 = vunpack.c.h.b16 %v460
    %v606 = vunpack.c.l.b16 %v461
    %v607 = vunpack.c.h.b16 %v461
    %v608 = vunpack.c.l.b16 %v462
    %v609 = vunpack.c.h.b16 %v462
    %v610 = vunpack.c.l.b16 %v463
    %v611 = vunpack.c.h.b16 %v463
    %v612 = vunpack.c.l.b16 %v464
    %v613 = vunpack.c.h.b16 %v464
    %v614 = vunpack.c.l.b16 %v465
    %v615 = vunpack.c.h.b16 %v465
    %v616 = vunpack.c.l.b16 %v466
    %v617 = vunpack.c.h.b16 %v466
    %v618 = vunpack.c.l.b16 %v467
    %v619 = vunpack.c.h.b16 %v467
    %v620 = vunpack.c.l.b16 %v468
    %v621 = vunpack.c.h.b16 %v468
    %v622 = vunpack.c.l.b16 %v469
    %v623 = vunpack.c.h.b16 %v469
    %v624 = vunpack.c.l.b16 %v470
    %v625 = vunpack.c.h.b16 %v470
    %v626 = vunpack.c.l.b16 %v471
    %v627 = vunpack.c.h.b16 %v471
    %v628 = vunpack.c.l.b16 %v472
    %v629 = vunpack.c.h.b16 %v472
    %v630 = vunpack.c.l.b16 %v473
    %v631 = vunpack.c.h.b16 %v473
    %v632 = vunpack.c.l.b16 %v474
    %v633 = vunpack.c.h.b16 %v474
    %v634 = vunpack.c.l.b16 %v475
    %v635 = vunpack.c.h.b16 %v475
    %v636 = vunpack.c.l.b16 %v476
    %v637 = vunpack.c.h.b16 %v476
    %v638 = vunpack.c.l.b16 %v477
    %v639 = vunpack.c.h.b16 %v477
    %v640 = vunpack.c.l.b16 %v478
    %v641 = vunpack.c.h.b16 %v478
    %v642 = vunpack.c.l.b16 %v479
    %v643 = vunpack.c.h.b16 %v479
    %v644 = vunpack.c.l.b16 %v480
    %v645 = vunpack.c.h.b16 %v480
    %v646 = vunpack.c.l.b16 %v481
    %v647 = vunpack.c.h.b16 %v481
    %v648 = vunpack.c.l.b16 %v482
    %v649 = vunpack.c.h.b16 %v482
    %v650 = vunpack.c.l.b16 %v483
    %v651 = vunpack.c.h.b16 %v483
    %v652 = vunpack.c.l.b16 %v484
    %v653 = vunpack.c.h.b16 %v484
    %v654 = vunpack.c.l.b16 %v485
    %v655 = vunpack.c.h.b16 %v485
    %v656 = vunpack.c.l.b16 %v486
    %v657 = vunpack.c.h.b16 %v486
    %v658 = vunpack.c.l.b16 %v487
    %v659 = vunpack.c.h.b16 %v487
    %v660 = vunpack.c.l.b16 %v488
    %v661 = vunpack.c.h.b16 %v488
    %v662 = vunpack.c.l.b16 %v489
    %v663 = vunpack.c.h.b16 %v489
    %v664 = vunpack.c.l.b16 %v490
    %v665 = vunpack.c.h.b16 %v490
    %v666 = vunpack.c.l.b16 %v491
    %v667 = vunpack.c.h.b16 %v491
    %v668 = vunpack.c.l.b16 %v492
    %v669 = vunpack.c.h.b16 %v492
    %v670 = vunpack.c.l.b16 %v493
    %v671 = vunpack.c.h.b16 %v493
    %v672 = vunpack.c.l.b16 %v494
    %v673 = vunpack.c.h.b16 %v494
    %v674 = vunpack.c.l.b16 %v495
    %v675 = vunpack.c.h.b16 %v495
    %v676 = vunpack.c.l.b16 %v496
    %v677 = vunpack.c.h.b16 %v496
    %v678 = vunpack.c.l.b16 %v497
    %v679 = vunpack.c.h.b16 %v497
    %v680 = vunpack.c.l.b16 %v498
    %v681 = vunpack.c.h.b16 %v498
    %v682 = vunpack.c.l.b16 %v499
    %v683 = vunpack.c.h.b16 %v499
    %v684 = vunpack.c.l.b16 %v500
    %v685 = vunpack.c.h.b16 %v500
    %v686 = vunpack.c.l.b16 %v501
    %v687 = vunpack.c.h.b16 %v501
    %v688 = vunpack.c.l.b16 %v502
    %v689 = vunpack.c.h.b16 %v502
    %v690 = vunpack.c.l.b16 %v503
    %v691 = vunpack.c.h.b16 %v503
    %v692 = vunpack.c.l.b16 %v504
    %v693 = vunpack.c.h.b16 %v504
    %v694 = vunpack.c.l.b16 %v505
    %v695 = vunpack.c.h.b16 %v505
    %v696 = vunpack.c.l.b16 %v506
    %v697 = vunpack.c.h.b16 %v506
    %v698 = vunpack.c.l.b16 %v507
    %v699 = vunpack.c.h.b16 %v507
    %v700 = vunpack.c.l.b16 %v508
    %v701 = vunpack.c.h.b16 %v508
    %v702 = vunpack.c.l.b16 %v509
    %v703 = vunpack.c.h.b16 %v509
    %v704 = vunpack.c.l.b16 %v510
    %v705 = vunpack.c.h.b16 %v510
    %v706 = vunpack.c.l.b16 %v511
    %v707 = vunpack.c.h.b16 %v511
    %v708 = vunpack.c.l.b16 %v512
    %v709 = vunpack.c.h.b16 %v512
    %v710 = vunpack.c.l.b16 %v513
    %v711 = vunpack.c.h.b16 %v513
    %v712 = vunpack.c.l.b16 %v514
    %v713 = vunpack.c.h.b16 %v514
    %v714 = vunpack.c.l.b16 %v515
    %v715 = vunpack.c.h.b16 %v515
    %v716 = vunpack.c.l.b16 %v516
    %v717 = vunpack.c.h.b16 %v516
    %v718 = vunpack.c.l.b16 %v517
    %v719 = vunpack.c.h.b16 %v517
    %v720 = vunpack.c.l.b16 %v518
    %v721 = vunpack.c.h.b16 %v518
    %v722 = vunpack.c.l.b16 %v519
    %v723 = vunpack.c.h.b16 %v519
    %v724 = vpack.c.b16 %v598, %v596
    %v725 = vpack.c.b16 %v599, %v597
    %v726 = vpack.c.b16 %v602, %v600
    %v727 = vpack.c.b16 %v603, %v601
    %v728 = vpack.c.b16 %v606, %v604
    %v729 = vpack.c.b16 %v607, %v605
    %v730 = vpack.c.b16 %v610, %v608
    %v731 = vpack.c.b16 %v611, %v609
    %v732 = vpack.c.b16 %v614, %v612
    %v733 = vpack.c.b16 %v615, %v613
    %v734 = vpack.c.b16 %v618, %v616
    %v735 = vpack.c.b16 %v619, %v617
    %v736 = vpack.c.b16 %v622, %v620
    %v737 = vpack.c.b16 %v623, %v621
    %v738 = vpack.c.b16 %v626, %v624
    %v739 = vpack.c.b16 %v627, %v625
    %v740 = vpack.c.b16 %v630, %v628
    %v741 = vpack.c.b16 %v631, %v629
    %v742 = vpack.c.b16 %v634, %v632
    %v743 = vpack.c.b16 %v635, %v633
    %v744 = vpack.c.b16 %v638, %v636
    %v745 = vpack.c.b16 %v639, %v637
    %v746 = vpack.c.b16 %v642, %v640
    %v747 = vpack.c.b16 %v643, %v641
    %v748 = vpack.c.b16 %v646, %v644
    %v749 = vpack.c.b16 %v647, %v645
    %v750 = vpack.c.b16 %v650, %v648
    %v751 = vpack.c.b16 %v651, %v649
    %v752 = vpack.c.b16 %v654, %v652
    %v753 = vpack.c.b16 %v655, %v653
    %v754 = vpack.c.b16 %v658, %v656
    %v755 = vpack.c.b16 %v659, %v657
    %v756 = vpack.c.b16 %v662, %v660
    %v757 = vpack.c.b16 %v663, %v661
    %v758 = vpack.c.b16 %v666, %v664
    %v759 = vpack.c.b16 %v667, %v665
    %v760 = vpack.c.b16 %v670, %v668
    %v761 = vpack.c.b16 %v671, %v669
    %v762 = vpack.c.b16 %v674, %v672
    %v763 = vpack.c.b16 %v675, %v673
    %v764 = vpack.c.b16 %v678, %v676
    %v765 = vpack.c.b16 %v679, %v677
    %v766 = vpack.c.b16 %v682, %v680
    %v767 = vpack.c.b16 %v683, %v681
    %v768 = vpack.c.b16 %v686, %v684
    %v769 = vpack.c.b16 %v687, %v685
    %v770 = vpack.c.b16 %v690, %v688
    %v771 = vpack.c.b16 %v691, %v689
    %v772 = vpack.c.b16 %v694, %v692
    %v773 = vpack.c.b16 %v695, %v693
    %v774 = vpack.c.b16 %v698, %v696
    %v775 = vpack.c.b16 %v699, %v697
    %v776 = vpack.c.b16 %v702, %v700
    %v777 = vpack.c.b16 %v703, %v701
    %v778 = vpack.c.b16 %v706, %v704
    %v779 = vpack.c.b16 %v707, %v705
    %v780 = vpack.c.b16 %v710, %v708
    %v781 = vpack.c.b16 %v711, %v709
    %v782 = vpack.c.b16 %v714, %v712
    %v783 = vpack.c.b16 %v715, %v713
    %v784 = vpack.c.b16 %v718, %v716
    %v785 = vpack.c.b16 %v719, %v717
    %v786 = vpack.c.b16 %v722, %v720
    %v787 = vpack.c.b16 %v723, %v721
    %852 = vmatprep.subr.bf16.mxu0 %v739
    %853 = vmatpush1.bf16.msra.mxu0 %v738
    %854 = vmatprep.subr.bf16.mxu0 %v737
    %855 = vmatpush1.bf16.msra.mxu0 %v736
    %856 = vmatprep.subr.bf16.mxu0 %v735
    %857 = vmatpush1.bf16.msra.mxu0 %v734
    %858 = vmatprep.subr.bf16.mxu0 %v733
    %859 = vmatpush1.bf16.msra.mxu0 %v732
    %860 = vmatprep.subr.bf16.mxu0 %v731
    %861 = vmatpush1.bf16.msra.mxu0 %v730
    %862 = vmatprep.subr.bf16.mxu0 %v729
    %863 = vmatpush1.bf16.msra.mxu0 %v728
    %864 = vmatprep.subr.bf16.mxu0 %v727
    %865 = vmatpush1.bf16.msra.mxu0 %v726
    %866 = vmatprep.subr.bf16.mxu0 %v725
    %867 = vmatpush1.bf16.msra.mxu0 %v724
    %868 = vmatprep.subr.bf16.mxu0 %v755
    %869 = vmatpush2.bf16.msra.mxu0 %v754
    %870 = vmatprep.subr.bf16.mxu0 %v753
    %871 = vmatpush2.bf16.msra.mxu0 %v752
    %872 = vmatprep.subr.bf16.mxu0 %v751
    %873 = vmatpush2.bf16.msra.mxu0 %v750
    %874 = vmatprep.subr.bf16.mxu0 %v749
    %875 = vmatpush2.bf16.msra.mxu0 %v748
    %876 = vmatprep.subr.bf16.mxu0 %v747
    %877 = vmatpush2.bf16.msra.mxu0 %v746
    %878 = vmatprep.subr.bf16.mxu0 %v745
    %879 = vmatpush2.bf16.msra.mxu0 %v744
    %880 = vmatprep.subr.bf16.mxu0 %v743
    %881 = vmatpush2.bf16.msra.mxu0 %v742
    %882 = vmatprep.subr.bf16.mxu0 %v741
    %883 = vmatpush2.bf16.msra.mxu0 %v740
    %884 = vmatprep.mubr.bf16.mxu0 %v453
    %885 = vmatmul.mubr.bf16.gmra.mxu0 %v452
    %v886 = vpop.f32.mrf.mxu0
    %v887 = vadd.f32 %v525, %v886
    %v888 = vpop.f32.mrf.mxu0
    %v889 = vadd.f32 %v529, %v888
    %v890 = vpop.f32.mrf.mxu0
    %v891 = vadd.f32 %v525, %v890
    %v892 = vpop.f32.mrf.mxu0
    %v893 = vadd.f32 %v529, %v892
    %894 = vdwg.mxu0
    %895 = vmatprep.subr.bf16.mxu0 %v771
    %896 = vmatpush1.bf16.msra.mxu0 %v770
    %897 = vmatprep.subr.bf16.mxu0 %v769
    %898 = vmatpush1.bf16.msra.mxu0 %v768
    %899 = vmatprep.subr.bf16.mxu0 %v767
    %900 = vmatpush1.bf16.msra.mxu0 %v766
    %901 = vmatprep.subr.bf16.mxu0 %v765
    %902 = vmatpush1.bf16.msra.mxu0 %v764
    %903 = vmatprep.subr.bf16.mxu0 %v763
    %904 = vmatpush1.bf16.msra.mxu0 %v762
    %905 = vmatprep.subr.bf16.mxu0 %v761
    %906 = vmatpush1.bf16.msra.mxu0 %v760
    %907 = vmatprep.subr.bf16.mxu0 %v759
    %908 = vmatpush1.bf16.msra.mxu0 %v758
    %909 = vmatprep.subr.bf16.mxu0 %v757
    %910 = vmatpush1.bf16.msra.mxu0 %v756
    %911 = vmatprep.subr.bf16.mxu0 %v787
    %912 = vmatpush2.bf16.msra.mxu0 %v786
    %913 = vmatprep.subr.bf16.mxu0 %v785
    %914 = vmatpush2.bf16.msra.mxu0 %v784
    %915 = vmatprep.subr.bf16.mxu0 %v783
    %916 = vmatpush2.bf16.msra.mxu0 %v782
    %917 = vmatprep.subr.bf16.mxu0 %v781
    %918 = vmatpush2.bf16.msra.mxu0 %v780
    %919 = vmatprep.subr.bf16.mxu0 %v779
    %920 = vmatpush2.bf16.msra.mxu0 %v778
    %921 = vmatprep.subr.bf16.mxu0 %v777
    %922 = vmatpush2.bf16.msra.mxu0 %v776
    %923 = vmatprep.subr.bf16.mxu0 %v775
    %924 = vmatpush2.bf16.msra.mxu0 %v774
    %925 = vmatprep.subr.bf16.mxu0 %v773
    %926 = vmatpush2.bf16.msra.mxu0 %v772
    %927 = vmatprep.mubr.bf16.mxu0 %v455
    %928 = vmatmul.mubr.bf16.gmra.mxu0 %v454
    %v929 = vpop.f32.mrf.mxu0
    %v930 = vadd.f32 %v887, %v929
    %v931 = vpop.f32.mrf.mxu0
    %v932 = vadd.f32 %v889, %v931
    %v933 = vpop.f32.mrf.mxu0
    %v934 = vadd.f32 %v891, %v933
    %v935 = vpop.f32.mrf.mxu0
    %v936 = vadd.f32 %v893, %v935
    %937 = vdwg.mxu0
    %v938 = vmax.f32 %v930, 0.0
    %v939 = vmax.f32 %v932, 0.0
    %v940 = vmax.f32 %v934, 0.0
    %v941 = vmax.f32 %v936, 0.0
    %v942 = vpack.c.bf16 %v940, %v938
    %v943 = vpack.c.bf16 %v941, %v939
    %v944 = vld [vmem:[#allocation4] sm:$0xff]
    %v945 = vld [vmem:[#allocation4 + $0x8] sm:$0xff]
    %v946 = vld [vmem:[#allocation4 + $0x10] sm:$0xff]
    %v947 = vld [vmem:[#allocation4 + $0x18] sm:$0xff]
    %v948 = vld [vmem:[#allocation4 + $0x20] sm:$0xff]
    %v949 = vld [vmem:[#allocation4 + $0x28] sm:$0xff]
    %v950 = vld [vmem:[#allocation4 + $0x30] sm:$0xff]
    %v951 = vld [vmem:[#allocation4 + $0x38] sm:$0xff]
    %v952 = vld [vmem:[#allocation4 + $0x40] sm:$0xff]
    %v953 = vld [vmem:[#allocation4 + $0x48] sm:$0xff]
    %v954 = vld [vmem:[#allocation4 + $0x50] sm:$0xff]
    %v955 = vld [vmem:[#allocation4 + $0x58] sm:$0xff]
    %v956 = vld [vmem:[#allocation4 + $0x60] sm:$0xff]
    %v957 = vld [vmem:[#allocation4 + $0x68] sm:$0xff]
    %v958 = vld [vmem:[#allocation4 + $0x70] sm:$0xff]
    %v959 = vld [vmem:[#allocation4 + $0x78] sm:$0xff]
    %v960 = vld [vmem:[#allocation4 + $0x80] sm:$0xff]
    %v961 = vld [vmem:[#allocation4 + $0x88] sm:$0xff]
    %v962 = vld [vmem:[#allocation4 + $0x90] sm:$0xff]
    %v963 = vld [vmem:[#allocation4 + $0x98] sm:$0xff]
    %v964 = vld [vmem:[#allocation4 + $0xa0] sm:$0xff]
    %v965 = vld [vmem:[#allocation4 + $0xa8] sm:$0xff]
    %v966 = vld [vmem:[#allocation4 + $0xb0] sm:$0xff]
    %v967 = vld [vmem:[#allocation4 + $0xb8] sm:$0xff]
    %v968 = vld [vmem:[#allocation4 + $0xc0] sm:$0xff]
    %v969 = vld [vmem:[#allocation4 + $0xc8] sm:$0xff]
    %v970 = vld [vmem:[#allocation4 + $0xd0] sm:$0xff]
    %v971 = vld [vmem:[#allocation4 + $0xd8] sm:$0xff]
    %v972 = vld [vmem:[#allocation4 + $0xe0] sm:$0xff]
    %v973 = vld [vmem:[#allocation4 + $0xe8] sm:$0xff]
    %v974 = vld [vmem:[#allocation4 + $0xf0] sm:$0xff]
    %v975 = vld [vmem:[#allocation4 + $0xf8] sm:$0xff]
    %v976 = vld [vmem:[%s6] sm:$0x3]
    %v978 = vlaneseq
    %v979 = vshrl.u32 %v978, 7
    %v980 = vsub.s32 0, %v979
    %v981 = vrot.slane %v976, %v980
    %v982 = vlaneseq
    %v983 = vshrl.u32 %v982, 7
    %v984 = vsub.s32 1, %v983
    %v985 = vrot.slane %v976, %v984
    %v1020 = vunpack.c.l.b16 %v944
    %v1021 = vunpack.c.h.b16 %v944
    %v1022 = vunpack.c.l.b16 %v945
    %v1023 = vunpack.c.h.b16 %v945
    %v1024 = vunpack.c.l.b16 %v946
    %v1025 = vunpack.c.h.b16 %v946
    %v1026 = vunpack.c.l.b16 %v947
    %v1027 = vunpack.c.h.b16 %v947
    %v1028 = vunpack.c.l.b16 %v948
    %v1029 = vunpack.c.h.b16 %v948
    %v1030 = vunpack.c.l.b16 %v949
    %v1031 = vunpack.c.h.b16 %v949
    %v1032 = vunpack.c.l.b16 %v950
    %v1033 = vunpack.c.h.b16 %v950
    %v1034 = vunpack.c.l.b16 %v951
    %v1035 = vunpack.c.h.b16 %v951
    %v1036 = vunpack.c.l.b16 %v952
    %v1037 = vunpack.c.h.b16 %v952
    %v1038 = vunpack.c.l.b16 %v953
    %v1039 = vunpack.c.h.b16 %v953
    %v1040 = vunpack.c.l.b16 %v954
    %v1041 = vunpack.c.h.b16 %v954
    %v1042 = vunpack.c.l.b16 %v955
    %v1043 = vunpack.c.h.b16 %v955
    %v1044 = vunpack.c.l.b16 %v956
    %v1045 = vunpack.c.h.b16 %v956
    %v1046 = vunpack.c.l.b16 %v957
    %v1047 = vunpack.c.h.b16 %v957
    %v1048 = vunpack.c.l.b16 %v958
    %v1049 = vunpack.c.h.b16 %v958
    %v1050 = vunpack.c.l.b16 %v959
    %v1051 = vunpack.c.h.b16 %v959
    %v1052 = vunpack.c.l.b16 %v960
    %v1053 = vunpack.c.h.b16 %v960
    %v1054 = vunpack.c.l.b16 %v961
    %v1055 = vunpack.c.h.b16 %v961
    %v1056 = vunpack.c.l.b16 %v962
    %v1057 = vunpack.c.h.b16 %v962
    %v1058 = vunpack.c.l.b16 %v963
    %v1059 = vunpack.c.h.b16 %v963
    %v1060 = vunpack.c.l.b16 %v964
    %v1061 = vunpack.c.h.b16 %v964
    %v1062 = vunpack.c.l.b16 %v965
    %v1063 = vunpack.c.h.b16 %v965
    %v1064 = vunpack.c.l.b16 %v966
    %v1065 = vunpack.c.h.b16 %v966
    %v1066 = vunpack.c.l.b16 %v967
    %v1067 = vunpack.c.h.b16 %v967
    %v1068 = vunpack.c.l.b16 %v968
    %v1069 = vunpack.c.h.b16 %v968
    %v1070 = vunpack.c.l.b16 %v969
    %v1071 = vunpack.c.h.b16 %v969
    %v1072 = vunpack.c.l.b16 %v970
    %v1073 = vunpack.c.h.b16 %v970
    %v1074 = vunpack.c.l.b16 %v971
    %v1075 = vunpack.c.h.b16 %v971
    %v1076 = vunpack.c.l.b16 %v972
    %v1077 = vunpack.c.h.b16 %v972
    %v1078 = vunpack.c.l.b16 %v973
    %v1079 = vunpack.c.h.b16 %v973
    %v1080 = vunpack.c.l.b16 %v974
    %v1081 = vunpack.c.h.b16 %v974
    %v1082 = vunpack.c.l.b16 %v975
    %v1083 = vunpack.c.h.b16 %v975
    %v1084 = vpack.c.b16 %v1022, %v1020
    %v1085 = vpack.c.b16 %v1023, %v1021
    %v1086 = vpack.c.b16 %v1026, %v1024
    %v1087 = vpack.c.b16 %v1027, %v1025
    %v1088 = vpack.c.b16 %v1030, %v1028
    %v1089 = vpack.c.b16 %v1031, %v1029
    %v1090 = vpack.c.b16 %v1034, %v1032
    %v1091 = vpack.c.b16 %v1035, %v1033
    %v1092 = vpack.c.b16 %v1038, %v1036
    %v1093 = vpack.c.b16 %v1039, %v1037
    %v1094 = vpack.c.b16 %v1042, %v1040
    %v1095 = vpack.c.b16 %v1043, %v1041
    %v1096 = vpack.c.b16 %v1046, %v1044
    %v1097 = vpack.c.b16 %v1047, %v1045
    %v1098 = vpack.c.b16 %v1050, %v1048
    %v1099 = vpack.c.b16 %v1051, %v1049
    %v1100 = vpack.c.b16 %v1054, %v1052
    %v1101 = vpack.c.b16 %v1055, %v1053
    %v1102 = vpack.c.b16 %v1058, %v1056
    %v1103 = vpack.c.b16 %v1059, %v1057
    %v1104 = vpack.c.b16 %v1062, %v1060
    %v1105 = vpack.c.b16 %v1063, %v1061
    %v1106 = vpack.c.b16 %v1066, %v1064
    %v1107 = vpack.c.b16 %v1067, %v1065
    %v1108 = vpack.c.b16 %v1070, %v1068
    %v1109 = vpack.c.b16 %v1071, %v1069
    %v1110 = vpack.c.b16 %v1074, %v1072
    %v1111 = vpack.c.b16 %v1075, %v1073
    %v1112 = vpack.c.b16 %v1078, %v1076
    %v1113 = vpack.c.b16 %v1079, %v1077
    %v1114 = vpack.c.b16 %v1082, %v1080
    %v1115 = vpack.c.b16 %v1083, %v1081
    %1148 = vmatprep.subr.bf16.mxu0 %v1099
    %1149 = vmatpush1.bf16.msra.mxu0 %v1098
    %1150 = vmatprep.subr.bf16.mxu0 %v1097
    %1151 = vmatpush1.bf16.msra.mxu0 %v1096
    %1152 = vmatprep.subr.bf16.mxu0 %v1095
    %1153 = vmatpush1.bf16.msra.mxu0 %v1094
    %1154 = vmatprep.subr.bf16.mxu0 %v1093
    %1155 = vmatpush1.bf16.msra.mxu0 %v1092
    %1156 = vmatprep.subr.bf16.mxu0 %v1091
    %1157 = vmatpush1.bf16.msra.mxu0 %v1090
    %1158 = vmatprep.subr.bf16.mxu0 %v1089
    %1159 = vmatpush1.bf16.msra.mxu0 %v1088
    %1160 = vmatprep.subr.bf16.mxu0 %v1087
    %1161 = vmatpush1.bf16.msra.mxu0 %v1086
    %1162 = vmatprep.subr.bf16.mxu0 %v1085
    %1163 = vmatpush1.bf16.msra.mxu0 %v1084
    %1164 = vmatprep.subr.bf16.mxu0 %v1115
    %1165 = vmatpush2.bf16.msra.mxu0 %v1114
    %1166 = vmatprep.subr.bf16.mxu0 %v1113
    %1167 = vmatpush2.bf16.msra.mxu0 %v1112
    %1168 = vmatprep.subr.bf16.mxu0 %v1111
    %1169 = vmatpush2.bf16.msra.mxu0 %v1110
    %1170 = vmatprep.subr.bf16.mxu0 %v1109
    %1171 = vmatpush2.bf16.msra.mxu0 %v1108
    %1172 = vmatprep.subr.bf16.mxu0 %v1107
    %1173 = vmatpush2.bf16.msra.mxu0 %v1106
    %1174 = vmatprep.subr.bf16.mxu0 %v1105
    %1175 = vmatpush2.bf16.msra.mxu0 %v1104
    %1176 = vmatprep.subr.bf16.mxu0 %v1103
    %1177 = vmatpush2.bf16.msra.mxu0 %v1102
    %1178 = vmatprep.subr.bf16.mxu0 %v1101
    %1179 = vmatpush2.bf16.msra.mxu0 %v1100
    %1180 = vmatprep.mubr.bf16.mxu0 %v943
    %1181 = vmatmul.mubr.bf16.gmra.mxu0 %v942
    %v1182 = vpop.f32.mrf.mxu0
    %v1183 = vadd.f32 %v981, %v1182
    %v1184 = vpop.f32.mrf.mxu0
    %v1185 = vadd.f32 %v985, %v1184
    %v1186 = vpop.f32.mrf.mxu0
    %v1187 = vadd.f32 %v981, %v1186
    %v1188 = vpop.f32.mrf.mxu0
    %v1189 = vadd.f32 %v985, %v1188
    %1190 = vdwg.mxu0
    %v1191 = vmax.f32 %v1183, 0.0
    %v1192 = vmax.f32 %v1185, 0.0
    %v1193 = vmax.f32 %v1187, 0.0
    %v1194 = vmax.f32 %v1189, 0.0
    %v1195 = vpack.c.bf16 %v1193, %v1191
    %v1196 = vpack.c.bf16 %v1194, %v1192
    %v1197 = vld [vmem:[#allocation6] sm:$0xff]
    %v1198 = vld [vmem:[#allocation6 + $0x8] sm:$0xff]
    %v1199 = vld [vmem:[#allocation6 + $0x10] sm:$0xff]
    %v1200 = vld [vmem:[#allocation6 + $0x18] sm:$0xff]
    %v1201 = vld [vmem:[#allocation6 + $0x20] sm:$0xff]
    %v1202 = vld [vmem:[#allocation6 + $0x28] sm:$0xff]
    %v1203 = vld [vmem:[#allocation6 + $0x30] sm:$0xff]
    %v1204 = vld [vmem:[#allocation6 + $0x38] sm:$0xff]
    %v1205 = vld [vmem:[#allocation6 + $0x40] sm:$0xff]
    %v1206 = vld [vmem:[#allocation6 + $0x48] sm:$0xff]
    %v1207 = vld [vmem:[#allocation6 + $0x50] sm:$0xff]
    %v1208 = vld [vmem:[#allocation6 + $0x58] sm:$0xff]
    %v1209 = vld [vmem:[#allocation6 + $0x60] sm:$0xff]
    %v1210 = vld [vmem:[#allocation6 + $0x68] sm:$0xff]
    %v1211 = vld [vmem:[#allocation6 + $0x70] sm:$0xff]
    %v1212 = vld [vmem:[#allocation6 + $0x78] sm:$0xff]
    %v1213 = vld [vmem:[#allocation6 + $0x80] sm:$0xff]
    %v1214 = vld [vmem:[#allocation6 + $0x88] sm:$0xff]
    %v1215 = vld [vmem:[#allocation6 + $0x90] sm:$0xff]
    %v1216 = vld [vmem:[#allocation6 + $0x98] sm:$0xff]
    %v1217 = vld [vmem:[#allocation6 + $0xa0] sm:$0xff]
    %v1218 = vld [vmem:[#allocation6 + $0xa8] sm:$0xff]
    %v1219 = vld [vmem:[#allocation6 + $0xb0] sm:$0xff]
    %v1220 = vld [vmem:[#allocation6 + $0xb8] sm:$0xff]
    %v1221 = vld [vmem:[#allocation6 + $0xc0] sm:$0xff]
    %v1222 = vld [vmem:[#allocation6 + $0xc8] sm:$0xff]
    %v1223 = vld [vmem:[#allocation6 + $0xd0] sm:$0xff]
    %v1224 = vld [vmem:[#allocation6 + $0xd8] sm:$0xff]
    %v1225 = vld [vmem:[#allocation6 + $0xe0] sm:$0xff]
    %v1226 = vld [vmem:[#allocation6 + $0xe8] sm:$0xff]
    %v1227 = vld [vmem:[#allocation6 + $0xf0] sm:$0xff]
    %v1228 = vld [vmem:[#allocation6 + $0xf8] sm:$0xff]
    %v1229 = vld [vmem:[%s8] sm:$0x3]
    %v1231 = vlaneseq
    %v1232 = vshrl.u32 %v1231, 7
    %v1233 = vsub.s32 0, %v1232
    %v1234 = vrot.slane %v1229, %v1233
    %v1235 = vlaneseq
    %v1236 = vshrl.u32 %v1235, 7
    %v1237 = vsub.s32 1, %v1236
    %v1238 = vrot.slane %v1229, %v1237
    %v1273 = vunpack.c.l.b16 %v1197
    %v1274 = vunpack.c.h.b16 %v1197
    %v1275 = vunpack.c.l.b16 %v1198
    %v1276 = vunpack.c.h.b16 %v1198
    %v1277 = vunpack.c.l.b16 %v1199
    %v1278 = vunpack.c.h.b16 %v1199
    %v1279 = vunpack.c.l.b16 %v1200
    %v1280 = vunpack.c.h.b16 %v1200
    %v1281 = vunpack.c.l.b16 %v1201
    %v1282 = vunpack.c.h.b16 %v1201
    %v1283 = vunpack.c.l.b16 %v1202
    %v1284 = vunpack.c.h.b16 %v1202
    %v1285 = vunpack.c.l.b16 %v1203
    %v1286 = vunpack.c.h.b16 %v1203
    %v1287 = vunpack.c.l.b16 %v1204
    %v1288 = vunpack.c.h.b16 %v1204
    %v1289 = vunpack.c.l.b16 %v1205
    %v1290 = vunpack.c.h.b16 %v1205
    %v1291 = vunpack.c.l.b16 %v1206
    %v1292 = vunpack.c.h.b16 %v1206
    %v1293 = vunpack.c.l.b16 %v1207
    %v1294 = vunpack.c.h.b16 %v1207
    %v1295 = vunpack.c.l.b16 %v1208
    %v1296 = vunpack.c.h.b16 %v1208
    %v1297 = vunpack.c.l.b16 %v1209
    %v1298 = vunpack.c.h.b16 %v1209
    %v1299 = vunpack.c.l.b16 %v1210
    %v1300 = vunpack.c.h.b16 %v1210
    %v1301 = vunpack.c.l.b16 %v1211
    %v1302 = vunpack.c.h.b16 %v1211
    %v1303 = vunpack.c.l.b16 %v1212
    %v1304 = vunpack.c.h.b16 %v1212
    %v1305 = vunpack.c.l.b16 %v1213
    %v1306 = vunpack.c.h.b16 %v1213
    %v1307 = vunpack.c.l.b16 %v1214
    %v1308 = vunpack.c.h.b16 %v1214
    %v1309 = vunpack.c.l.b16 %v1215
    %v1310 = vunpack.c.h.b16 %v1215
    %v1311 = vunpack.c.l.b16 %v1216
    %v1312 = vunpack.c.h.b16 %v1216
    %v1313 = vunpack.c.l.b16 %v1217
    %v1314 = vunpack.c.h.b16 %v1217
    %v1315 = vunpack.c.l.b16 %v1218
    %v1316 = vunpack.c.h.b16 %v1218
    %v1317 = vunpack.c.l.b16 %v1219
    %v1318 = vunpack.c.h.b16 %v1219
    %v1319 = vunpack.c.l.b16 %v1220
    %v1320 = vunpack.c.h.b16 %v1220
    %v1321 = vunpack.c.l.b16 %v1221
    %v1322 = vunpack.c.h.b16 %v1221
    %v1323 = vunpack.c.l.b16 %v1222
    %v1324 = vunpack.c.h.b16 %v1222
    %v1325 = vunpack.c.l.b16 %v1223
    %v1326 = vunpack.c.h.b16 %v1223
    %v1327 = vunpack.c.l.b16 %v1224
    %v1328 = vunpack.c.h.b16 %v1224
    %v1329 = vunpack.c.l.b16 %v1225
    %v1330 = vunpack.c.h.b16 %v1225
    %v1331 = vunpack.c.l.b16 %v1226
    %v1332 = vunpack.c.h.b16 %v1226
    %v1333 = vunpack.c.l.b16 %v1227
    %v1334 = vunpack.c.h.b16 %v1227
    %v1335 = vunpack.c.l.b16 %v1228
    %v1336 = vunpack.c.h.b16 %v1228
    %v1337 = vpack.c.b16 %v1275, %v1273
    %v1338 = vpack.c.b16 %v1276, %v1274
    %v1339 = vpack.c.b16 %v1279, %v1277
    %v1340 = vpack.c.b16 %v1280, %v1278
    %v1341 = vpack.c.b16 %v1283, %v1281
    %v1342 = vpack.c.b16 %v1284, %v1282
    %v1343 = vpack.c.b16 %v1287, %v1285
    %v1344 = vpack.c.b16 %v1288, %v1286
    %v1345 = vpack.c.b16 %v1291, %v1289
    %v1346 = vpack.c.b16 %v1292, %v1290
    %v1347 = vpack.c.b16 %v1295, %v1293
    %v1348 = vpack.c.b16 %v1296, %v1294
    %v1349 = vpack.c.b16 %v1299, %v1297
    %v1350 = vpack.c.b16 %v1300, %v1298
    %v1351 = vpack.c.b16 %v1303, %v1301
    %v1352 = vpack.c.b16 %v1304, %v1302
    %v1353 = vpack.c.b16 %v1307, %v1305
    %v1354 = vpack.c.b16 %v1308, %v1306
    %v1355 = vpack.c.b16 %v1311, %v1309
    %v1356 = vpack.c.b16 %v1312, %v1310
    %v1357 = vpack.c.b16 %v1315, %v1313
    %v1358 = vpack.c.b16 %v1316, %v1314
    %v1359 = vpack.c.b16 %v1319, %v1317
    %v1360 = vpack.c.b16 %v1320, %v1318
    %v1361 = vpack.c.b16 %v1323, %v1321
    %v1362 = vpack.c.b16 %v1324, %v1322
    %v1363 = vpack.c.b16 %v1327, %v1325
    %v1364 = vpack.c.b16 %v1328, %v1326
    %v1365 = vpack.c.b16 %v1331, %v1329
    %v1366 = vpack.c.b16 %v1332, %v1330
    %v1367 = vpack.c.b16 %v1335, %v1333
    %v1368 = vpack.c.b16 %v1336, %v1334
    %1401 = vmatprep.subr.bf16.mxu0 %v1352
    %1402 = vmatpush1.bf16.msra.mxu0 %v1351
    %1403 = vmatprep.subr.bf16.mxu0 %v1350
    %1404 = vmatpush1.bf16.msra.mxu0 %v1349
    %1405 = vmatprep.subr.bf16.mxu0 %v1348
    %1406 = vmatpush1.bf16.msra.mxu0 %v1347
    %1407 = vmatprep.subr.bf16.mxu0 %v1346
    %1408 = vmatpush1.bf16.msra.mxu0 %v1345
    %1409 = vmatprep.subr.bf16.mxu0 %v1344
    %1410 = vmatpush1.bf16.msra.mxu0 %v1343
    %1411 = vmatprep.subr.bf16.mxu0 %v1342
    %1412 = vmatpush1.bf16.msra.mxu0 %v1341
    %1413 = vmatprep.subr.bf16.mxu0 %v1340
    %1414 = vmatpush1.bf16.msra.mxu0 %v1339
    %1415 = vmatprep.subr.bf16.mxu0 %v1338
    %1416 = vmatpush1.bf16.msra.mxu0 %v1337
    %1417 = vmatprep.subr.bf16.mxu0 %v1368
    %1418 = vmatpush2.bf16.msra.mxu0 %v1367
    %1419 = vmatprep.subr.bf16.mxu0 %v1366
    %1420 = vmatpush2.bf16.msra.mxu0 %v1365
    %1421 = vmatprep.subr.bf16.mxu0 %v1364
    %1422 = vmatpush2.bf16.msra.mxu0 %v1363
    %1423 = vmatprep.subr.bf16.mxu0 %v1362
    %1424 = vmatpush2.bf16.msra.mxu0 %v1361
    %1425 = vmatprep.subr.bf16.mxu0 %v1360
    %1426 = vmatpush2.bf16.msra.mxu0 %v1359
    %1427 = vmatprep.subr.bf16.mxu0 %v1358
    %1428 = vmatpush2.bf16.msra.mxu0 %v1357
    %1429 = vmatprep.subr.bf16.mxu0 %v1356
    %1430 = vmatpush2.bf16.msra.mxu0 %v1355
    %1431 = vmatprep.subr.bf16.mxu0 %v1354
    %1432 = vmatpush2.bf16.msra.mxu0 %v1353
    %1433 = vmatprep.mubr.bf16.mxu0 %v1196
    %1434 = vmatmul.mubr.bf16.gmra.mxu0 %v1195
    %v1435 = vpop.f32.mrf.mxu0
    %v1436 = vadd.f32 %v1234, %v1435
    %v1437 = vpop.f32.mrf.mxu0
    %v1438 = vadd.f32 %v1238, %v1437
    %v1439 = vpop.f32.mrf.mxu0
    %v1440 = vadd.f32 %v1234, %v1439
    %v1441 = vpop.f32.mrf.mxu0
    %v1442 = vadd.f32 %v1238, %v1441
    %1443 = vdwg.mxu0
    %v1444 = vmax.f32 %v1436, 0.0
    %v1445 = vmax.f32 %v1438, 0.0
    %v1446 = vmax.f32 %v1440, 0.0
    %v1447 = vmax.f32 %v1442, 0.0
    %v1448 = vpack.c.bf16 %v1446, %v1444
    %v1449 = vpack.c.bf16 %v1447, %v1445
    %v1450 = vld [vmem:[#allocation7] sm:$0xff]
    %v1451 = vld [vmem:[#allocation7 + $0x8] sm:$0xff]
    %v1452 = vld [vmem:[#allocation7 + $0x10] sm:$0xff]
    %v1453 = vld [vmem:[#allocation7 + $0x18] sm:$0xff]
    %v1454 = vld [vmem:[#allocation7 + $0x20] sm:$0xff]
    %v1455 = vld [vmem:[#allocation7 + $0x28] sm:$0xff]
    %v1456 = vld [vmem:[#allocation7 + $0x30] sm:$0xff]
    %v1457 = vld [vmem:[#allocation7 + $0x38] sm:$0xff]
    %v1458 = vld [vmem:[#allocation7 + $0x40] sm:$0xff]
    %v1459 = vld [vmem:[#allocation7 + $0x48] sm:$0xff]
    %v1460 = vld [vmem:[#allocation7 + $0x50] sm:$0xff]
    %v1461 = vld [vmem:[#allocation7 + $0x58] sm:$0xff]
    %v1462 = vld [vmem:[#allocation7 + $0x60] sm:$0xff]
    %v1463 = vld [vmem:[#allocation7 + $0x68] sm:$0xff]
    %v1464 = vld [vmem:[#allocation7 + $0x70] sm:$0xff]
    %v1465 = vld [vmem:[#allocation7 + $0x78] sm:$0xff]
    %v1466 = vld [vmem:[#allocation7 + $0x80] sm:$0xff]
    %v1467 = vld [vmem:[#allocation7 + $0x88] sm:$0xff]
    %v1468 = vld [vmem:[#allocation7 + $0x90] sm:$0xff]
    %v1469 = vld [vmem:[#allocation7 + $0x98] sm:$0xff]
    %v1470 = vld [vmem:[#allocation7 + $0xa0] sm:$0xff]
    %v1471 = vld [vmem:[#allocation7 + $0xa8] sm:$0xff]
    %v1472 = vld [vmem:[#allocation7 + $0xb0] sm:$0xff]
    %v1473 = vld [vmem:[#allocation7 + $0xb8] sm:$0xff]
    %v1474 = vld [vmem:[#allocation7 + $0xc0] sm:$0xff]
    %v1475 = vld [vmem:[#allocation7 + $0xc8] sm:$0xff]
    %v1476 = vld [vmem:[#allocation7 + $0xd0] sm:$0xff]
    %v1477 = vld [vmem:[#allocation7 + $0xd8] sm:$0xff]
    %v1478 = vld [vmem:[#allocation7 + $0xe0] sm:$0xff]
    %v1479 = vld [vmem:[#allocation7 + $0xe8] sm:$0xff]
    %v1480 = vld [vmem:[#allocation7 + $0xf0] sm:$0xff]
    %v1481 = vld [vmem:[#allocation7 + $0xf8] sm:$0xff]
    %v1482 = vld [vmem:[%s10] sm:$0x3]
    %v1484 = vlaneseq
    %v1485 = vshrl.u32 %v1484, 7
    %v1486 = vsub.s32 0, %v1485
    %v1487 = vrot.slane %v1482, %v1486
    %v1488 = vlaneseq
    %v1489 = vshrl.u32 %v1488, 7
    %v1490 = vsub.s32 1, %v1489
    %v1491 = vrot.slane %v1482, %v1490
    %v1526 = vunpack.c.l.b16 %v1450
    %v1527 = vunpack.c.h.b16 %v1450
    %v1528 = vunpack.c.l.b16 %v1451
    %v1529 = vunpack.c.h.b16 %v1451
    %v1530 = vunpack.c.l.b16 %v1452
    %v1531 = vunpack.c.h.b16 %v1452
    %v1532 = vunpack.c.l.b16 %v1453
    %v1533 = vunpack.c.h.b16 %v1453
    %v1534 = vunpack.c.l.b16 %v1454
    %v1535 = vunpack.c.h.b16 %v1454
    %v1536 = vunpack.c.l.b16 %v1455
    %v1537 = vunpack.c.h.b16 %v1455
    %v1538 = vunpack.c.l.b16 %v1456
    %v1539 = vunpack.c.h.b16 %v1456
    %v1540 = vunpack.c.l.b16 %v1457
    %v1541 = vunpack.c.h.b16 %v1457
    %v1542 = vunpack.c.l.b16 %v1458
    %v1543 = vunpack.c.h.b16 %v1458
    %v1544 = vunpack.c.l.b16 %v1459
    %v1545 = vunpack.c.h.b16 %v1459
    %v1546 = vunpack.c.l.b16 %v1460
    %v1547 = vunpack.c.h.b16 %v1460
    %v1548 = vunpack.c.l.b16 %v1461
    %v1549 = vunpack.c.h.b16 %v1461
    %v1550 = vunpack.c.l.b16 %v1462
    %v1551 = vunpack.c.h.b16 %v1462
    %v1552 = vunpack.c.l.b16 %v1463
    %v1553 = vunpack.c.h.b16 %v1463
    %v1554 = vunpack.c.l.b16 %v1464
    %v1555 = vunpack.c.h.b16 %v1464
    %v1556 = vunpack.c.l.b16 %v1465
    %v1557 = vunpack.c.h.b16 %v1465
    %v1558 = vunpack.c.l.b16 %v1466
    %v1559 = vunpack.c.h.b16 %v1466
    %v1560 = vunpack.c.l.b16 %v1467
    %v1561 = vunpack.c.h.b16 %v1467
    %v1562 = vunpack.c.l.b16 %v1468
    %v1563 = vunpack.c.h.b16 %v1468
    %v1564 = vunpack.c.l.b16 %v1469
    %v1565 = vunpack.c.h.b16 %v1469
    %v1566 = vunpack.c.l.b16 %v1470
    %v1567 = vunpack.c.h.b16 %v1470
    %v1568 = vunpack.c.l.b16 %v1471
    %v1569 = vunpack.c.h.b16 %v1471
    %v1570 = vunpack.c.l.b16 %v1472
    %v1571 = vunpack.c.h.b16 %v1472
    %v1572 = vunpack.c.l.b16 %v1473
    %v1573 = vunpack.c.h.b16 %v1473
    %v1574 = vunpack.c.l.b16 %v1474
    %v1575 = vunpack.c.h.b16 %v1474
    %v1576 = vunpack.c.l.b16 %v1475
    %v1577 = vunpack.c.h.b16 %v1475
    %v1578 = vunpack.c.l.b16 %v1476
    %v1579 = vunpack.c.h.b16 %v1476
    %v1580 = vunpack.c.l.b16 %v1477
    %v1581 = vunpack.c.h.b16 %v1477
    %v1582 = vunpack.c.l.b16 %v1478
    %v1583 = vunpack.c.h.b16 %v1478
    %v1584 = vunpack.c.l.b16 %v1479
    %v1585 = vunpack.c.h.b16 %v1479
    %v1586 = vunpack.c.l.b16 %v1480
    %v1587 = vunpack.c.h.b16 %v1480
    %v1588 = vunpack.c.l.b16 %v1481
    %v1589 = vunpack.c.h.b16 %v1481
    %v1590 = vpack.c.b16 %v1528, %v1526
    %v1591 = vpack.c.b16 %v1529, %v1527
    %v1592 = vpack.c.b16 %v1532, %v1530
    %v1593 = vpack.c.b16 %v1533, %v1531
    %v1594 = vpack.c.b16 %v1536, %v1534
    %v1595 = vpack.c.b16 %v1537, %v1535
    %v1596 = vpack.c.b16 %v1540, %v1538
    %v1597 = vpack.c.b16 %v1541, %v1539
    %v1598 = vpack.c.b16 %v1544, %v1542
    %v1599 = vpack.c.b16 %v1545, %v1543
    %v1600 = vpack.c.b16 %v1548, %v1546
    %v1601 = vpack.c.b16 %v1549, %v1547
    %v1602 = vpack.c.b16 %v1552, %v1550
    %v1603 = vpack.c.b16 %v1553, %v1551
    %v1604 = vpack.c.b16 %v1556, %v1554
    %v1605 = vpack.c.b16 %v1557, %v1555
    %v1606 = vpack.c.b16 %v1560, %v1558
    %v1607 = vpack.c.b16 %v1561, %v1559
    %v1608 = vpack.c.b16 %v1564, %v1562
    %v1609 = vpack.c.b16 %v1565, %v1563
    %v1610 = vpack.c.b16 %v1568, %v1566
    %v1611 = vpack.c.b16 %v1569, %v1567
    %v1612 = vpack.c.b16 %v1572, %v1570
    %v1613 = vpack.c.b16 %v1573, %v1571
    %v1614 = vpack.c.b16 %v1576, %v1574
    %v1615 = vpack.c.b16 %v1577, %v1575
    %v1616 = vpack.c.b16 %v1580, %v1578
    %v1617 = vpack.c.b16 %v1581, %v1579
    %v1618 = vpack.c.b16 %v1584, %v1582
    %v1619 = vpack.c.b16 %v1585, %v1583
    %v1620 = vpack.c.b16 %v1588, %v1586
    %v1621 = vpack.c.b16 %v1589, %v1587
    %1654 = vmatprep.subr.bf16.mxu0 %v1605
    %1655 = vmatpush1.bf16.msra.mxu0 %v1604
    %1656 = vmatprep.subr.bf16.mxu0 %v1603
    %1657 = vmatpush1.bf16.msra.mxu0 %v1602
    %1658 = vmatprep.subr.bf16.mxu0 %v1601
    %1659 = vmatpush1.bf16.msra.mxu0 %v1600
    %1660 = vmatprep.subr.bf16.mxu0 %v1599
    %1661 = vmatpush1.bf16.msra.mxu0 %v1598
    %1662 = vmatprep.subr.bf16.mxu0 %v1597
    %1663 = vmatpush1.bf16.msra.mxu0 %v1596
    %1664 = vmatprep.subr.bf16.mxu0 %v1595
    %1665 = vmatpush1.bf16.msra.mxu0 %v1594
    %1666 = vmatprep.subr.bf16.mxu0 %v1593
    %1667 = vmatpush1.bf16.msra.mxu0 %v1592
    %1668 = vmatprep.subr.bf16.mxu0 %v1591
    %1669 = vmatpush1.bf16.msra.mxu0 %v1590
    %1670 = vmatprep.subr.bf16.mxu0 %v1621
    %1671 = vmatpush2.bf16.msra.mxu0 %v1620
    %1672 = vmatprep.subr.bf16.mxu0 %v1619
    %1673 = vmatpush2.bf16.msra.mxu0 %v1618
    %1674 = vmatprep.subr.bf16.mxu0 %v1617
    %1675 = vmatpush2.bf16.msra.mxu0 %v1616
    %1676 = vmatprep.subr.bf16.mxu0 %v1615
    %1677 = vmatpush2.bf16.msra.mxu0 %v1614
    %1678 = vmatprep.subr.bf16.mxu0 %v1613
    %1679 = vmatpush2.bf16.msra.mxu0 %v1612
    %1680 = vmatprep.subr.bf16.mxu0 %v1611
    %1681 = vmatpush2.bf16.msra.mxu0 %v1610
    %1682 = vmatprep.subr.bf16.mxu0 %v1609
    %1683 = vmatpush2.bf16.msra.mxu0 %v1608
    %1684 = vmatprep.subr.bf16.mxu0 %v1607
    %1685 = vmatpush2.bf16.msra.mxu0 %v1606
    %1686 = vmatprep.mubr.bf16.mxu0 %v1449
    %1687 = vmatmul.mubr.bf16.gmra.mxu0 %v1448
    %v1688 = vpop.f32.mrf.mxu0
    %v1689 = vadd.f32 %v1487, %v1688
    %v1690 = vpop.f32.mrf.mxu0
    %v1691 = vadd.f32 %v1491, %v1690
    %v1692 = vpop.f32.mrf.mxu0
    %v1693 = vadd.f32 %v1487, %v1692
    %v1694 = vpop.f32.mrf.mxu0
    %v1695 = vadd.f32 %v1491, %v1694
    %1696 = vdwg.mxu0
    %v1697 = vmax.f32 %v1689, 0.0
    %v1698 = vmax.f32 %v1691, 0.0
    %v1699 = vmax.f32 %v1693, 0.0
    %v1700 = vmax.f32 %v1695, 0.0
    %v1701 = vpack.c.bf16 %v1699, %v1697
    %v1702 = vpack.c.bf16 %v1700, %v1698
    %v1703 = vld [vmem:[#allocation9] sm:$0xff]
    %v1704 = vld [vmem:[#allocation9 + $0x8] sm:$0xff]
    %v1705 = vld [vmem:[#allocation9 + $0x10] sm:$0xff]
    %v1706 = vld [vmem:[#allocation9 + $0x18] sm:$0xff]
    %v1707 = vld [vmem:[#allocation9 + $0x20] sm:$0xff]
    %v1708 = vld [vmem:[#allocation9 + $0x28] sm:$0xff]
    %v1709 = vld [vmem:[#allocation9 + $0x30] sm:$0xff]
    %v1710 = vld [vmem:[#allocation9 + $0x38] sm:$0xff]
    %v1711 = vld [vmem:[#allocation9 + $0x40] sm:$0xff]
    %v1712 = vld [vmem:[#allocation9 + $0x48] sm:$0xff]
    %v1713 = vld [vmem:[#allocation9 + $0x50] sm:$0xff]
    %v1714 = vld [vmem:[#allocation9 + $0x58] sm:$0xff]
    %v1715 = vld [vmem:[#allocation9 + $0x60] sm:$0xff]
    %v1716 = vld [vmem:[#allocation9 + $0x68] sm:$0xff]
    %v1717 = vld [vmem:[#allocation9 + $0x70] sm:$0xff]
    %v1718 = vld [vmem:[#allocation9 + $0x78] sm:$0xff]
    %v1719 = vld [vmem:[#allocation9 + $0x80] sm:$0xff]
    %v1720 = vld [vmem:[#allocation9 + $0x88] sm:$0xff]
    %v1721 = vld [vmem:[#allocation9 + $0x90] sm:$0xff]
    %v1722 = vld [vmem:[#allocation9 + $0x98] sm:$0xff]
    %v1723 = vld [vmem:[#allocation9 + $0xa0] sm:$0xff]
    %v1724 = vld [vmem:[#allocation9 + $0xa8] sm:$0xff]
    %v1725 = vld [vmem:[#allocation9 + $0xb0] sm:$0xff]
    %v1726 = vld [vmem:[#allocation9 + $0xb8] sm:$0xff]
    %v1727 = vld [vmem:[#allocation9 + $0xc0] sm:$0xff]
    %v1728 = vld [vmem:[#allocation9 + $0xc8] sm:$0xff]
    %v1729 = vld [vmem:[#allocation9 + $0xd0] sm:$0xff]
    %v1730 = vld [vmem:[#allocation9 + $0xd8] sm:$0xff]
    %v1731 = vld [vmem:[#allocation9 + $0xe0] sm:$0xff]
    %v1732 = vld [vmem:[#allocation9 + $0xe8] sm:$0xff]
    %v1733 = vld [vmem:[#allocation9 + $0xf0] sm:$0xff]
    %v1734 = vld [vmem:[#allocation9 + $0xf8] sm:$0xff]
    %v1767 = vunpack.c.l.b16 %v1703
    %v1768 = vunpack.c.h.b16 %v1703
    %v1769 = vunpack.c.l.b16 %v1704
    %v1770 = vunpack.c.h.b16 %v1704
    %v1771 = vunpack.c.l.b16 %v1705
    %v1772 = vunpack.c.h.b16 %v1705
    %v1773 = vunpack.c.l.b16 %v1706
    %v1774 = vunpack.c.h.b16 %v1706
    %v1775 = vunpack.c.l.b16 %v1707
    %v1776 = vunpack.c.h.b16 %v1707
    %v1777 = vunpack.c.l.b16 %v1708
    %v1778 = vunpack.c.h.b16 %v1708
    %v1779 = vunpack.c.l.b16 %v1709
    %v1780 = vunpack.c.h.b16 %v1709
    %v1781 = vunpack.c.l.b16 %v1710
    %v1782 = vunpack.c.h.b16 %v1710
    %v1783 = vunpack.c.l.b16 %v1711
    %v1784 = vunpack.c.h.b16 %v1711
    %v1785 = vunpack.c.l.b16 %v1712
    %v1786 = vunpack.c.h.b16 %v1712
    %v1787 = vunpack.c.l.b16 %v1713
    %v1788 = vunpack.c.h.b16 %v1713
    %v1789 = vunpack.c.l.b16 %v1714
    %v1790 = vunpack.c.h.b16 %v1714
    %v1791 = vunpack.c.l.b16 %v1715
    %v1792 = vunpack.c.h.b16 %v1715
    %v1793 = vunpack.c.l.b16 %v1716
    %v1794 = vunpack.c.h.b16 %v1716
    %v1795 = vunpack.c.l.b16 %v1717
    %v1796 = vunpack.c.h.b16 %v1717
    %v1797 = vunpack.c.l.b16 %v1718
    %v1798 = vunpack.c.h.b16 %v1718
    %v1799 = vunpack.c.l.b16 %v1719
    %v1800 = vunpack.c.h.b16 %v1719
    %v1801 = vunpack.c.l.b16 %v1720
    %v1802 = vunpack.c.h.b16 %v1720
    %v1803 = vunpack.c.l.b16 %v1721
    %v1804 = vunpack.c.h.b16 %v1721
    %v1805 = vunpack.c.l.b16 %v1722
    %v1806 = vunpack.c.h.b16 %v1722
    %v1807 = vunpack.c.l.b16 %v1723
    %v1808 = vunpack.c.h.b16 %v1723
    %v1809 = vunpack.c.l.b16 %v1724
    %v1810 = vunpack.c.h.b16 %v1724
    %v1811 = vunpack.c.l.b16 %v1725
    %v1812 = vunpack.c.h.b16 %v1725
    %v1813 = vunpack.c.l.b16 %v1726
    %v1814 = vunpack.c.h.b16 %v1726
    %v1815 = vunpack.c.l.b16 %v1727
    %v1816 = vunpack.c.h.b16 %v1727
    %v1817 = vunpack.c.l.b16 %v1728
    %v1818 = vunpack.c.h.b16 %v1728
    %v1819 = vunpack.c.l.b16 %v1729
    %v1820 = vunpack.c.h.b16 %v1729
    %v1821 = vunpack.c.l.b16 %v1730
    %v1822 = vunpack.c.h.b16 %v1730
    %v1823 = vunpack.c.l.b16 %v1731
    %v1824 = vunpack.c.h.b16 %v1731
    %v1825 = vunpack.c.l.b16 %v1732
    %v1826 = vunpack.c.h.b16 %v1732
    %v1827 = vunpack.c.l.b16 %v1733
    %v1828 = vunpack.c.h.b16 %v1733
    %v1829 = vunpack.c.l.b16 %v1734
    %v1830 = vunpack.c.h.b16 %v1734
    %v1831 = vpack.c.b16 %v1769, %v1767
    %v1832 = vpack.c.b16 %v1770, %v1768
    %v1833 = vpack.c.b16 %v1773, %v1771
    %v1834 = vpack.c.b16 %v1774, %v1772
    %v1835 = vpack.c.b16 %v1777, %v1775
    %v1836 = vpack.c.b16 %v1778, %v1776
    %v1837 = vpack.c.b16 %v1781, %v1779
    %v1838 = vpack.c.b16 %v1782, %v1780
    %v1839 = vpack.c.b16 %v1785, %v1783
    %v1840 = vpack.c.b16 %v1786, %v1784
    %v1841 = vpack.c.b16 %v1789, %v1787
    %v1842 = vpack.c.b16 %v1790, %v1788
    %v1843 = vpack.c.b16 %v1793, %v1791
    %v1844 = vpack.c.b16 %v1794, %v1792
    %v1845 = vpack.c.b16 %v1797, %v1795
    %v1846 = vpack.c.b16 %v1798, %v1796
    %v1847 = vpack.c.b16 %v1801, %v1799
    %v1848 = vpack.c.b16 %v1802, %v1800
    %v1849 = vpack.c.b16 %v1805, %v1803
    %v1850 = vpack.c.b16 %v1806, %v1804
    %v1851 = vpack.c.b16 %v1809, %v1807
    %v1852 = vpack.c.b16 %v1810, %v1808
    %v1853 = vpack.c.b16 %v1813, %v1811
    %v1854 = vpack.c.b16 %v1814, %v1812
    %v1855 = vpack.c.b16 %v1817, %v1815
    %v1856 = vpack.c.b16 %v1818, %v1816
    %v1857 = vpack.c.b16 %v1821, %v1819
    %v1858 = vpack.c.b16 %v1822, %v1820
    %v1859 = vpack.c.b16 %v1825, %v1823
    %v1860 = vpack.c.b16 %v1826, %v1824
    %v1861 = vpack.c.b16 %v1829, %v1827
    %v1862 = vpack.c.b16 %v1830, %v1828
    %1895 = vmatprep.subr.bf16.mxu0 %v1846
    %1896 = vmatpush1.bf16.msra.mxu0 %v1845
    %1897 = vmatprep.subr.bf16.mxu0 %v1844
    %1898 = vmatpush1.bf16.msra.mxu0 %v1843
    %1899 = vmatprep.subr.bf16.mxu0 %v1842
    %1900 = vmatpush1.bf16.msra.mxu0 %v1841
    %1901 = vmatprep.subr.bf16.mxu0 %v1840
    %1902 = vmatpush1.bf16.msra.mxu0 %v1839
    %1903 = vmatprep.subr.bf16.mxu0 %v1838
    %1904 = vmatpush1.bf16.msra.mxu0 %v1837
    %1905 = vmatprep.subr.bf16.mxu0 %v1836
    %1906 = vmatpush1.bf16.msra.mxu0 %v1835
    %1907 = vmatprep.subr.bf16.mxu0 %v1834
    %1908 = vmatpush1.bf16.msra.mxu0 %v1833
    %1909 = vmatprep.subr.bf16.mxu0 %v1832
    %1910 = vmatpush1.bf16.msra.mxu0 %v1831
    %1911 = vmatprep.subr.bf16.mxu0 %v1862
    %1912 = vmatpush2.bf16.msra.mxu0 %v1861
    %1913 = vmatprep.subr.bf16.mxu0 %v1860
    %1914 = vmatpush2.bf16.msra.mxu0 %v1859
    %1915 = vmatprep.subr.bf16.mxu0 %v1858
    %1916 = vmatpush2.bf16.msra.mxu0 %v1857
    %1917 = vmatprep.subr.bf16.mxu0 %v1856
    %1918 = vmatpush2.bf16.msra.mxu0 %v1855
    %1919 = vmatprep.subr.bf16.mxu0 %v1854
    %1920 = vmatpush2.bf16.msra.mxu0 %v1853
    %1921 = vmatprep.subr.bf16.mxu0 %v1852
    %1922 = vmatpush2.bf16.msra.mxu0 %v1851
    %1923 = vmatprep.subr.bf16.mxu0 %v1850
    %1924 = vmatpush2.bf16.msra.mxu0 %v1849
    %1925 = vmatprep.subr.bf16.mxu0 %v1848
    %1926 = vmatpush2.bf16.msra.mxu0 %v1847
    %1927 = vmatprep.mubr.bf16.mxu0 %v1702
    %1928 = vmatmul.mubr.bf16.gmra.mxu0 %v1701
    %v1929 = vpop.f32.mrf.mxu0
    %v1930 = vadd.f32 0.0, %v1929
    %v1931 = vpop.f32.mrf.mxu0
    %v1932 = vadd.f32 0.0, %v1931
    %v1933 = vpop.f32.mrf.mxu0
    %v1934 = vadd.f32 0.0, %v1933
    %v1935 = vpop.f32.mrf.mxu0
    %v1936 = vadd.f32 0.0, %v1935
    %1937 = vdwg.mxu0
    %v1938 = vadd.f32 %v406, %v1930
    %v1939 = vadd.f32 %v407, %v1932
    %v1940 = vadd.f32 %v412, %v1934
    %v1941 = vadd.f32 %v413, %v1936
    %v1942 = vld [vmem:[%s12] sm:$0x3]
    %v1944 = vlaneseq
    %v1945 = vshrl.u32 %v1944, 7
    %v1946 = vsub.s32 0, %v1945
    %v1947 = vrot.slane %v1942, %v1946
    %v1948 = vlaneseq
    %v1949 = vshrl.u32 %v1948, 7
    %v1950 = vsub.s32 1, %v1949
    %v1951 = vrot.slane %v1942, %v1950
    %v1954 = vadd.f32 %v1938, %v1947
    %v1955 = vadd.f32 %v1939, %v1951
    %v1956 = vadd.f32 %v1940, %v1947
    %v1957 = vadd.f32 %v1941, %v1951
    %v1958 = vmax.f32 %v1954, 0.0
    %v1959 = vmax.f32 %v1955, 0.0
    %v1960 = vmax.f32 %v1956, 0.0
    %v1961 = vmax.f32 %v1957, 0.0
    %v1962 = vpack.c.bf16 %v1960, %v1958
    %v1963 = vpack.c.bf16 %v1961, %v1959
    %v1964 = vld [vmem:[#allocation10] sm:$0xff]
    %v1965 = vld [vmem:[#allocation10 + $0x8] sm:$0xff]
    %v1966 = vld [vmem:[#allocation10 + $0x10] sm:$0xff]
    %v1967 = vld [vmem:[#allocation10 + $0x18] sm:$0xff]
    %v1968 = vld [vmem:[#allocation10 + $0x20] sm:$0xff]
    %v1969 = vld [vmem:[#allocation10 + $0x28] sm:$0xff]
    %v1970 = vld [vmem:[#allocation10 + $0x30] sm:$0xff]
    %v1971 = vld [vmem:[#allocation10 + $0x38] sm:$0xff]
    %v1972 = vld [vmem:[#allocation10 + $0x40] sm:$0xff]
    %v1973 = vld [vmem:[#allocation10 + $0x48] sm:$0xff]
    %v1974 = vld [vmem:[#allocation10 + $0x50] sm:$0xff]
    %v1975 = vld [vmem:[#allocation10 + $0x58] sm:$0xff]
    %v1976 = vld [vmem:[#allocation10 + $0x60] sm:$0xff]
    %v1977 = vld [vmem:[#allocation10 + $0x68] sm:$0xff]
    %v1978 = vld [vmem:[#allocation10 + $0x70] sm:$0xff]
    %v1979 = vld [vmem:[#allocation10 + $0x78] sm:$0xff]
    %v1980 = vld [vmem:[#allocation10 + $0x80] sm:$0xff]
    %v1981 = vld [vmem:[#allocation10 + $0x88] sm:$0xff]
    %v1982 = vld [vmem:[#allocation10 + $0x90] sm:$0xff]
    %v1983 = vld [vmem:[#allocation10 + $0x98] sm:$0xff]
    %v1984 = vld [vmem:[#allocation10 + $0xa0] sm:$0xff]
    %v1985 = vld [vmem:[#allocation10 + $0xa8] sm:$0xff]
    %v1986 = vld [vmem:[#allocation10 + $0xb0] sm:$0xff]
    %v1987 = vld [vmem:[#allocation10 + $0xb8] sm:$0xff]
    %v1988 = vld [vmem:[#allocation10 + $0xc0] sm:$0xff]
    %v1989 = vld [vmem:[#allocation10 + $0xc8] sm:$0xff]
    %v1990 = vld [vmem:[#allocation10 + $0xd0] sm:$0xff]
    %v1991 = vld [vmem:[#allocation10 + $0xd8] sm:$0xff]
    %v1992 = vld [vmem:[#allocation10 + $0xe0] sm:$0xff]
    %v1993 = vld [vmem:[#allocation10 + $0xe8] sm:$0xff]
    %v1994 = vld [vmem:[#allocation10 + $0xf0] sm:$0xff]
    %v1995 = vld [vmem:[#allocation10 + $0xf8] sm:$0xff]
    %v1996 = vld [vmem:[%s14] sm:$0x3]
    %v1998 = vlaneseq
    %v1999 = vshrl.u32 %v1998, 7
    %v2000 = vsub.s32 0, %v1999
    %v2001 = vrot.slane %v1996, %v2000
    %v2002 = vlaneseq
    %v2003 = vshrl.u32 %v2002, 7
    %v2004 = vsub.s32 1, %v2003
    %v2005 = vrot.slane %v1996, %v2004
    %v2040 = vunpack.c.l.b16 %v1964
    %v2041 = vunpack.c.h.b16 %v1964
    %v2042 = vunpack.c.l.b16 %v1965
    %v2043 = vunpack.c.h.b16 %v1965
    %v2044 = vunpack.c.l.b16 %v1966
    %v2045 = vunpack.c.h.b16 %v1966
    %v2046 = vunpack.c.l.b16 %v1967
    %v2047 = vunpack.c.h.b16 %v1967
    %v2048 = vunpack.c.l.b16 %v1968
    %v2049 = vunpack.c.h.b16 %v1968
    %v2050 = vunpack.c.l.b16 %v1969
    %v2051 = vunpack.c.h.b16 %v1969
    %v2052 = vunpack.c.l.b16 %v1970
    %v2053 = vunpack.c.h.b16 %v1970
    %v2054 = vunpack.c.l.b16 %v1971
    %v2055 = vunpack.c.h.b16 %v1971
    %v2056 = vunpack.c.l.b16 %v1972
    %v2057 = vunpack.c.h.b16 %v1972
    %v2058 = vunpack.c.l.b16 %v1973
    %v2059 = vunpack.c.h.b16 %v1973
    %v2060 = vunpack.c.l.b16 %v1974
    %v2061 = vunpack.c.h.b16 %v1974
    %v2062 = vunpack.c.l.b16 %v1975
    %v2063 = vunpack.c.h.b16 %v1975
    %v2064 = vunpack.c.l.b16 %v1976
    %v2065 = vunpack.c.h.b16 %v1976
    %v2066 = vunpack.c.l.b16 %v1977
    %v2067 = vunpack.c.h.b16 %v1977
    %v2068 = vunpack.c.l.b16 %v1978
    %v2069 = vunpack.c.h.b16 %v1978
    %v2070 = vunpack.c.l.b16 %v1979
    %v2071 = vunpack.c.h.b16 %v1979
    %v2072 = vunpack.c.l.b16 %v1980
    %v2073 = vunpack.c.h.b16 %v1980
    %v2074 = vunpack.c.l.b16 %v1981
    %v2075 = vunpack.c.h.b16 %v1981
    %v2076 = vunpack.c.l.b16 %v1982
    %v2077 = vunpack.c.h.b16 %v1982
    %v2078 = vunpack.c.l.b16 %v1983
    %v2079 = vunpack.c.h.b16 %v1983
    %v2080 = vunpack.c.l.b16 %v1984
    %v2081 = vunpack.c.h.b16 %v1984
    %v2082 = vunpack.c.l.b16 %v1985
    %v2083 = vunpack.c.h.b16 %v1985
    %v2084 = vunpack.c.l.b16 %v1986
    %v2085 = vunpack.c.h.b16 %v1986
    %v2086 = vunpack.c.l.b16 %v1987
    %v2087 = vunpack.c.h.b16 %v1987
    %v2088 = vunpack.c.l.b16 %v1988
    %v2089 = vunpack.c.h.b16 %v1988
    %v2090 = vunpack.c.l.b16 %v1989
    %v2091 = vunpack.c.h.b16 %v1989
    %v2092 = vunpack.c.l.b16 %v1990
    %v2093 = vunpack.c.h.b16 %v1990
    %v2094 = vunpack.c.l.b16 %v1991
    %v2095 = vunpack.c.h.b16 %v1991
    %v2096 = vunpack.c.l.b16 %v1992
    %v2097 = vunpack.c.h.b16 %v1992
    %v2098 = vunpack.c.l.b16 %v1993
    %v2099 = vunpack.c.h.b16 %v1993
    %v2100 = vunpack.c.l.b16 %v1994
    %v2101 = vunpack.c.h.b16 %v1994
    %v2102 = vunpack.c.l.b16 %v1995
    %v2103 = vunpack.c.h.b16 %v1995
    %v2104 = vpack.c.b16 %v2042, %v2040
    %v2105 = vpack.c.b16 %v2043, %v2041
    %v2106 = vpack.c.b16 %v2046, %v2044
    %v2107 = vpack.c.b16 %v2047, %v2045
    %v2108 = vpack.c.b16 %v2050, %v2048
    %v2109 = vpack.c.b16 %v2051, %v2049
    %v2110 = vpack.c.b16 %v2054, %v2052
    %v2111 = vpack.c.b16 %v2055, %v2053
    %v2112 = vpack.c.b16 %v2058, %v2056
    %v2113 = vpack.c.b16 %v2059, %v2057
    %v2114 = vpack.c.b16 %v2062, %v2060
    %v2115 = vpack.c.b16 %v2063, %v2061
    %v2116 = vpack.c.b16 %v2066, %v2064
    %v2117 = vpack.c.b16 %v2067, %v2065
    %v2118 = vpack.c.b16 %v2070, %v2068
    %v2119 = vpack.c.b16 %v2071, %v2069
    %v2120 = vpack.c.b16 %v2074, %v2072
    %v2121 = vpack.c.b16 %v2075, %v2073
    %v2122 = vpack.c.b16 %v2078, %v2076
    %v2123 = vpack.c.b16 %v2079, %v2077
    %v2124 = vpack.c.b16 %v2082, %v2080
    %v2125 = vpack.c.b16 %v2083, %v2081
    %v2126 = vpack.c.b16 %v2086, %v2084
    %v2127 = vpack.c.b16 %v2087, %v2085
    %v2128 = vpack.c.b16 %v2090, %v2088
    %v2129 = vpack.c.b16 %v2091, %v2089
    %v2130 = vpack.c.b16 %v2094, %v2092
    %v2131 = vpack.c.b16 %v2095, %v2093
    %v2132 = vpack.c.b16 %v2098, %v2096
    %v2133 = vpack.c.b16 %v2099, %v2097
    %v2134 = vpack.c.b16 %v2102, %v2100
    %v2135 = vpack.c.b16 %v2103, %v2101
    %2168 = vmatprep.subr.bf16.mxu0 %v2119
    %2169 = vmatpush1.bf16.msra.mxu0 %v2118
    %2170 = vmatprep.subr.bf16.mxu0 %v2117
    %2171 = vmatpush1.bf16.msra.mxu0 %v2116
    %2172 = vmatprep.subr.bf16.mxu0 %v2115
    %2173 = vmatpush1.bf16.msra.mxu0 %v2114
    %2174 = vmatprep.subr.bf16.mxu0 %v2113
    %2175 = vmatpush1.bf16.msra.mxu0 %v2112
    %2176 = vmatprep.subr.bf16.mxu0 %v2111
    %2177 = vmatpush1.bf16.msra.mxu0 %v2110
    %2178 = vmatprep.subr.bf16.mxu0 %v2109
    %2179 = vmatpush1.bf16.msra.mxu0 %v2108
    %2180 = vmatprep.subr.bf16.mxu0 %v2107
    %2181 = vmatpush1.bf16.msra.mxu0 %v2106
    %2182 = vmatprep.subr.bf16.mxu0 %v2105
    %2183 = vmatpush1.bf16.msra.mxu0 %v2104
    %2184 = vmatprep.subr.bf16.mxu0 %v2135
    %2185 = vmatpush2.bf16.msra.mxu0 %v2134
    %2186 = vmatprep.subr.bf16.mxu0 %v2133
    %2187 = vmatpush2.bf16.msra.mxu0 %v2132
    %2188 = vmatprep.subr.bf16.mxu0 %v2131
    %2189 = vmatpush2.bf16.msra.mxu0 %v2130
    %2190 = vmatprep.subr.bf16.mxu0 %v2129
    %2191 = vmatpush2.bf16.msra.mxu0 %v2128
    %2192 = vmatprep.subr.bf16.mxu0 %v2127
    %2193 = vmatpush2.bf16.msra.mxu0 %v2126
    %2194 = vmatprep.subr.bf16.mxu0 %v2125
    %2195 = vmatpush2.bf16.msra.mxu0 %v2124
    %2196 = vmatprep.subr.bf16.mxu0 %v2123
    %2197 = vmatpush2.bf16.msra.mxu0 %v2122
    %2198 = vmatprep.subr.bf16.mxu0 %v2121
    %2199 = vmatpush2.bf16.msra.mxu0 %v2120
    %2200 = vmatprep.mubr.bf16.mxu0 %v1963
    %2201 = vmatmul.mubr.bf16.gmra.mxu0 %v1962
    %v2202 = vpop.f32.mrf.mxu0
    %v2203 = vadd.f32 %v2001, %v2202
    %v2204 = vpop.f32.mrf.mxu0
    %v2205 = vadd.f32 %v2005, %v2204
    %v2206 = vpop.f32.mrf.mxu0
    %v2207 = vadd.f32 %v2001, %v2206
    %v2208 = vpop.f32.mrf.mxu0
    %v2209 = vadd.f32 %v2005, %v2208
    %2210 = vdwg.mxu0
    %v2211 = vmax.f32 %v2203, 0.0
    %v2212 = vmax.f32 %v2205, 0.0
    %v2213 = vmax.f32 %v2207, 0.0
    %v2214 = vmax.f32 %v2209, 0.0
    %v2215 = vpack.c.bf16 %v2213, %v2211
    %v2216 = vpack.c.bf16 %v2214, %v2212
    %v2217 = vld [vmem:[#allocation12] sm:$0xff]
    %v2218 = vld [vmem:[#allocation12 + $0x8] sm:$0xff]
    %v2219 = vld [vmem:[#allocation12 + $0x10] sm:$0xff]
    %v2220 = vld [vmem:[#allocation12 + $0x18] sm:$0xff]
    %v2221 = vld [vmem:[#allocation12 + $0x20] sm:$0xff]
    %v2222 = vld [vmem:[#allocation12 + $0x28] sm:$0xff]
    %v2223 = vld [vmem:[#allocation12 + $0x30] sm:$0xff]
    %v2224 = vld [vmem:[#allocation12 + $0x38] sm:$0xff]
    %v2225 = vld [vmem:[#allocation12 + $0x40] sm:$0xff]
    %v2226 = vld [vmem:[#allocation12 + $0x48] sm:$0xff]
    %v2227 = vld [vmem:[#allocation12 + $0x50] sm:$0xff]
    %v2228 = vld [vmem:[#allocation12 + $0x58] sm:$0xff]
    %v2229 = vld [vmem:[#allocation12 + $0x60] sm:$0xff]
    %v2230 = vld [vmem:[#allocation12 + $0x68] sm:$0xff]
    %v2231 = vld [vmem:[#allocation12 + $0x70] sm:$0xff]
    %v2232 = vld [vmem:[#allocation12 + $0x78] sm:$0xff]
    %v2233 = vld [vmem:[#allocation12 + $0x80] sm:$0xff]
    %v2234 = vld [vmem:[#allocation12 + $0x88] sm:$0xff]
    %v2235 = vld [vmem:[#allocation12 + $0x90] sm:$0xff]
    %v2236 = vld [vmem:[#allocation12 + $0x98] sm:$0xff]
    %v2237 = vld [vmem:[#allocation12 + $0xa0] sm:$0xff]
    %v2238 = vld [vmem:[#allocation12 + $0xa8] sm:$0xff]
    %v2239 = vld [vmem:[#allocation12 + $0xb0] sm:$0xff]
    %v2240 = vld [vmem:[#allocation12 + $0xb8] sm:$0xff]
    %v2241 = vld [vmem:[#allocation12 + $0xc0] sm:$0xff]
    %v2242 = vld [vmem:[#allocation12 + $0xc8] sm:$0xff]
    %v2243 = vld [vmem:[#allocation12 + $0xd0] sm:$0xff]
    %v2244 = vld [vmem:[#allocation12 + $0xd8] sm:$0xff]
    %v2245 = vld [vmem:[#allocation12 + $0xe0] sm:$0xff]
    %v2246 = vld [vmem:[#allocation12 + $0xe8] sm:$0xff]
    %v2247 = vld [vmem:[#allocation12 + $0xf0] sm:$0xff]
    %v2248 = vld [vmem:[#allocation12 + $0xf8] sm:$0xff]
    %v2249 = vld [vmem:[%s16] sm:$0x3]
    %v2251 = vlaneseq
    %v2252 = vshrl.u32 %v2251, 7
    %v2253 = vsub.s32 0, %v2252
    %v2254 = vrot.slane %v2249, %v2253
    %v2255 = vlaneseq
    %v2256 = vshrl.u32 %v2255, 7
    %v2257 = vsub.s32 1, %v2256
    %v2258 = vrot.slane %v2249, %v2257
    %v2293 = vunpack.c.l.b16 %v2217
    %v2294 = vunpack.c.h.b16 %v2217
    %v2295 = vunpack.c.l.b16 %v2218
    %v2296 = vunpack.c.h.b16 %v2218
    %v2297 = vunpack.c.l.b16 %v2219
    %v2298 = vunpack.c.h.b16 %v2219
    %v2299 = vunpack.c.l.b16 %v2220
    %v2300 = vunpack.c.h.b16 %v2220
    %v2301 = vunpack.c.l.b16 %v2221
    %v2302 = vunpack.c.h.b16 %v2221
    %v2303 = vunpack.c.l.b16 %v2222
    %v2304 = vunpack.c.h.b16 %v2222
    %v2305 = vunpack.c.l.b16 %v2223
    %v2306 = vunpack.c.h.b16 %v2223
    %v2307 = vunpack.c.l.b16 %v2224
    %v2308 = vunpack.c.h.b16 %v2224
    %v2309 = vunpack.c.l.b16 %v2225
    %v2310 = vunpack.c.h.b16 %v2225
    %v2311 = vunpack.c.l.b16 %v2226
    %v2312 = vunpack.c.h.b16 %v2226
    %v2313 = vunpack.c.l.b16 %v2227
    %v2314 = vunpack.c.h.b16 %v2227
    %v2315 = vunpack.c.l.b16 %v2228
    %v2316 = vunpack.c.h.b16 %v2228
    %v2317 = vunpack.c.l.b16 %v2229
    %v2318 = vunpack.c.h.b16 %v2229
    %v2319 = vunpack.c.l.b16 %v2230
    %v2320 = vunpack.c.h.b16 %v2230
    %v2321 = vunpack.c.l.b16 %v2231
    %v2322 = vunpack.c.h.b16 %v2231
    %v2323 = vunpack.c.l.b16 %v2232
    %v2324 = vunpack.c.h.b16 %v2232
    %v2325 = vunpack.c.l.b16 %v2233
    %v2326 = vunpack.c.h.b16 %v2233
    %v2327 = vunpack.c.l.b16 %v2234
    %v2328 = vunpack.c.h.b16 %v2234
    %v2329 = vunpack.c.l.b16 %v2235
    %v2330 = vunpack.c.h.b16 %v2235
    %v2331 = vunpack.c.l.b16 %v2236
    %v2332 = vunpack.c.h.b16 %v2236
    %v2333 = vunpack.c.l.b16 %v2237
    %v2334 = vunpack.c.h.b16 %v2237
    %v2335 = vunpack.c.l.b16 %v2238
    %v2336 = vunpack.c.h.b16 %v2238
    %v2337 = vunpack.c.l.b16 %v2239
    %v2338 = vunpack.c.h.b16 %v2239
    %v2339 = vunpack.c.l.b16 %v2240
    %v2340 = vunpack.c.h.b16 %v2240
    %v2341 = vunpack.c.l.b16 %v2241
    %v2342 = vunpack.c.h.b16 %v2241
    %v2343 = vunpack.c.l.b16 %v2242
    %v2344 = vunpack.c.h.b16 %v2242
    %v2345 = vunpack.c.l.b16 %v2243
    %v2346 = vunpack.c.h.b16 %v2243
    %v2347 = vunpack.c.l.b16 %v2244
    %v2348 = vunpack.c.h.b16 %v2244
    %v2349 = vunpack.c.l.b16 %v2245
    %v2350 = vunpack.c.h.b16 %v2245
    %v2351 = vunpack.c.l.b16 %v2246
    %v2352 = vunpack.c.h.b16 %v2246
    %v2353 = vunpack.c.l.b16 %v2247
    %v2354 = vunpack.c.h.b16 %v2247
    %v2355 = vunpack.c.l.b16 %v2248
    %v2356 = vunpack.c.h.b16 %v2248
    %v2357 = vpack.c.b16 %v2295, %v2293
    %v2358 = vpack.c.b16 %v2296, %v2294
    %v2359 = vpack.c.b16 %v2299, %v2297
    %v2360 = vpack.c.b16 %v2300, %v2298
    %v2361 = vpack.c.b16 %v2303, %v2301
    %v2362 = vpack.c.b16 %v2304, %v2302
    %v2363 = vpack.c.b16 %v2307, %v2305
    %v2364 = vpack.c.b16 %v2308, %v2306
    %v2365 = vpack.c.b16 %v2311, %v2309
    %v2366 = vpack.c.b16 %v2312, %v2310
    %v2367 = vpack.c.b16 %v2315, %v2313
    %v2368 = vpack.c.b16 %v2316, %v2314
    %v2369 = vpack.c.b16 %v2319, %v2317
    %v2370 = vpack.c.b16 %v2320, %v2318
    %v2371 = vpack.c.b16 %v2323, %v2321
    %v2372 = vpack.c.b16 %v2324, %v2322
    %v2373 = vpack.c.b16 %v2327, %v2325
    %v2374 = vpack.c.b16 %v2328, %v2326
    %v2375 = vpack.c.b16 %v2331, %v2329
    %v2376 = vpack.c.b16 %v2332, %v2330
    %v2377 = vpack.c.b16 %v2335, %v2333
    %v2378 = vpack.c.b16 %v2336, %v2334
    %v2379 = vpack.c.b16 %v2339, %v2337
    %v2380 = vpack.c.b16 %v2340, %v2338
    %v2381 = vpack.c.b16 %v2343, %v2341
    %v2382 = vpack.c.b16 %v2344, %v2342
    %v2383 = vpack.c.b16 %v2347, %v2345
    %v2384 = vpack.c.b16 %v2348, %v2346
    %v2385 = vpack.c.b16 %v2351, %v2349
    %v2386 = vpack.c.b16 %v2352, %v2350
    %v2387 = vpack.c.b16 %v2355, %v2353
    %v2388 = vpack.c.b16 %v2356, %v2354
    %2421 = vmatprep.subr.bf16.mxu0 %v2372
    %2422 = vmatpush1.bf16.msra.mxu0 %v2371
    %2423 = vmatprep.subr.bf16.mxu0 %v2370
    %2424 = vmatpush1.bf16.msra.mxu0 %v2369
    %2425 = vmatprep.subr.bf16.mxu0 %v2368
    %2426 = vmatpush1.bf16.msra.mxu0 %v2367
    %2427 = vmatprep.subr.bf16.mxu0 %v2366
    %2428 = vmatpush1.bf16.msra.mxu0 %v2365
    %2429 = vmatprep.subr.bf16.mxu0 %v2364
    %2430 = vmatpush1.bf16.msra.mxu0 %v2363
    %2431 = vmatprep.subr.bf16.mxu0 %v2362
    %2432 = vmatpush1.bf16.msra.mxu0 %v2361
    %2433 = vmatprep.subr.bf16.mxu0 %v2360
    %2434 = vmatpush1.bf16.msra.mxu0 %v2359
    %2435 = vmatprep.subr.bf16.mxu0 %v2358
    %2436 = vmatpush1.bf16.msra.mxu0 %v2357
    %2437 = vmatprep.subr.bf16.mxu0 %v2388
    %2438 = vmatpush2.bf16.msra.mxu0 %v2387
    %2439 = vmatprep.subr.bf16.mxu0 %v2386
    %2440 = vmatpush2.bf16.msra.mxu0 %v2385
    %2441 = vmatprep.subr.bf16.mxu0 %v2384
    %2442 = vmatpush2.bf16.msra.mxu0 %v2383
    %2443 = vmatprep.subr.bf16.mxu0 %v2382
    %2444 = vmatpush2.bf16.msra.mxu0 %v2381
    %2445 = vmatprep.subr.bf16.mxu0 %v2380
    %2446 = vmatpush2.bf16.msra.mxu0 %v2379
    %2447 = vmatprep.subr.bf16.mxu0 %v2378
    %2448 = vmatpush2.bf16.msra.mxu0 %v2377
    %2449 = vmatprep.subr.bf16.mxu0 %v2376
    %2450 = vmatpush2.bf16.msra.mxu0 %v2375
    %2451 = vmatprep.subr.bf16.mxu0 %v2374
    %2452 = vmatpush2.bf16.msra.mxu0 %v2373
    %2453 = vmatprep.mubr.bf16.mxu0 %v2216
    %2454 = vmatmul.mubr.bf16.gmra.mxu0 %v2215
    %v2455 = vpop.f32.mrf.mxu0
    %v2456 = vadd.f32 %v2254, %v2455
    %v2457 = vpop.f32.mrf.mxu0
    %v2458 = vadd.f32 %v2258, %v2457
    %v2459 = vpop.f32.mrf.mxu0
    %v2460 = vadd.f32 %v2254, %v2459
    %v2461 = vpop.f32.mrf.mxu0
    %v2462 = vadd.f32 %v2258, %v2461
    %2463 = vdwg.mxu0
    %v2464 = vmax.f32 %v2456, 0.0
    %v2465 = vmax.f32 %v2458, 0.0
    %v2466 = vmax.f32 %v2460, 0.0
    %v2467 = vmax.f32 %v2462, 0.0
    %v2468 = vpack.c.bf16 %v2466, %v2464
    %v2469 = vpack.c.bf16 %v2467, %v2465
    %v2470 = vld [vmem:[%s17] sm:$0xf]
    %v2471 = vld [vmem:[%s17 + $0x4] sm:$0xf]
    %v2472 = vld [vmem:[%s17 + $0x8] sm:$0xf]
    %v2473 = vld [vmem:[%s17 + $0xc] sm:$0xf]
    %v2474 = vld [vmem:[%s17 + $0x10] sm:$0xf]
    %v2475 = vld [vmem:[%s17 + $0x14] sm:$0xf]
    %v2476 = vld [vmem:[%s17 + $0x18] sm:$0xf]
    %v2477 = vld [vmem:[%s17 + $0x1c] sm:$0xf]
    %v2478 = vld [vmem:[%s17 + $0x20] sm:$0xf]
    %v2479 = vld [vmem:[%s17 + $0x24] sm:$0xf]
    %v2480 = vld [vmem:[%s17 + $0x28] sm:$0xf]
    %v2481 = vld [vmem:[%s17 + $0x2c] sm:$0xf]
    %v2482 = vld [vmem:[%s17 + $0x30] sm:$0xf]
    %v2483 = vld [vmem:[%s17 + $0x34] sm:$0xf]
    %v2484 = vld [vmem:[%s17 + $0x38] sm:$0xf]
    %v2485 = vld [vmem:[%s17 + $0x3c] sm:$0xf]
    %v2486 = vld [vmem:[%s17 + $0x40] sm:$0xf]
    %v2487 = vld [vmem:[%s17 + $0x44] sm:$0xf]
    %v2488 = vld [vmem:[%s17 + $0x48] sm:$0xf]
    %v2489 = vld [vmem:[%s17 + $0x4c] sm:$0xf]
    %v2490 = vld [vmem:[%s17 + $0x50] sm:$0xf]
    %v2491 = vld [vmem:[%s17 + $0x54] sm:$0xf]
    %v2492 = vld [vmem:[%s17 + $0x58] sm:$0xf]
    %v2493 = vld [vmem:[%s17 + $0x5c] sm:$0xf]
    %v2494 = vld [vmem:[%s17 + $0x60] sm:$0xf]
    %v2495 = vld [vmem:[%s17 + $0x64] sm:$0xf]
    %v2496 = vld [vmem:[%s17 + $0x68] sm:$0xf]
    %v2497 = vld [vmem:[%s17 + $0x6c] sm:$0xf]
    %v2498 = vld [vmem:[%s17 + $0x70] sm:$0xf]
    %v2499 = vld [vmem:[%s17 + $0x74] sm:$0xf]
    %v2500 = vld [vmem:[%s17 + $0x78] sm:$0xf]
    %v2501 = vld [vmem:[%s17 + $0x7c] sm:$0xf]
    %v2502 = vld [vmem:[%s18] sm:$0x1]
    %v2504 = vlaneseq
    %v2505 = vshrl.u32 %v2504, 7
    %v2506 = vsub.s32 0, %v2505
    %v2507 = vrot.slane %v2502, %v2506
    %v2541 = vunpack.c.l.b16 %v2470
    %v2542 = vunpack.c.l.b16 %v2471
    %v2543 = vunpack.c.l.b16 %v2472
    %v2544 = vunpack.c.l.b16 %v2473
    %v2545 = vunpack.c.l.b16 %v2474
    %v2546 = vunpack.c.l.b16 %v2475
    %v2547 = vunpack.c.l.b16 %v2476
    %v2548 = vunpack.c.l.b16 %v2477
    %v2549 = vunpack.c.l.b16 %v2478
    %v2550 = vunpack.c.l.b16 %v2479
    %v2551 = vunpack.c.l.b16 %v2480
    %v2552 = vunpack.c.l.b16 %v2481
    %v2553 = vunpack.c.l.b16 %v2482
    %v2554 = vunpack.c.l.b16 %v2483
    %v2555 = vunpack.c.l.b16 %v2484
    %v2556 = vunpack.c.l.b16 %v2485
    %v2557 = vunpack.c.l.b16 %v2486
    %v2558 = vunpack.c.l.b16 %v2487
    %v2559 = vunpack.c.l.b16 %v2488
    %v2560 = vunpack.c.l.b16 %v2489
    %v2561 = vunpack.c.l.b16 %v2490
    %v2562 = vunpack.c.l.b16 %v2491
    %v2563 = vunpack.c.l.b16 %v2492
    %v2564 = vunpack.c.l.b16 %v2493
    %v2565 = vunpack.c.l.b16 %v2494
    %v2566 = vunpack.c.l.b16 %v2495
    %v2567 = vunpack.c.l.b16 %v2496
    %v2568 = vunpack.c.l.b16 %v2497
    %v2569 = vunpack.c.l.b16 %v2498
    %v2570 = vunpack.c.l.b16 %v2499
    %v2571 = vunpack.c.l.b16 %v2500
    %v2572 = vunpack.c.l.b16 %v2501
    %v2573 = vpack.c.b16 %v2542, %v2541
    %v2574 = vpack.c.b16 %v2544, %v2543
    %v2575 = vpack.c.b16 %v2546, %v2545
    %v2576 = vpack.c.b16 %v2548, %v2547
    %v2577 = vpack.c.b16 %v2550, %v2549
    %v2578 = vpack.c.b16 %v2552, %v2551
    %v2579 = vpack.c.b16 %v2554, %v2553
    %v2580 = vpack.c.b16 %v2556, %v2555
    %v2581 = vpack.c.b16 %v2558, %v2557
    %v2582 = vpack.c.b16 %v2560, %v2559
    %v2583 = vpack.c.b16 %v2562, %v2561
    %v2584 = vpack.c.b16 %v2564, %v2563
    %v2585 = vpack.c.b16 %v2566, %v2565
    %v2586 = vpack.c.b16 %v2568, %v2567
    %v2587 = vpack.c.b16 %v2570, %v2569
    %v2588 = vpack.c.b16 %v2572, %v2571
    %2605 = vmatprep.subr.bf16.mxu0 0
    %2606 = vmatpush1.bf16.msra.mxu0 %v2580
    %2607 = vmatprep.subr.bf16.mxu0 0
    %2608 = vmatpush1.bf16.msra.mxu0 %v2579
    %2609 = vmatprep.subr.bf16.mxu0 0
    %2610 = vmatpush1.bf16.msra.mxu0 %v2578
    %2611 = vmatprep.subr.bf16.mxu0 0
    %2612 = vmatpush1.bf16.msra.mxu0 %v2577
    %2613 = vmatprep.subr.bf16.mxu0 0
    %2614 = vmatpush1.bf16.msra.mxu0 %v2576
    %2615 = vmatprep.subr.bf16.mxu0 0
    %2616 = vmatpush1.bf16.msra.mxu0 %v2575
    %2617 = vmatprep.subr.bf16.mxu0 0
    %2618 = vmatpush1.bf16.msra.mxu0 %v2574
    %2619 = vmatprep.subr.bf16.mxu0 0
    %2620 = vmatpush1.bf16.msra.mxu0 %v2573
    %2621 = vmatprep.subr.bf16.mxu0 0
    %2622 = vmatpush2.bf16.msra.mxu0 %v2588
    %2623 = vmatprep.subr.bf16.mxu0 0
    %2624 = vmatpush2.bf16.msra.mxu0 %v2587
    %2625 = vmatprep.subr.bf16.mxu0 0
    %2626 = vmatpush2.bf16.msra.mxu0 %v2586
    %2627 = vmatprep.subr.bf16.mxu0 0
    %2628 = vmatpush2.bf16.msra.mxu0 %v2585
    %2629 = vmatprep.subr.bf16.mxu0 0
    %2630 = vmatpush2.bf16.msra.mxu0 %v2584
    %2631 = vmatprep.subr.bf16.mxu0 0
    %2632 = vmatpush2.bf16.msra.mxu0 %v2583
    %2633 = vmatprep.subr.bf16.mxu0 0
    %2634 = vmatpush2.bf16.msra.mxu0 %v2582
    %2635 = vmatprep.subr.bf16.mxu0 0
    %2636 = vmatpush2.bf16.msra.mxu0 %v2581
    %2637 = vmatprep.mubr.bf16.mxu0 %v2469
    %2638 = vmatmul.mubr.bf16.gmra.mxu0 %v2468
    %v2639 = vpop.f32.mrf.mxu0
    %v2640 = vadd.f32 %v2507, %v2639
    %v2641 = vpop.f32.mrf.mxu0
    %v2642 = vpop.f32.mrf.mxu0
    %v2643 = vadd.f32 %v2507, %v2642
    %v2644 = vpop.f32.mrf.mxu0
    %2645 = vdwg.mxu0
    %vm2646 = vcmask 31744
    %2647 = vst.msk [vmem:[%s19] sm:$0xff] %vm2646, %v2640
    %2648 = vst.msk [vmem:[%s19 + $0x8] sm:$0xff] %vm2646, %v2643
    // Predicated region
    $region106: #{tpu_custom_call.1} parent=1 // pred_check
      _
    $region107: #{tpu_custom_call.1} parent=1 // pred_check_branch
      %2650 = sbr.rel (0) target = $region109
    $region108: #{tpu_custom_call.1} parent=1 // pred_region
      _
    $region109: #{tpu_custom_call.1} parent=1 // pred_fallthru
      _
    // Predicated region
    $region110: #{tpu_custom_call.1} parent=1 // pred_check
      _
    $region111: #{tpu_custom_call.1} parent=1 // pred_check_branch
      %2652 = sbr.rel (0) target = $region113
    $region112: #{tpu_custom_call.1} parent=1 // pred_region
      _
    $region113: #{tpu_custom_call.1} parent=1 // pred_fallthru
      _
    %2653 = vsyncpa [#allocation3], 1
    %2654 = vsyncpa [#allocation5], 1
    %2655 = vsyncpa [#allocation8], 1
    %2656 = vsyncpa [#allocation11], 1

// kernel: tpu_custom_call.1
$region0: #{tpu_custom_call.1}
  #allocation0 [shape = 'u32[]', space=smem, size = 0x4, offset = 0x4, fixed_abs, tag = 'smem constant byte address 0x4 - core index']
  #allocation1 [shape = 'u32[144,128]{1,0:T(1,128)}', space=vmem, size = 0x12000, scoped, tag = 'internal scratch']
  %s0 = inlined_call_operand.vmem [shape: f32[16,3], index: 0, kind: input, shape index: {}]
  %s1 = inlined_call_operand.vmem [shape: f32[3,768], index: 1, kind: input, shape index: {}]
  %s2 = inlined_call_operand.vmem [shape: f32[1,512], index: 2, kind: input, shape index: {}]
  %s3 = inlined_call_operand.hbm [shape: bf16[512,256], index: 3, kind: input, shape index: {}]
  %s4 = inlined_call_operand.vmem [shape: f32[1,256], index: 4, kind: input, shape index: {}]
  %s5 = inlined_call_operand.hbm [shape: bf16[256,256], index: 5, kind: input, shape index: {}]
  %s6 = inlined_call_operand.vmem [shape: f32[1,256], index: 6, kind: input, shape index: {}]
  %s7 = inlined_call_operand.hbm [shape: bf16[256,256], index: 7, kind: input, shape index: {}]
  %s8 = inlined_call_operand.vmem [shape: f32[1,256], index: 8, kind: input, shape index: {}]
  %s9 = inlined_call_operand.hbm [shape: bf16[256,256], index: 9, kind: input, shape index: {}]
  %s10 = inlined_call_operand.vmem [shape: f32[1,256], index: 10, kind: input, shape index: {}]
  %s11 = inlined_call_operand.hbm [shape: bf16[256,256], index: 11, kind: input, shape index: {}]
  %s12 = inlined_call_operand.vmem [shape: f32[1,256], index: 12, kind: input, shape index: {}]
  %s13 = inlined_call_operand.hbm [shape: bf16[256,256], index: 13, kind: input, shape index: {}]
  %s14 = inlined_call_operand.vmem [shape: f32[1,256], index: 14, kind: input, shape index: {}]
  %s15 = inlined_call_operand.hbm [shape: bf16[256,256], index: 15, kind: input, shape index: {}]
  %s16 = inlined_call_operand.vmem [shape: f32[1,256], index: 16, kind: input, shape index: {}]
  %s17 = inlined_call_operand.vmem [shape: bf16[256,4], index: 17, kind: input, shape index: {}]
  %s18 = inlined_call_operand.vmem [shape: f32[1,4], index: 18, kind: input, shape index: {}]
  %s19 = inlined_call_operand.vmem [shape: f32[16,4], index: 19, kind: output, shape index: {}]
  %s20 = sld [smem:[#allocation0]]
  $region114: #{tpu_custom_call.1} parent=0
    _
  %s22 = ssub.s32 1, %s20
  %s23 = scalar_select 0, %s22, %s20
  $region1: #{tpu_custom_call.1} parent=0
    #allocation2 [shape = 'u8[262144]{0}', space=vmem, size = 0x40000, scoped, tag = 'input window, operand 3, single buffered']
    #allocation3 [shape = 's32[1]{0}', space=sflag, size = 0x4, scoped, tag = 'scoped memory for tpu_custom_call.1']
    #allocation4 [shape = 'u8[131072]{0}', space=vmem, size = 0x20000, scoped, tag = 'input window, operand 5, single buffered']
    #allocation5 [shape = 's32[1]{0}', space=sflag, size = 0x4, scoped, tag = 'scoped memory for tpu_custom_call.1']
    #allocation6 [shape = 'u8[131072]{0}', space=vmem, size = 0x20000, scoped, tag = 'input window, operand 7, single buffered']
    #allocation7 [shape = 'u8[131072]{0}', space=vmem, size = 0x20000, scoped, tag = 'input window, operand 9, single buffered']
    #allocation8 [shape = 's32[1]{0}', space=sflag, size = 0x4, scoped, tag = 'scoped memory for tpu_custom_call.1']
    #allocation9 [shape = 'u8[131072]{0}', space=vmem, size = 0x20000, scoped, tag = 'input window, operand 11, single buffered']
    #allocation10 [shape = 'u8[131072]{0}', space=vmem, size = 0x20000, scoped, tag = 'input window, operand 13, single buffered']
    #allocation11 [shape = 's32[1]{0}', space=sflag, size = 0x4, scoped, tag = 'scoped memory for tpu_custom_call.1']
    #allocation12 [shape = 'u8[131072]{0}', space=vmem, size = 0x20000, scoped, tag = 'input window, operand 15, single buffered']
    %24 = vsyncpa [#allocation3], 0
    %25 = vsyncpa [#allocation5], 0
    %26 = vsyncpa [#allocation8], 0
    %27 = vsyncpa [#allocation11], 0
    // Predicated region
    $region2: #{tpu_custom_call.1} parent=1 // pred_check
      _
    $region3: #{tpu_custom_call.1} parent=1 // pred_check_branch
      %29 = sbr.rel (0) target = $region5
    $region4: #{tpu_custom_call.1} parent=1 // pred_region
      _
    $region5: #{tpu_custom_call.1} parent=1 // pred_fallthru
      _
    // Predicated region
    $region6: #{tpu_custom_call.1} parent=1 // pred_check
      _
    $region7: #{tpu_custom_call.1} parent=1 // pred_check_branch
      %31 = sbr.rel (0) target = $region9
    $region8: #{tpu_custom_call.1} parent=1 // pred_region
      _
    $region9: #{tpu_custom_call.1} parent=1 // pred_fallthru
      _
    // Predicated region
    $region10: #{tpu_custom_call.1} parent=1 // pred_check
      _
    $region11: #{tpu_custom_call.1} parent=1 // pred_check_branch
      %33 = sbr.rel (0) target = $region13
    $region12: #{tpu_custom_call.1} parent=1 // pred_region
      _
    $region13: #{tpu_custom_call.1} parent=1 // pred_fallthru
      _
    // Predicated region
    $region14: #{tpu_custom_call.1} parent=1 // pred_check
      _
    $region15: #{tpu_custom_call.1} parent=1 // pred_check_branch
      %35 = sbr.rel (0) target = $region17
    $region16: #{tpu_custom_call.1} parent=1 // pred_region
      %s37 = ssub.s32 8192, 8192
      %38 = vsyncadd [#allocation3], %s37
      %s39 = sshll.u32 [#allocation2], 4
      %s40 = int_to_ptr.vmem [resolvable:$true] %s39
      %45 = dma.hbm_to_vmem [thread:$0]  %s3, 8192, %s40, [#allocation3], 128, 128, 8
    $region17: #{tpu_custom_call.1} parent=1 // pred_fallthru
      _
    // Predicated region
    $region18: #{tpu_custom_call.1} parent=1 // pred_check
      _
    $region19: #{tpu_custom_call.1} parent=1 // pred_check_branch
      %47 = sbr.rel (0) target = $region21
    $region20: #{tpu_custom_call.1} parent=1 // pred_region
      _
    $region21: #{tpu_custom_call.1} parent=1 // pred_fallthru
      _
    // Predicated region
    $region22: #{tpu_custom_call.1} parent=1 // pred_check
      _
    $region23: #{tpu_custom_call.1} parent=1 // pred_check_branch
      %49 = sbr.rel (0) target = $region25
    $region24: #{tpu_custom_call.1} parent=1 // pred_region
      %s51 = ssub.s32 4096, 4096
      %52 = vsyncadd [#allocation5], %s51
      %s53 = sshll.u32 [#allocation4], 4
      %s54 = int_to_ptr.vmem [resolvable:$true] %s53
      %59 = dma.hbm_to_vmem [thread:$0]  %s5, 4096, %s54, [#allocation5], 128, 128, 8
    $region25: #{tpu_custom_call.1} parent=1 // pred_fallthru
      _
    // Predicated region
    $region26: #{tpu_custom_call.1} parent=1 // pred_check
      _
    $region27: #{tpu_custom_call.1} parent=1 // pred_check_branch
      %61 = sbr.rel (0) target = $region29
    $region28: #{tpu_custom_call.1} parent=1 // pred_region
      _
    $region29: #{tpu_custom_call.1} parent=1 // pred_fallthru
      _
    // Predicated region
    $region30: #{tpu_custom_call.1} parent=1 // pred_check
      _
    $region31: #{tpu_custom_call.1} parent=1 // pred_check_branch
      %63 = sbr.rel (0) target = $region33
    $region32: #{tpu_custom_call.1} parent=1 // pred_region
      %s65 = ssub.s32 4096, 4096
      %66 = vsyncadd [#allocation5], %s65
      %s67 = sshll.u32 [#allocation6], 4
      %s68 = int_to_ptr.vmem [resolvable:$true] %s67
      %73 = dma.hbm_to_vmem [thread:$0]  %s7, 4096, %s68, [#allocation5], 128, 128, 8
    $region33: #{tpu_custom_call.1} parent=1 // pred_fallthru
      _
    // Predicated region
    $region34: #{tpu_custom_call.1} parent=1 // pred_check
      _
    $region35: #{tpu_custom_call.1} parent=1 // pred_check_branch
      %75 = sbr.rel (0) target = $region37
    $region36: #{tpu_custom_call.1} parent=1 // pred_region
      _
    $region37: #{tpu_custom_call.1} parent=1 // pred_fallthru
      _
    // Predicated region
    $region38: #{tpu_custom_call.1} parent=1 // pred_check
      _
    $region39: #{tpu_custom_call.1} parent=1 // pred_check_branch
      %77 = sbr.rel (0) target = $region41
    $region40: #{tpu_custom_call.1} parent=1 // pred_region
      %s79 = ssub.s32 4096, 4096
      %80 = vsyncadd [#allocation8], %s79
      %s81 = sshll.u32 [#allocation7], 4
      %s82 = int_to_ptr.vmem [resolvable:$true] %s81
      %87 = dma.hbm_to_vmem [thread:$0]  %s9, 4096, %s82, [#allocation8], 128, 128, 8
    $region41: #{tpu_custom_call.1} parent=1 // pred_fallthru
      _
    // Predicated region
    $region42: #{tpu_custom_call.1} parent=1 // pred_check
      _
    $region43: #{tpu_custom_call.1} parent=1 // pred_check_branch
      %89 = sbr.rel (0) target = $region45
    $region44: #{tpu_custom_call.1} parent=1 // pred_region
      _
    $region45: #{tpu_custom_call.1} parent=1 // pred_fallthru
      _
    // Predicated region
    $region46: #{tpu_custom_call.1} parent=1 // pred_check
      _
    $region47: #{tpu_custom_call.1} parent=1 // pred_check_branch
      %91 = sbr.rel (0) target = $region49
    $region48: #{tpu_custom_call.1} parent=1 // pred_region
      %s93 = ssub.s32 4096, 4096
      %94 = vsyncadd [#allocation8], %s93
      %s95 = sshll.u32 [#allocation9], 4
      %s96 = int_to_ptr.vmem [resolvable:$true] %s95
      %101 = dma.hbm_to_vmem [thread:$0]  %s11, 4096, %s96, [#allocation8], 128, 128, 8
    $region49: #{tpu_custom_call.1} parent=1 // pred_fallthru
      _
    // Predicated region
    $region50: #{tpu_custom_call.1} parent=1 // pred_check
      _
    $region51: #{tpu_custom_call.1} parent=1 // pred_check_branch
      %103 = sbr.rel (0) target = $region53
    $region52: #{tpu_custom_call.1} parent=1 // pred_region
      _
    $region53: #{tpu_custom_call.1} parent=1 // pred_fallthru
      _
    // Predicated region
    $region54: #{tpu_custom_call.1} parent=1 // pred_check
      _
    $region55: #{tpu_custom_call.1} parent=1 // pred_check_branch
      %105 = sbr.rel (0) target = $region57
    $region56: #{tpu_custom_call.1} parent=1 // pred_region
      %s107 = ssub.s32 4096, 4096
      %108 = vsyncadd [#allocation11], %s107
      %s109 = sshll.u32 [#allocation10], 4
      %s110 = int_to_ptr.vmem [resolvable:$true] %s109
      %115 = dma.hbm_to_vmem [thread:$0]  %s13, 4096, %s110, [#allocation11], 128, 128, 8
    $region57: #{tpu_custom_call.1} parent=1 // pred_fallthru
      _
    // Predicated region
    $region58: #{tpu_custom_call.1} parent=1 // pred_check
      _
    $region59: #{tpu_custom_call.1} parent=1 // pred_check_branch
      %117 = sbr.rel (0) target = $region61
    $region60: #{tpu_custom_call.1} parent=1 // pred_region
      _
    $region61: #{tpu_custom_call.1} parent=1 // pred_fallthru
      _
    // Predicated region
    $region62: #{tpu_custom_call.1} parent=1 // pred_check
      _
    $region63: #{tpu_custom_call.1} parent=1 // pred_check_branch
      %119 = sbr.rel (0) target = $region65
    $region64: #{tpu_custom_call.1} parent=1 // pred_region
      %s121 = ssub.s32 4096, 4096
      %122 = vsyncadd [#allocation11], %s121
      %s123 = sshll.u32 [#allocation12], 4
      %s124 = int_to_ptr.vmem [resolvable:$true] %s123
      %129 = dma.hbm_to_vmem [thread:$0]  %s15, 4096, %s124, [#allocation11], 128, 128, 8
    $region65: #{tpu_custom_call.1} parent=1 // pred_fallthru
      _
    // Predicated region
    $region66: #{tpu_custom_call.1} parent=1 // pred_check
      _
    $region67: #{tpu_custom_call.1} parent=1 // pred_check_branch
      %131 = sbr.rel (0) target = $region69
    $region68: #{tpu_custom_call.1} parent=1 // pred_region
      _
    $region69: #{tpu_custom_call.1} parent=1 // pred_fallthru
      _
    // Predicated region
    $region70: #{tpu_custom_call.1} parent=1 // pred_check
      _
    $region71: #{tpu_custom_call.1} parent=1 // pred_check_branch
      %133 = sbr.rel (0) target = $region73
    $region72: #{tpu_custom_call.1} parent=1 // pred_region
      _
    $region73: #{tpu_custom_call.1} parent=1 // pred_fallthru
      _
    // Predicated region
    $region74: #{tpu_custom_call.1} parent=1 // pred_check
      _
    $region75: #{tpu_custom_call.1} parent=1 // pred_check_branch
      %135 = sbr.rel (0) target = $region77
    $region76: #{tpu_custom_call.1} parent=1 // pred_region
      _
    $region77: #{tpu_custom_call.1} parent=1 // pred_fallthru
      _
    // Predicated region
    $region78: #{tpu_custom_call.1} parent=1 // pred_check
      _
    $region79: #{tpu_custom_call.1} parent=1 // pred_check_branch
      %137 = sbr.rel (0) target = $region81
    $region80: #{tpu_custom_call.1} parent=1 // pred_region
      %138 = dma.done [#allocation3], 8192
    $region81: #{tpu_custom_call.1} parent=1 // pred_fallthru
      _
    // Predicated region
    $region82: #{tpu_custom_call.1} parent=1 // pred_check
      _
    $region83: #{tpu_custom_call.1} parent=1 // pred_check_branch
      %140 = sbr.rel (0) target = $region85
    $region84: #{tpu_custom_call.1} parent=1 // pred_region
      %141 = dma.done [#allocation5], 4096
    $region85: #{tpu_custom_call.1} parent=1 // pred_fallthru
      _
    // Predicated region
    $region86: #{tpu_custom_call.1} parent=1 // pred_check
      _
    $region87: #{tpu_custom_call.1} parent=1 // pred_check_branch
      %143 = sbr.rel (0) target = $region89
    $region88: #{tpu_custom_call.1} parent=1 // pred_region
      %144 = dma.done [#allocation5], 4096
    $region89: #{tpu_custom_call.1} parent=1 // pred_fallthru
      _
    // Predicated region
    $region90: #{tpu_custom_call.1} parent=1 // pred_check
      _
    $region91: #{tpu_custom_call.1} parent=1 // pred_check_branch
      %146 = sbr.rel (0) target = $region93
    $region92: #{tpu_custom_call.1} parent=1 // pred_region
      %147 = dma.done [#allocation8], 4096
    $region93: #{tpu_custom_call.1} parent=1 // pred_fallthru
      _
    // Predicated region
    $region94: #{tpu_custom_call.1} parent=1 // pred_check
      _
    $region95: #{tpu_custom_call.1} parent=1 // pred_check_branch
      %149 = sbr.rel (0) target = $region97
    $region96: #{tpu_custom_call.1} parent=1 // pred_region
      %150 = dma.done [#allocation8], 4096
    $region97: #{tpu_custom_call.1} parent=1 // pred_fallthru
      _
    // Predicated region
    $region98: #{tpu_custom_call.1} parent=1 // pred_check
      _
    $region99: #{tpu_custom_call.1} parent=1 // pred_check_branch
      %152 = sbr.rel (0) target = $region101
    $region100: #{tpu_custom_call.1} parent=1 // pred_region
      %153 = dma.done [#allocation11], 4096
    $region101: #{tpu_custom_call.1} parent=1 // pred_fallthru
      _
    // Predicated region
    $region102: #{tpu_custom_call.1} parent=1 // pred_check
      _
    $region103: #{tpu_custom_call.1} parent=1 // pred_check_branch
      %155 = sbr.rel (0) target = $region105
    $region104: #{tpu_custom_call.1} parent=1 // pred_region
      %156 = dma.done [#allocation11], 4096
    $region105: #{tpu_custom_call.1} parent=1 // pred_fallthru
      _
    %v158 = vld [vmem:[%s0] sm:$0xff]
    %v159 = vld [vmem:[%s0 + $0x8] sm:$0xff]
    %v160 = vld [vmem:[%s1] sm:$0x77]
    %v161 = vld [vmem:[%s1 + $0x8] sm:$0x77]
    %v162 = vld [vmem:[%s1 + $0x10] sm:$0x77]
    %164 = vset.pattern.permute.xlu0 0
    %165 = vperm.xlu0 %164, %v158
    %v166 = vpop.permute.xlu0 %165
    %169 = vset.pattern.permute.xlu0 0
    %170 = vperm.xlu0 %169, %v159
    %v171 = vpop.permute.xlu0 %170
    %v176 = vlaneseq
    %v177 = vshrl.u32 %v176, 7
    %v178 = vsub.s32 0, %v177
    %v179 = vrot.slane %v160, %v178
    %v180 = vlaneseq
    %v181 = vshrl.u32 %v180, 7
    %v182 = vsub.s32 4, %v181
    %v183 = vrot.slane %v160, %v182
    %v184 = vlaneseq
    %v185 = vshrl.u32 %v184, 7
    %v186 = vsub.s32 0, %v185
    %v187 = vrot.slane %v161, %v186
    %v188 = vlaneseq
    %v189 = vshrl.u32 %v188, 7
    %v190 = vsub.s32 4, %v189
    %v191 = vrot.slane %v161, %v190
    %v192 = vlaneseq
    %v193 = vshrl.u32 %v192, 7
    %v194 = vsub.s32 0, %v193
    %v195 = vrot.slane %v162, %v194
    %v196 = vlaneseq
    %v197 = vshrl.u32 %v196, 7
    %v198 = vsub.s32 4, %v197
    %v199 = vrot.slane %v162, %v198
    %v206 = vlaneseq
    %v207 = vshrl.u32 %v206, 7
    %v208 = vsub.s32 0, %v207
    %v209 = vrot.slane %v179, %v208
    %v210 = vlaneseq
    %v211 = vshrl.u32 %v210, 7
    %v212 = vsub.s32 0, %v211
    %v213 = vrot.slane %v183, %v212
    %v214 = vlaneseq
    %v215 = vshrl.u32 %v214, 7
    %v216 = vsub.s32 0, %v215
    %v217 = vrot.slane %v187, %v216
    %v218 = vlaneseq
    %v219 = vshrl.u32 %v218, 7
    %v220 = vsub.s32 0, %v219
    %v221 = vrot.slane %v191, %v220
    %v222 = vlaneseq
    %v223 = vshrl.u32 %v222, 7
    %v224 = vsub.s32 0, %v223
    %v225 = vrot.slane %v195, %v224
    %v226 = vlaneseq
    %v227 = vshrl.u32 %v226, 7
    %v228 = vsub.s32 0, %v227
    %v229 = vrot.slane %v199, %v228
    %v230 = vmul.f32 %v166, %v209
    %v231 = vmul.f32 %v166, %v213
    %v232 = vmul.f32 %v166, %v217
    %v233 = vmul.f32 %v166, %v221
    %v234 = vmul.f32 %v166, %v225
    %v235 = vmul.f32 %v166, %v229
    %v236 = vmul.f32 %v171, %v209
    %v237 = vmul.f32 %v171, %v213
    %v238 = vmul.f32 %v171, %v217
    %v239 = vmul.f32 %v171, %v221
    %v240 = vmul.f32 %v171, %v225
    %v241 = vmul.f32 %v171, %v229
    %242 = vset.pattern.permute.xlu0 1
    %243 = vperm.xlu0 %242, %v158
    %v244 = vpop.permute.xlu0 %243
    %246 = vset.pattern.permute.xlu0 1
    %247 = vperm.xlu0 %246, %v159
    %v248 = vpop.permute.xlu0 %247
    %v250 = vlaneseq
    %v251 = vshrl.u32 %v250, 7
    %v252 = vsub.s32 1, %v251
    %v253 = vrot.slane %v160, %v252
    %v254 = vlaneseq
    %v255 = vshrl.u32 %v254, 7
    %v256 = vsub.s32 5, %v255
    %v257 = vrot.slane %v160, %v256
    %v258 = vlaneseq
    %v259 = vshrl.u32 %v258, 7
    %v260 = vsub.s32 1, %v259
    %v261 = vrot.slane %v161, %v260
    %v262 = vlaneseq
    %v263 = vshrl.u32 %v262, 7
    %v264 = vsub.s32 5, %v263
    %v265 = vrot.slane %v161, %v264
    %v266 = vlaneseq
    %v267 = vshrl.u32 %v266, 7
    %v268 = vsub.s32 1, %v267
    %v269 = vrot.slane %v162, %v268
    %v270 = vlaneseq
    %v271 = vshrl.u32 %v270, 7
    %v272 = vsub.s32 5, %v271
    %v273 = vrot.slane %v162, %v272
    %v280 = vlaneseq
    %v281 = vshrl.u32 %v280, 7
    %v282 = vsub.s32 1, %v281
    %v283 = vrot.slane %v253, %v282
    %v284 = vlaneseq
    %v285 = vshrl.u32 %v284, 7
    %v286 = vsub.s32 1, %v285
    %v287 = vrot.slane %v257, %v286
    %v288 = vlaneseq
    %v289 = vshrl.u32 %v288, 7
    %v290 = vsub.s32 1, %v289
    %v291 = vrot.slane %v261, %v290
    %v292 = vlaneseq
    %v293 = vshrl.u32 %v292, 7
    %v294 = vsub.s32 1, %v293
    %v295 = vrot.slane %v265, %v294
    %v296 = vlaneseq
    %v297 = vshrl.u32 %v296, 7
    %v298 = vsub.s32 1, %v297
    %v299 = vrot.slane %v269, %v298
    %v300 = vlaneseq
    %v301 = vshrl.u32 %v300, 7
    %v302 = vsub.s32 1, %v301
    %v303 = vrot.slane %v273, %v302
    %v304 = vmul.f32 %v244, %v283
    %v305 = vmul.f32 %v244, %v287
    %v306 = vmul.f32 %v244, %v291
    %v307 = vmul.f32 %v244, %v295
    %v308 = vmul.f32 %v244, %v299
    %v309 = vmul.f32 %v244, %v303
    %v310 = vmul.f32 %v248, %v283
    %v311 = vmul.f32 %v248, %v287
    %v312 = vmul.f32 %v248, %v291
    %v313 = vmul.f32 %v248, %v295
    %v314 = vmul.f32 %v248, %v299
    %v315 = vmul.f32 %v248, %v303
    %v316 = vadd.f32 %v230, %v304
    %v317 = vadd.f32 %v231, %v305
    %v318 = vadd.f32 %v232, %v306
    %v319 = vadd.f32 %v233, %v307
    %v320 = vadd.f32 %v234, %v308
    %v321 = vadd.f32 %v235, %v309
    %v322 = vadd.f32 %v236, %v310
    %v323 = vadd.f32 %v237, %v311
    %v324 = vadd.f32 %v238, %v312
    %v325 = vadd.f32 %v239, %v313
    %v326 = vadd.f32 %v240, %v314
    %v327 = vadd.f32 %v241, %v315
    %328 = vset.pattern.permute.xlu0 2
    %329 = vperm.xlu0 %328, %v158
    %v330 = vpop.permute.xlu0 %329
    %332 = vset.pattern.permute.xlu0 2
    %333 = vperm.xlu0 %332, %v159
    %v334 = vpop.permute.xlu0 %333
    %v336 = vlaneseq
    %v337 = vshrl.u32 %v336, 7
    %v338 = vsub.s32 2, %v337
    %v339 = vrot.slane %v160, %v338
    %v340 = vlaneseq
    %v341 = vshrl.u32 %v340, 7
    %v342 = vsub.s32 6, %v341
    %v343 = vrot.slane %v160, %v342
    %v344 = vlaneseq
    %v345 = vshrl.u32 %v344, 7
    %v346 = vsub.s32 2, %v345
    %v347 = vrot.slane %v161, %v346
    %v348 = vlaneseq
    %v349 = vshrl.u32 %v348, 7
    %v350 = vsub.s32 6, %v349
    %v351 = vrot.slane %v161, %v350
    %v352 = vlaneseq
    %v353 = vshrl.u32 %v352, 7
    %v354 = vsub.s32 2, %v353
    %v355 = vrot.slane %v162, %v354
    %v356 = vlaneseq
    %v357 = vshrl.u32 %v356, 7
    %v358 = vsub.s32 6, %v357
    %v359 = vrot.slane %v162, %v358
    %v366 = vlaneseq
    %v367 = vshrl.u32 %v366, 7
    %v368 = vsub.s32 2, %v367
    %v369 = vrot.slane %v339, %v368
    %v370 = vlaneseq
    %v371 = vshrl.u32 %v370, 7
    %v372 = vsub.s32 2, %v371
    %v373 = vrot.slane %v343, %v372
    %v374 = vlaneseq
    %v375 = vshrl.u32 %v374, 7
    %v376 = vsub.s32 2, %v375
    %v377 = vrot.slane %v347, %v376
    %v378 = vlaneseq
    %v379 = vshrl.u32 %v378, 7
    %v380 = vsub.s32 2, %v379
    %v381 = vrot.slane %v351, %v380
    %v382 = vlaneseq
    %v383 = vshrl.u32 %v382, 7
    %v384 = vsub.s32 2, %v383
    %v385 = vrot.slane %v355, %v384
    %v386 = vlaneseq
    %v387 = vshrl.u32 %v386, 7
    %v388 = vsub.s32 2, %v387
    %v389 = vrot.slane %v359, %v388
    %v390 = vmul.f32 %v330, %v369
    %v391 = vmul.f32 %v330, %v373
    %v392 = vmul.f32 %v330, %v377
    %v393 = vmul.f32 %v330, %v381
    %v394 = vmul.f32 %v330, %v385
    %v395 = vmul.f32 %v330, %v389
    %v396 = vmul.f32 %v334, %v369
    %v397 = vmul.f32 %v334, %v373
    %v398 = vmul.f32 %v334, %v377
    %v399 = vmul.f32 %v334, %v381
    %v400 = vmul.f32 %v334, %v385
    %v401 = vmul.f32 %v334, %v389
    %v402 = vadd.f32 %v316, %v390
    %v403 = vadd.f32 %v317, %v391
    %v404 = vadd.f32 %v318, %v392
    %v405 = vadd.f32 %v319, %v393
    %v406 = vadd.f32 %v320, %v394
    %v407 = vadd.f32 %v321, %v395
    %v408 = vadd.f32 %v322, %v396
    %v409 = vadd.f32 %v323, %v397
    %v410 = vadd.f32 %v324, %v398
    %v411 = vadd.f32 %v325, %v399
    %v412 = vadd.f32 %v326, %v400
    %v413 = vadd.f32 %v327, %v401
    %v414 = vld [vmem:[%s2] sm:$0xf]
    %v416 = vlaneseq
    %v417 = vshrl.u32 %v416, 7
    %v418 = vsub.s32 0, %v417
    %v419 = vrot.slane %v414, %v418
    %v420 = vlaneseq
    %v421 = vshrl.u32 %v420, 7
    %v422 = vsub.s32 1, %v421
    %v423 = vrot.slane %v414, %v422
    %v424 = vlaneseq
    %v425 = vshrl.u32 %v424, 7
    %v426 = vsub.s32 2, %v425
    %v427 = vrot.slane %v414, %v426
    %v428 = vlaneseq
    %v429 = vshrl.u32 %v428, 7
    %v430 = vsub.s32 3, %v429
    %v431 = vrot.slane %v414, %v430
    %v436 = vadd.f32 %v402, %v419
    %v437 = vadd.f32 %v403, %v423
    %v438 = vadd.f32 %v404, %v427
    %v439 = vadd.f32 %v405, %v431
    %v440 = vadd.f32 %v408, %v419
    %v441 = vadd.f32 %v409, %v423
    %v442 = vadd.f32 %v410, %v427
    %v443 = vadd.f32 %v411, %v431
    %v444 = vmax.f32 %v436, 0.0
    %v445 = vmax.f32 %v437, 0.0
    %v446 = vmax.f32 %v438, 0.0
    %v447 = vmax.f32 %v439, 0.0
    %v448 = vmax.f32 %v440, 0.0
    %v449 = vmax.f32 %v441, 0.0
    %v450 = vmax.f32 %v442, 0.0
    %v451 = vmax.f32 %v443, 0.0
    %v452 = vpack.c.bf16 %v448, %v444
    %v453 = vpack.c.bf16 %v449, %v445
    %v454 = vpack.c.bf16 %v450, %v446
    %v455 = vpack.c.bf16 %v451, %v447
    %v456 = vld [vmem:[#allocation2] sm:$0xff]
    %v457 = vld [vmem:[#allocation2 + $0x8] sm:$0xff]
    %v458 = vld [vmem:[#allocation2 + $0x10] sm:$0xff]
    %v459 = vld [vmem:[#allocation2 + $0x18] sm:$0xff]
    %v460 = vld [vmem:[#allocation2 + $0x20] sm:$0xff]
    %v461 = vld [vmem:[#allocation2 + $0x28] sm:$0xff]
    %v462 = vld [vmem:[#allocation2 + $0x30] sm:$0xff]
    %v463 = vld [vmem:[#allocation2 + $0x38] sm:$0xff]
    %v464 = vld [vmem:[#allocation2 + $0x40] sm:$0xff]
    %v465 = vld [vmem:[#allocation2 + $0x48] sm:$0xff]
    %v466 = vld [vmem:[#allocation2 + $0x50] sm:$0xff]
    %v467 = vld [vmem:[#allocation2 + $0x58] sm:$0xff]
    %v468 = vld [vmem:[#allocation2 + $0x60] sm:$0xff]
    %v469 = vld [vmem:[#allocation2 + $0x68] sm:$0xff]
    %v470 = vld [vmem:[#allocation2 + $0x70] sm:$0xff]
    %v471 = vld [vmem:[#allocation2 + $0x78] sm:$0xff]
    %v472 = vld [vmem:[#allocation2 + $0x80] sm:$0xff]
    %v473 = vld [vmem:[#allocation2 + $0x88] sm:$0xff]
    %v474 = vld [vmem:[#allocation2 + $0x90] sm:$0xff]
    %v475 = vld [vmem:[#allocation2 + $0x98] sm:$0xff]
    %v476 = vld [vmem:[#allocation2 + $0xa0] sm:$0xff]
    %v477 = vld [vmem:[#allocation2 + $0xa8] sm:$0xff]
    %v478 = vld [vmem:[#allocation2 + $0xb0] sm:$0xff]
    %v479 = vld [vmem:[#allocation2 + $0xb8] sm:$0xff]
    %v480 = vld [vmem:[#allocation2 + $0xc0] sm:$0xff]
    %v481 = vld [vmem:[#allocation2 + $0xc8] sm:$0xff]
    %v482 = vld [vmem:[#allocation2 + $0xd0] sm:$0xff]
    %v483 = vld [vmem:[#allocation2 + $0xd8] sm:$0xff]
    %v484 = vld [vmem:[#allocation2 + $0xe0] sm:$0xff]
    %v485 = vld [vmem:[#allocation2 + $0xe8] sm:$0xff]
    %v486 = vld [vmem:[#allocation2 + $0xf0] sm:$0xff]
    %v487 = vld [vmem:[#allocation2 + $0xf8] sm:$0xff]
    %v488 = vld [vmem:[#allocation2 + $0x100] sm:$0xff]
    %v489 = vld [vmem:[#allocation2 + $0x108] sm:$0xff]
    %v490 = vld [vmem:[#allocation2 + $0x110] sm:$0xff]
    %v491 = vld [vmem:[#allocation2 + $0x118] sm:$0xff]
    %v492 = vld [vmem:[#allocation2 + $0x120] sm:$0xff]
    %v493 = vld [vmem:[#allocation2 + $0x128] sm:$0xff]
    %v494 = vld [vmem:[#allocation2 + $0x130] sm:$0xff]
    %v495 = vld [vmem:[#allocation2 + $0x138] sm:$0xff]
    %v496 = vld [vmem:[#allocation2 + $0x140] sm:$0xff]
    %v497 = vld [vmem:[#allocation2 + $0x148] sm:$0xff]
    %v498 = vld [vmem:[#allocation2 + $0x150] sm:$0xff]
    %v499 = vld [vmem:[#allocation2 + $0x158] sm:$0xff]
    %v500 = vld [vmem:[#allocation2 + $0x160] sm:$0xff]
    %v501 = vld [vmem:[#allocation2 + $0x168] sm:$0xff]
    %v502 = vld [vmem:[#allocation2 + $0x170] sm:$0xff]
    %v503 = vld [vmem:[#allocation2 + $0x178] sm:$0xff]
    %v504 = vld [vmem:[#allocation2 + $0x180] sm:$0xff]
    %v505 = vld [vmem:[#allocation2 + $0x188] sm:$0xff]
    %v506 = vld [vmem:[#allocation2 + $0x190] sm:$0xff]
    %v507 = vld [vmem:[#allocation2 + $0x198] sm:$0xff]
    %v508 = vld [vmem:[#allocation2 + $0x1a0] sm:$0xff]
    %v509 = vld [vmem:[#allocation2 + $0x1a8] sm:$0xff]
    %v510 = vld [vmem:[#allocation2 + $0x1b0] sm:$0xff]
    %v511 = vld [vmem:[#allocation2 + $0x1b8] sm:$0xff]
    %v512 = vld [vmem:[#allocation2 + $0x1c0] sm:$0xff]
    %v513 = vld [vmem:[#allocation2 + $0x1c8] sm:$0xff]
    %v514 = vld [vmem:[#allocation2 + $0x1d0] sm:$0xff]
    %v515 = vld [vmem:[#allocation2 + $0x1d8] sm:$0xff]
    %v516 = vld [vmem:[#allocation2 + $0x1e0] sm:$0xff]
    %v517 = vld [vmem:[#allocation2 + $0x1e8] sm:$0xff]
    %v518 = vld [vmem:[#allocation2 + $0x1f0] sm:$0xff]
    %v519 = vld [vmem:[#allocation2 + $0x1f8] sm:$0xff]
    %v520 = vld [vmem:[%s4] sm:$0x3]
    %v522 = vlaneseq
    %v523 = vshrl.u32 %v522, 7
    %v524 = vsub.s32 0, %v523
    %v525 = vrot.slane %v520, %v524
    %v526 = vlaneseq
    %v527 = vshrl.u32 %v526, 7
    %v528 = vsub.s32 1, %v527
    %v529 = vrot.slane %v520, %v528
    %v596 = vunpack.c.l.b16 %v456
    %v597 = vunpack.c.h.b16 %v456
    %v598 = vunpack.c.l.b16 %v457
    %v599 = vunpack.c.h.b16 %v457
    %v600 = vunpack.c.l.b16 %v458
    %v601 = vunpack.c.h.b16 %v458
    %v602 = vunpack.c.l.b16 %v459
    %v603 = vunpack.c.h.b16 %v459
    %v604 = vunpack.c.l.b16 %v460
    %v605 = vunpack.c.h.b16 %v460
    %v606 = vunpack.c.l.b16 %v461
    %v607 = vunpack.c.h.b16 %v461
    %v608 = vunpack.c.l.b16 %v462
    %v609 = vunpack.c.h.b16 %v462
    %v610 = vunpack.c.l.b16 %v463
    %v611 = vunpack.c.h.b16 %v463
    %v612 = vunpack.c.l.b16 %v464
    %v613 = vunpack.c.h.b16 %v464
    %v614 = vunpack.c.l.b16 %v465
    %v615 = vunpack.c.h.b16 %v465
    %v616 = vunpack.c.l.b16 %v466
    %v617 = vunpack.c.h.b16 %v466
    %v618 = vunpack.c.l.b16 %v467
    %v619 = vunpack.c.h.b16 %v467
    %v620 = vunpack.c.l.b16 %v468
    %v621 = vunpack.c.h.b16 %v468
    %v622 = vunpack.c.l.b16 %v469
    %v623 = vunpack.c.h.b16 %v469
    %v624 = vunpack.c.l.b16 %v470
    %v625 = vunpack.c.h.b16 %v470
    %v626 = vunpack.c.l.b16 %v471
    %v627 = vunpack.c.h.b16 %v471
    %v628 = vunpack.c.l.b16 %v472
    %v629 = vunpack.c.h.b16 %v472
    %v630 = vunpack.c.l.b16 %v473
    %v631 = vunpack.c.h.b16 %v473
    %v632 = vunpack.c.l.b16 %v474
    %v633 = vunpack.c.h.b16 %v474
    %v634 = vunpack.c.l.b16 %v475
    %v635 = vunpack.c.h.b16 %v475
    %v636 = vunpack.c.l.b16 %v476
    %v637 = vunpack.c.h.b16 %v476
    %v638 = vunpack.c.l.b16 %v477
    %v639 = vunpack.c.h.b16 %v477
    %v640 = vunpack.c.l.b16 %v478
    %v641 = vunpack.c.h.b16 %v478
    %v642 = vunpack.c.l.b16 %v479
    %v643 = vunpack.c.h.b16 %v479
    %v644 = vunpack.c.l.b16 %v480
    %v645 = vunpack.c.h.b16 %v480
    %v646 = vunpack.c.l.b16 %v481
    %v647 = vunpack.c.h.b16 %v481
    %v648 = vunpack.c.l.b16 %v482
    %v649 = vunpack.c.h.b16 %v482
    %v650 = vunpack.c.l.b16 %v483
    %v651 = vunpack.c.h.b16 %v483
    %v652 = vunpack.c.l.b16 %v484
    %v653 = vunpack.c.h.b16 %v484
    %v654 = vunpack.c.l.b16 %v485
    %v655 = vunpack.c.h.b16 %v485
    %v656 = vunpack.c.l.b16 %v486
    %v657 = vunpack.c.h.b16 %v486
    %v658 = vunpack.c.l.b16 %v487
    %v659 = vunpack.c.h.b16 %v487
    %v660 = vunpack.c.l.b16 %v488
    %v661 = vunpack.c.h.b16 %v488
    %v662 = vunpack.c.l.b16 %v489
    %v663 = vunpack.c.h.b16 %v489
    %v664 = vunpack.c.l.b16 %v490
    %v665 = vunpack.c.h.b16 %v490
    %v666 = vunpack.c.l.b16 %v491
    %v667 = vunpack.c.h.b16 %v491
    %v668 = vunpack.c.l.b16 %v492
    %v669 = vunpack.c.h.b16 %v492
    %v670 = vunpack.c.l.b16 %v493
    %v671 = vunpack.c.h.b16 %v493
    %v672 = vunpack.c.l.b16 %v494
    %v673 = vunpack.c.h.b16 %v494
    %v674 = vunpack.c.l.b16 %v495
    %v675 = vunpack.c.h.b16 %v495
    %v676 = vunpack.c.l.b16 %v496
    %v677 = vunpack.c.h.b16 %v496
    %v678 = vunpack.c.l.b16 %v497
    %v679 = vunpack.c.h.b16 %v497
    %v680 = vunpack.c.l.b16 %v498
    %v681 = vunpack.c.h.b16 %v498
    %v682 = vunpack.c.l.b16 %v499
    %v683 = vunpack.c.h.b16 %v499
    %v684 = vunpack.c.l.b16 %v500
    %v685 = vunpack.c.h.b16 %v500
    %v686 = vunpack.c.l.b16 %v501
    %v687 = vunpack.c.h.b16 %v501
    %v688 = vunpack.c.l.b16 %v502
    %v689 = vunpack.c.h.b16 %v502
    %v690 = vunpack.c.l.b16 %v503
    %v691 = vunpack.c.h.b16 %v503
    %v692 = vunpack.c.l.b16 %v504
    %v693 = vunpack.c.h.b16 %v504
    %v694 = vunpack.c.l.b16 %v505
    %v695 = vunpack.c.h.b16 %v505
    %v696 = vunpack.c.l.b16 %v506
    %v697 = vunpack.c.h.b16 %v506
    %v698 = vunpack.c.l.b16 %v507
    %v699 = vunpack.c.h.b16 %v507
    %v700 = vunpack.c.l.b16 %v508
    %v701 = vunpack.c.h.b16 %v508
    %v702 = vunpack.c.l.b16 %v509
    %v703 = vunpack.c.h.b16 %v509
    %v704 = vunpack.c.l.b16 %v510
    %v705 = vunpack.c.h.b16 %v510
    %v706 = vunpack.c.l.b16 %v511
    %v707 = vunpack.c.h.b16 %v511
    %v708 = vunpack.c.l.b16 %v512
    %v709 = vunpack.c.h.b16 %v512
    %v710 = vunpack.c.l.b16 %v513
    %v711 = vunpack.c.h.b16 %v513
    %v712 = vunpack.c.l.b16 %v514
    %v713 = vunpack.c.h.b16 %v514
    %v714 = vunpack.c.l.b16 %v515
    %v715 = vunpack.c.h.b16 %v515
    %v716 = vunpack.c.l.b16 %v516
    %v717 = vunpack.c.h.b16 %v516
    %v718 = vunpack.c.l.b16 %v517
    %v719 = vunpack.c.h.b16 %v517
    %v720 = vunpack.c.l.b16 %v518
    %v721 = vunpack.c.h.b16 %v518
    %v722 = vunpack.c.l.b16 %v519
    %v723 = vunpack.c.h.b16 %v519
    %v724 = vpack.c.b16 %v598, %v596
    %v725 = vpack.c.b16 %v599, %v597
    %v726 = vpack.c.b16 %v602, %v600
    %v727 = vpack.c.b16 %v603, %v601
    %v728 = vpack.c.b16 %v606, %v604
    %v729 = vpack.c.b16 %v607, %v605
    %v730 = vpack.c.b16 %v610, %v608
    %v731 = vpack.c.b16 %v611, %v609
    %v732 = vpack.c.b16 %v614, %v612
    %v733 = vpack.c.b16 %v615, %v613
    %v734 = vpack.c.b16 %v618, %v616
    %v735 = vpack.c.b16 %v619, %v617
    %v736 = vpack.c.b16 %v622, %v620
    %v737 = vpack.c.b16 %v623, %v621
    %v738 = vpack.c.b16 %v626, %v624
    %v739 = vpack.c.b16 %v627, %v625
    %v740 = vpack.c.b16 %v630, %v628
    %v741 = vpack.c.b16 %v631, %v629
    %v742 = vpack.c.b16 %v634, %v632
    %v743 = vpack.c.b16 %v635, %v633
    %v744 = vpack.c.b16 %v638, %v636
    %v745 = vpack.c.b16 %v639, %v637
    %v746 = vpack.c.b16 %v642, %v640
    %v747 = vpack.c.b16 %v643, %v641
    %v748 = vpack.c.b16 %v646, %v644
    %v749 = vpack.c.b16 %v647, %v645
    %v750 = vpack.c.b16 %v650, %v648
    %v751 = vpack.c.b16 %v651, %v649
    %v752 = vpack.c.b16 %v654, %v652
    %v753 = vpack.c.b16 %v655, %v653
    %v754 = vpack.c.b16 %v658, %v656
    %v755 = vpack.c.b16 %v659, %v657
    %v756 = vpack.c.b16 %v662, %v660
    %v757 = vpack.c.b16 %v663, %v661
    %v758 = vpack.c.b16 %v666, %v664
    %v759 = vpack.c.b16 %v667, %v665
    %v760 = vpack.c.b16 %v670, %v668
    %v761 = vpack.c.b16 %v671, %v669
    %v762 = vpack.c.b16 %v674, %v672
    %v763 = vpack.c.b16 %v675, %v673
    %v764 = vpack.c.b16 %v678, %v676
    %v765 = vpack.c.b16 %v679, %v677
    %v766 = vpack.c.b16 %v682, %v680
    %v767 = vpack.c.b16 %v683, %v681
    %v768 = vpack.c.b16 %v686, %v684
    %v769 = vpack.c.b16 %v687, %v685
    %v770 = vpack.c.b16 %v690, %v688
    %v771 = vpack.c.b16 %v691, %v689
    %v772 = vpack.c.b16 %v694, %v692
    %v773 = vpack.c.b16 %v695, %v693
    %v774 = vpack.c.b16 %v698, %v696
    %v775 = vpack.c.b16 %v699, %v697
    %v776 = vpack.c.b16 %v702, %v700
    %v777 = vpack.c.b16 %v703, %v701
    %v778 = vpack.c.b16 %v706, %v704
    %v779 = vpack.c.b16 %v707, %v705
    %v780 = vpack.c.b16 %v710, %v708
    %v781 = vpack.c.b16 %v711, %v709
    %v782 = vpack.c.b16 %v714, %v712
    %v783 = vpack.c.b16 %v715, %v713
    %v784 = vpack.c.b16 %v718, %v716
    %v785 = vpack.c.b16 %v719, %v717
    %v786 = vpack.c.b16 %v722, %v720
    %v787 = vpack.c.b16 %v723, %v721
    %852 = vmatprep.subr.bf16.mxu0 %v739
    %853 = vmatpush1.bf16.msra.mxu0 %v738
    %854 = vmatprep.subr.bf16.mxu0 %v737
    %855 = vmatpush1.bf16.msra.mxu0 %v736
    %856 = vmatprep.subr.bf16.mxu0 %v735
    %857 = vmatpush1.bf16.msra.mxu0 %v734
    %858 = vmatprep.subr.bf16.mxu0 %v733
    %859 = vmatpush1.bf16.msra.mxu0 %v732
    %860 = vmatprep.subr.bf16.mxu0 %v731
    %861 = vmatpush1.bf16.msra.mxu0 %v730
    %862 = vmatprep.subr.bf16.mxu0 %v729
    %863 = vmatpush1.bf16.msra.mxu0 %v728
    %864 = vmatprep.subr.bf16.mxu0 %v727
    %865 = vmatpush1.bf16.msra.mxu0 %v726
    %866 = vmatprep.subr.bf16.mxu0 %v725
    %867 = vmatpush1.bf16.msra.mxu0 %v724
    %868 = vmatprep.subr.bf16.mxu0 %v755
    %869 = vmatpush2.bf16.msra.mxu0 %v754
    %870 = vmatprep.subr.bf16.mxu0 %v753
    %871 = vmatpush2.bf16.msra.mxu0 %v752
    %872 = vmatprep.subr.bf16.mxu0 %v751
    %873 = vmatpush2.bf16.msra.mxu0 %v750
    %874 = vmatprep.subr.bf16.mxu0 %v749
    %875 = vmatpush2.bf16.msra.mxu0 %v748
    %876 = vmatprep.subr.bf16.mxu0 %v747
    %877 = vmatpush2.bf16.msra.mxu0 %v746
    %878 = vmatprep.subr.bf16.mxu0 %v745
    %879 = vmatpush2.bf16.msra.mxu0 %v744
    %880 = vmatprep.subr.bf16.mxu0 %v743
    %881 = vmatpush2.bf16.msra.mxu0 %v742
    %882 = vmatprep.subr.bf16.mxu0 %v741
    %883 = vmatpush2.bf16.msra.mxu0 %v740
    %884 = vmatprep.mubr.bf16.mxu0 %v453
    %885 = vmatmul.mubr.bf16.gmra.mxu0 %v452
    %v886 = vpop.f32.mrf.mxu0
    %v887 = vadd.f32 %v525, %v886
    %v888 = vpop.f32.mrf.mxu0
    %v889 = vadd.f32 %v529, %v888
    %v890 = vpop.f32.mrf.mxu0
    %v891 = vadd.f32 %v525, %v890
    %v892 = vpop.f32.mrf.mxu0
    %v893 = vadd.f32 %v529, %v892
    %894 = vdwg.mxu0
    %895 = vmatprep.subr.bf16.mxu0 %v771
    %896 = vmatpush1.bf16.msra.mxu0 %v770
    %897 = vmatprep.subr.bf16.mxu0 %v769
    %898 = vmatpush1.bf16.msra.mxu0 %v768
    %899 = vmatprep.subr.bf16.mxu0 %v767
    %900 = vmatpush1.bf16.msra.mxu0 %v766
    %901 = vmatprep.subr.bf16.mxu0 %v765
    %902 = vmatpush1.bf16.msra.mxu0 %v764
    %903 = vmatprep.subr.bf16.mxu0 %v763
    %904 = vmatpush1.bf16.msra.mxu0 %v762
    %905 = vmatprep.subr.bf16.mxu0 %v761
    %906 = vmatpush1.bf16.msra.mxu0 %v760
    %907 = vmatprep.subr.bf16.mxu0 %v759
    %908 = vmatpush1.bf16.msra.mxu0 %v758
    %909 = vmatprep.subr.bf16.mxu0 %v757
    %910 = vmatpush1.bf16.msra.mxu0 %v756
    %911 = vmatprep.subr.bf16.mxu0 %v787
    %912 = vmatpush2.bf16.msra.mxu0 %v786
    %913 = vmatprep.subr.bf16.mxu0 %v785
    %914 = vmatpush2.bf16.msra.mxu0 %v784
    %915 = vmatprep.subr.bf16.mxu0 %v783
    %916 = vmatpush2.bf16.msra.mxu0 %v782
    %917 = vmatprep.subr.bf16.mxu0 %v781
    %918 = vmatpush2.bf16.msra.mxu0 %v780
    %919 = vmatprep.subr.bf16.mxu0 %v779
    %920 = vmatpush2.bf16.msra.mxu0 %v778
    %921 = vmatprep.subr.bf16.mxu0 %v777
    %922 = vmatpush2.bf16.msra.mxu0 %v776
    %923 = vmatprep.subr.bf16.mxu0 %v775
    %924 = vmatpush2.bf16.msra.mxu0 %v774
    %925 = vmatprep.subr.bf16.mxu0 %v773
    %926 = vmatpush2.bf16.msra.mxu0 %v772
    %927 = vmatprep.mubr.bf16.mxu0 %v455
    %928 = vmatmul.mubr.bf16.gmra.mxu0 %v454
    %v929 = vpop.f32.mrf.mxu0
    %v930 = vadd.f32 %v887, %v929
    %v931 = vpop.f32.mrf.mxu0
    %v932 = vadd.f32 %v889, %v931
    %v933 = vpop.f32.mrf.mxu0
    %v934 = vadd.f32 %v891, %v933
    %v935 = vpop.f32.mrf.mxu0
    %v936 = vadd.f32 %v893, %v935
    %937 = vdwg.mxu0
    %v938 = vmax.f32 %v930, 0.0
    %v939 = vmax.f32 %v932, 0.0
    %v940 = vmax.f32 %v934, 0.0
    %v941 = vmax.f32 %v936, 0.0
    %v942 = vpack.c.bf16 %v940, %v938
    %v943 = vpack.c.bf16 %v941, %v939
    %v944 = vld [vmem:[#allocation4] sm:$0xff]
    %v945 = vld [vmem:[#allocation4 + $0x8] sm:$0xff]
    %v946 = vld [vmem:[#allocation4 + $0x10] sm:$0xff]
    %v947 = vld [vmem:[#allocation4 + $0x18] sm:$0xff]
    %v948 = vld [vmem:[#allocation4 + $0x20] sm:$0xff]
    %v949 = vld [vmem:[#allocation4 + $0x28] sm:$0xff]
    %v950 = vld [vmem:[#allocation4 + $0x30] sm:$0xff]
    %v951 = vld [vmem:[#allocation4 + $0x38] sm:$0xff]
    %v952 = vld [vmem:[#allocation4 + $0x40] sm:$0xff]
    %v953 = vld [vmem:[#allocation4 + $0x48] sm:$0xff]
    %v954 = vld [vmem:[#allocation4 + $0x50] sm:$0xff]
    %v955 = vld [vmem:[#allocation4 + $0x58] sm:$0xff]
    %v956 = vld [vmem:[#allocation4 + $0x60] sm:$0xff]
    %v957 = vld [vmem:[#allocation4 + $0x68] sm:$0xff]
    %v958 = vld [vmem:[#allocation4 + $0x70] sm:$0xff]
    %v959 = vld [vmem:[#allocation4 + $0x78] sm:$0xff]
    %v960 = vld [vmem:[#allocation4 + $0x80] sm:$0xff]
    %v961 = vld [vmem:[#allocation4 + $0x88] sm:$0xff]
    %v962 = vld [vmem:[#allocation4 + $0x90] sm:$0xff]
    %v963 = vld [vmem:[#allocation4 + $0x98] sm:$0xff]
    %v964 = vld [vmem:[#allocation4 + $0xa0] sm:$0xff]
    %v965 = vld [vmem:[#allocation4 + $0xa8] sm:$0xff]
    %v966 = vld [vmem:[#allocation4 + $0xb0] sm:$0xff]
    %v967 = vld [vmem:[#allocation4 + $0xb8] sm:$0xff]
    %v968 = vld [vmem:[#allocation4 + $0xc0] sm:$0xff]
    %v969 = vld [vmem:[#allocation4 + $0xc8] sm:$0xff]
    %v970 = vld [vmem:[#allocation4 + $0xd0] sm:$0xff]
    %v971 = vld [vmem:[#allocation4 + $0xd8] sm:$0xff]
    %v972 = vld [vmem:[#allocation4 + $0xe0] sm:$0xff]
    %v973 = vld [vmem:[#allocation4 + $0xe8] sm:$0xff]
    %v974 = vld [vmem:[#allocation4 + $0xf0] sm:$0xff]
    %v975 = vld [vmem:[#allocation4 + $0xf8] sm:$0xff]
    %v976 = vld [vmem:[%s6] sm:$0x3]
    %v978 = vlaneseq
    %v979 = vshrl.u32 %v978, 7
    %v980 = vsub.s32 0, %v979
    %v981 = vrot.slane %v976, %v980
    %v982 = vlaneseq
    %v983 = vshrl.u32 %v982, 7
    %v984 = vsub.s32 1, %v983
    %v985 = vrot.slane %v976, %v984
    %v1020 = vunpack.c.l.b16 %v944
    %v1021 = vunpack.c.h.b16 %v944
    %v1022 = vunpack.c.l.b16 %v945
    %v1023 = vunpack.c.h.b16 %v945
    %v1024 = vunpack.c.l.b16 %v946
    %v1025 = vunpack.c.h.b16 %v946
    %v1026 = vunpack.c.l.b16 %v947
    %v1027 = vunpack.c.h.b16 %v947
    %v1028 = vunpack.c.l.b16 %v948
    %v1029 = vunpack.c.h.b16 %v948
    %v1030 = vunpack.c.l.b16 %v949
    %v1031 = vunpack.c.h.b16 %v949
    %v1032 = vunpack.c.l.b16 %v950
    %v1033 = vunpack.c.h.b16 %v950
    %v1034 = vunpack.c.l.b16 %v951
    %v1035 = vunpack.c.h.b16 %v951
    %v1036 = vunpack.c.l.b16 %v952
    %v1037 = vunpack.c.h.b16 %v952
    %v1038 = vunpack.c.l.b16 %v953
    %v1039 = vunpack.c.h.b16 %v953
    %v1040 = vunpack.c.l.b16 %v954
    %v1041 = vunpack.c.h.b16 %v954
    %v1042 = vunpack.c.l.b16 %v955
    %v1043 = vunpack.c.h.b16 %v955
    %v1044 = vunpack.c.l.b16 %v956
    %v1045 = vunpack.c.h.b16 %v956
    %v1046 = vunpack.c.l.b16 %v957
    %v1047 = vunpack.c.h.b16 %v957
    %v1048 = vunpack.c.l.b16 %v958
    %v1049 = vunpack.c.h.b16 %v958
    %v1050 = vunpack.c.l.b16 %v959
    %v1051 = vunpack.c.h.b16 %v959
    %v1052 = vunpack.c.l.b16 %v960
    %v1053 = vunpack.c.h.b16 %v960
    %v1054 = vunpack.c.l.b16 %v961
    %v1055 = vunpack.c.h.b16 %v961
    %v1056 = vunpack.c.l.b16 %v962
    %v1057 = vunpack.c.h.b16 %v962
    %v1058 = vunpack.c.l.b16 %v963
    %v1059 = vunpack.c.h.b16 %v963
    %v1060 = vunpack.c.l.b16 %v964
    %v1061 = vunpack.c.h.b16 %v964
    %v1062 = vunpack.c.l.b16 %v965
    %v1063 = vunpack.c.h.b16 %v965
    %v1064 = vunpack.c.l.b16 %v966
    %v1065 = vunpack.c.h.b16 %v966
    %v1066 = vunpack.c.l.b16 %v967
    %v1067 = vunpack.c.h.b16 %v967
    %v1068 = vunpack.c.l.b16 %v968
    %v1069 = vunpack.c.h.b16 %v968
    %v1070 = vunpack.c.l.b16 %v969
    %v1071 = vunpack.c.h.b16 %v969
    %v1072 = vunpack.c.l.b16 %v970
    %v1073 = vunpack.c.h.b16 %v970
    %v1074 = vunpack.c.l.b16 %v971
    %v1075 = vunpack.c.h.b16 %v971
    %v1076 = vunpack.c.l.b16 %v972
    %v1077 = vunpack.c.h.b16 %v972
    %v1078 = vunpack.c.l.b16 %v973
    %v1079 = vunpack.c.h.b16 %v973
    %v1080 = vunpack.c.l.b16 %v974
    %v1081 = vunpack.c.h.b16 %v974
    %v1082 = vunpack.c.l.b16 %v975
    %v1083 = vunpack.c.h.b16 %v975
    %v1084 = vpack.c.b16 %v1022, %v1020
    %v1085 = vpack.c.b16 %v1023, %v1021
    %v1086 = vpack.c.b16 %v1026, %v1024
    %v1087 = vpack.c.b16 %v1027, %v1025
    %v1088 = vpack.c.b16 %v1030, %v1028
    %v1089 = vpack.c.b16 %v1031, %v1029
    %v1090 = vpack.c.b16 %v1034, %v1032
    %v1091 = vpack.c.b16 %v1035, %v1033
    %v1092 = vpack.c.b16 %v1038, %v1036
    %v1093 = vpack.c.b16 %v1039, %v1037
    %v1094 = vpack.c.b16 %v1042, %v1040
    %v1095 = vpack.c.b16 %v1043, %v1041
    %v1096 = vpack.c.b16 %v1046, %v1044
    %v1097 = vpack.c.b16 %v1047, %v1045
    %v1098 = vpack.c.b16 %v1050, %v1048
    %v1099 = vpack.c.b16 %v1051, %v1049
    %v1100 = vpack.c.b16 %v1054, %v1052
    %v1101 = vpack.c.b16 %v1055, %v1053
    %v1102 = vpack.c.b16 %v1058, %v1056
    %v1103 = vpack.c.b16 %v1059, %v1057
    %v1104 = vpack.c.b16 %v1062, %v1060
    %v1105 = vpack.c.b16 %v1063, %v1061
    %v1106 = vpack.c.b16 %v1066, %v1064
    %v1107 = vpack.c.b16 %v1067, %v1065
    %v1108 = vpack.c.b16 %v1070, %v1068
    %v1109 = vpack.c.b16 %v1071, %v1069
    %v1110 = vpack.c.b16 %v1074, %v1072
    %v1111 = vpack.c.b16 %v1075, %v1073
    %v1112 = vpack.c.b16 %v1078, %v1076
    %v1113 = vpack.c.b16 %v1079, %v1077
    %v1114 = vpack.c.b16 %v1082, %v1080
    %v1115 = vpack.c.b16 %v1083, %v1081
    %1148 = vmatprep.subr.bf16.mxu0 %v1099
    %1149 = vmatpush1.bf16.msra.mxu0 %v1098
    %1150 = vmatprep.subr.bf16.mxu0 %v1097
    %1151 = vmatpush1.bf16.msra.mxu0 %v1096
    %1152 = vmatprep.subr.bf16.mxu0 %v1095
    %1153 = vmatpush1.bf16.msra.mxu0 %v1094
    %1154 = vmatprep.subr.bf16.mxu0 %v1093
    %1155 = vmatpush1.bf16.msra.mxu0 %v1092
    %1156 = vmatprep.subr.bf16.mxu0 %v1091
    %1157 = vmatpush1.bf16.msra.mxu0 %v1090
    %1158 = vmatprep.subr.bf16.mxu0 %v1089
    %1159 = vmatpush1.bf16.msra.mxu0 %v1088
    %1160 = vmatprep.subr.bf16.mxu0 %v1087
    %1161 = vmatpush1.bf16.msra.mxu0 %v1086
    %1162 = vmatprep.subr.bf16.mxu0 %v1085
    %1163 = vmatpush1.bf16.msra.mxu0 %v1084
    %1164 = vmatprep.subr.bf16.mxu0 %v1115
    %1165 = vmatpush2.bf16.msra.mxu0 %v1114
    %1166 = vmatprep.subr.bf16.mxu0 %v1113
    %1167 = vmatpush2.bf16.msra.mxu0 %v1112
    %1168 = vmatprep.subr.bf16.mxu0 %v1111
    %1169 = vmatpush2.bf16.msra.mxu0 %v1110
    %1170 = vmatprep.subr.bf16.mxu0 %v1109
    %1171 = vmatpush2.bf16.msra.mxu0 %v1108
    %1172 = vmatprep.subr.bf16.mxu0 %v1107
    %1173 = vmatpush2.bf16.msra.mxu0 %v1106
    %1174 = vmatprep.subr.bf16.mxu0 %v1105
    %1175 = vmatpush2.bf16.msra.mxu0 %v1104
    %1176 = vmatprep.subr.bf16.mxu0 %v1103
    %1177 = vmatpush2.bf16.msra.mxu0 %v1102
    %1178 = vmatprep.subr.bf16.mxu0 %v1101
    %1179 = vmatpush2.bf16.msra.mxu0 %v1100
    %1180 = vmatprep.mubr.bf16.mxu0 %v943
    %1181 = vmatmul.mubr.bf16.gmra.mxu0 %v942
    %v1182 = vpop.f32.mrf.mxu0
    %v1183 = vadd.f32 %v981, %v1182
    %v1184 = vpop.f32.mrf.mxu0
    %v1185 = vadd.f32 %v985, %v1184
    %v1186 = vpop.f32.mrf.mxu0
    %v1187 = vadd.f32 %v981, %v1186
    %v1188 = vpop.f32.mrf.mxu0
    %v1189 = vadd.f32 %v985, %v1188
    %1190 = vdwg.mxu0
    %v1191 = vmax.f32 %v1183, 0.0
    %v1192 = vmax.f32 %v1185, 0.0
    %v1193 = vmax.f32 %v1187, 0.0
    %v1194 = vmax.f32 %v1189, 0.0
    %v1195 = vpack.c.bf16 %v1193, %v1191
    %v1196 = vpack.c.bf16 %v1194, %v1192
    %v1197 = vld [vmem:[#allocation6] sm:$0xff]
    %v1198 = vld [vmem:[#allocation6 + $0x8] sm:$0xff]
    %v1199 = vld [vmem:[#allocation6 + $0x10] sm:$0xff]
    %v1200 = vld [vmem:[#allocation6 + $0x18] sm:$0xff]
    %v1201 = vld [vmem:[#allocation6 + $0x20] sm:$0xff]
    %v1202 = vld [vmem:[#allocation6 + $0x28] sm:$0xff]
    %v1203 = vld [vmem:[#allocation6 + $0x30] sm:$0xff]
    %v1204 = vld [vmem:[#allocation6 + $0x38] sm:$0xff]
    %v1205 = vld [vmem:[#allocation6 + $0x40] sm:$0xff]
    %v1206 = vld [vmem:[#allocation6 + $0x48] sm:$0xff]
    %v1207 = vld [vmem:[#allocation6 + $0x50] sm:$0xff]
    %v1208 = vld [vmem:[#allocation6 + $0x58] sm:$0xff]
    %v1209 = vld [vmem:[#allocation6 + $0x60] sm:$0xff]
    %v1210 = vld [vmem:[#allocation6 + $0x68] sm:$0xff]
    %v1211 = vld [vmem:[#allocation6 + $0x70] sm:$0xff]
    %v1212 = vld [vmem:[#allocation6 + $0x78] sm:$0xff]
    %v1213 = vld [vmem:[#allocation6 + $0x80] sm:$0xff]
    %v1214 = vld [vmem:[#allocation6 + $0x88] sm:$0xff]
    %v1215 = vld [vmem:[#allocation6 + $0x90] sm:$0xff]
    %v1216 = vld [vmem:[#allocation6 + $0x98] sm:$0xff]
    %v1217 = vld [vmem:[#allocation6 + $0xa0] sm:$0xff]
    %v1218 = vld [vmem:[#allocation6 + $0xa8] sm:$0xff]
    %v1219 = vld [vmem:[#allocation6 + $0xb0] sm:$0xff]
    %v1220 = vld [vmem:[#allocation6 + $0xb8] sm:$0xff]
    %v1221 = vld [vmem:[#allocation6 + $0xc0] sm:$0xff]
    %v1222 = vld [vmem:[#allocation6 + $0xc8] sm:$0xff]
    %v1223 = vld [vmem:[#allocation6 + $0xd0] sm:$0xff]
    %v1224 = vld [vmem:[#allocation6 + $0xd8] sm:$0xff]
    %v1225 = vld [vmem:[#allocation6 + $0xe0] sm:$0xff]
    %v1226 = vld [vmem:[#allocation6 + $0xe8] sm:$0xff]
    %v1227 = vld [vmem:[#allocation6 + $0xf0] sm:$0xff]
    %v1228 = vld [vmem:[#allocation6 + $0xf8] sm:$0xff]
    %v1229 = vld [vmem:[%s8] sm:$0x3]
    %v1231 = vlaneseq
    %v1232 = vshrl.u32 %v1231, 7
    %v1233 = vsub.s32 0, %v1232
    %v1234 = vrot.slane %v1229, %v1233
    %v1235 = vlaneseq
    %v1236 = vshrl.u32 %v1235, 7
    %v1237 = vsub.s32 1, %v1236
    %v1238 = vrot.slane %v1229, %v1237
    %v1273 = vunpack.c.l.b16 %v1197
    %v1274 = vunpack.c.h.b16 %v1197
    %v1275 = vunpack.c.l.b16 %v1198
    %v1276 = vunpack.c.h.b16 %v1198
    %v1277 = vunpack.c.l.b16 %v1199
    %v1278 = vunpack.c.h.b16 %v1199
    %v1279 = vunpack.c.l.b16 %v1200
    %v1280 = vunpack.c.h.b16 %v1200
    %v1281 = vunpack.c.l.b16 %v1201
    %v1282 = vunpack.c.h.b16 %v1201
    %v1283 = vunpack.c.l.b16 %v1202
    %v1284 = vunpack.c.h.b16 %v1202
    %v1285 = vunpack.c.l.b16 %v1203
    %v1286 = vunpack.c.h.b16 %v1203
    %v1287 = vunpack.c.l.b16 %v1204
    %v1288 = vunpack.c.h.b16 %v1204
    %v1289 = vunpack.c.l.b16 %v1205
    %v1290 = vunpack.c.h.b16 %v1205
    %v1291 = vunpack.c.l.b16 %v1206
    %v1292 = vunpack.c.h.b16 %v1206
    %v1293 = vunpack.c.l.b16 %v1207
    %v1294 = vunpack.c.h.b16 %v1207
    %v1295 = vunpack.c.l.b16 %v1208
    %v1296 = vunpack.c.h.b16 %v1208
    %v1297 = vunpack.c.l.b16 %v1209
    %v1298 = vunpack.c.h.b16 %v1209
    %v1299 = vunpack.c.l.b16 %v1210
    %v1300 = vunpack.c.h.b16 %v1210
    %v1301 = vunpack.c.l.b16 %v1211
    %v1302 = vunpack.c.h.b16 %v1211
    %v1303 = vunpack.c.l.b16 %v1212
    %v1304 = vunpack.c.h.b16 %v1212
    %v1305 = vunpack.c.l.b16 %v1213
    %v1306 = vunpack.c.h.b16 %v1213
    %v1307 = vunpack.c.l.b16 %v1214
    %v1308 = vunpack.c.h.b16 %v1214
    %v1309 = vunpack.c.l.b16 %v1215
    %v1310 = vunpack.c.h.b16 %v1215
    %v1311 = vunpack.c.l.b16 %v1216
    %v1312 = vunpack.c.h.b16 %v1216
    %v1313 = vunpack.c.l.b16 %v1217
    %v1314 = vunpack.c.h.b16 %v1217
    %v1315 = vunpack.c.l.b16 %v1218
    %v1316 = vunpack.c.h.b16 %v1218
    %v1317 = vunpack.c.l.b16 %v1219
    %v1318 = vunpack.c.h.b16 %v1219
    %v1319 = vunpack.c.l.b16 %v1220
    %v1320 = vunpack.c.h.b16 %v1220
    %v1321 = vunpack.c.l.b16 %v1221
    %v1322 = vunpack.c.h.b16 %v1221
    %v1323 = vunpack.c.l.b16 %v1222
    %v1324 = vunpack.c.h.b16 %v1222
    %v1325 = vunpack.c.l.b16 %v1223
    %v1326 = vunpack.c.h.b16 %v1223
    %v1327 = vunpack.c.l.b16 %v1224
    %v1328 = vunpack.c.h.b16 %v1224
    %v1329 = vunpack.c.l.b16 %v1225
    %v1330 = vunpack.c.h.b16 %v1225
    %v1331 = vunpack.c.l.b16 %v1226
    %v1332 = vunpack.c.h.b16 %v1226
    %v1333 = vunpack.c.l.b16 %v1227
    %v1334 = vunpack.c.h.b16 %v1227
    %v1335 = vunpack.c.l.b16 %v1228
    %v1336 = vunpack.c.h.b16 %v1228
    %v1337 = vpack.c.b16 %v1275, %v1273
    %v1338 = vpack.c.b16 %v1276, %v1274
    %v1339 = vpack.c.b16 %v1279, %v1277
    %v1340 = vpack.c.b16 %v1280, %v1278
    %v1341 = vpack.c.b16 %v1283, %v1281
    %v1342 = vpack.c.b16 %v1284, %v1282
    %v1343 = vpack.c.b16 %v1287, %v1285
    %v1344 = vpack.c.b16 %v1288, %v1286
    %v1345 = vpack.c.b16 %v1291, %v1289
    %v1346 = vpack.c.b16 %v1292, %v1290
    %v1347 = vpack.c.b16 %v1295, %v1293
    %v1348 = vpack.c.b16 %v1296, %v1294
    %v1349 = vpack.c.b16 %v1299, %v1297
    %v1350 = vpack.c.b16 %v1300, %v1298
    %v1351 = vpack.c.b16 %v1303, %v1301
    %v1352 = vpack.c.b16 %v1304, %v1302
    %v1353 = vpack.c.b16 %v1307, %v1305
    %v1354 = vpack.c.b16 %v1308, %v1306
    %v1355 = vpack.c.b16 %v1311, %v1309
    %v1356 = vpack.c.b16 %v1312, %v1310
    %v1357 = vpack.c.b16 %v1315, %v1313
    %v1358 = vpack.c.b16 %v1316, %v1314
    %v1359 = vpack.c.b16 %v1319, %v1317
    %v1360 = vpack.c.b16 %v1320, %v1318
    %v1361 = vpack.c.b16 %v1323, %v1321
    %v1362 = vpack.c.b16 %v1324, %v1322
    %v1363 = vpack.c.b16 %v1327, %v1325
    %v1364 = vpack.c.b16 %v1328, %v1326
    %v1365 = vpack.c.b16 %v1331, %v1329
    %v1366 = vpack.c.b16 %v1332, %v1330
    %v1367 = vpack.c.b16 %v1335, %v1333
    %v1368 = vpack.c.b16 %v1336, %v1334
    %1401 = vmatprep.subr.bf16.mxu0 %v1352
    %1402 = vmatpush1.bf16.msra.mxu0 %v1351
    %1403 = vmatprep.subr.bf16.mxu0 %v1350
    %1404 = vmatpush1.bf16.msra.mxu0 %v1349
    %1405 = vmatprep.subr.bf16.mxu0 %v1348
    %1406 = vmatpush1.bf16.msra.mxu0 %v1347
    %1407 = vmatprep.subr.bf16.mxu0 %v1346
    %1408 = vmatpush1.bf16.msra.mxu0 %v1345
    %1409 = vmatprep.subr.bf16.mxu0 %v1344
    %1410 = vmatpush1.bf16.msra.mxu0 %v1343
    %1411 = vmatprep.subr.bf16.mxu0 %v1342
    %1412 = vmatpush1.bf16.msra.mxu0 %v1341
    %1413 = vmatprep.subr.bf16.mxu0 %v1340
    %1414 = vmatpush1.bf16.msra.mxu0 %v1339
    %1415 = vmatprep.subr.bf16.mxu0 %v1338
    %1416 = vmatpush1.bf16.msra.mxu0 %v1337
    %1417 = vmatprep.subr.bf16.mxu0 %v1368
    %1418 = vmatpush2.bf16.msra.mxu0 %v1367
    %1419 = vmatprep.subr.bf16.mxu0 %v1366
    %1420 = vmatpush2.bf16.msra.mxu0 %v1365
    %1421 = vmatprep.subr.bf16.mxu0 %v1364
    %1422 = vmatpush2.bf16.msra.mxu0 %v1363
    %1423 = vmatprep.subr.bf16.mxu0 %v1362
    %1424 = vmatpush2.bf16.msra.mxu0 %v1361
    %1425 = vmatprep.subr.bf16.mxu0 %v1360
    %1426 = vmatpush2.bf16.msra.mxu0 %v1359
    %1427 = vmatprep.subr.bf16.mxu0 %v1358
    %1428 = vmatpush2.bf16.msra.mxu0 %v1357
    %1429 = vmatprep.subr.bf16.mxu0 %v1356
    %1430 = vmatpush2.bf16.msra.mxu0 %v1355
    %1431 = vmatprep.subr.bf16.mxu0 %v1354
    %1432 = vmatpush2.bf16.msra.mxu0 %v1353
    %1433 = vmatprep.mubr.bf16.mxu0 %v1196
    %1434 = vmatmul.mubr.bf16.gmra.mxu0 %v1195
    %v1435 = vpop.f32.mrf.mxu0
    %v1436 = vadd.f32 %v1234, %v1435
    %v1437 = vpop.f32.mrf.mxu0
    %v1438 = vadd.f32 %v1238, %v1437
    %v1439 = vpop.f32.mrf.mxu0
    %v1440 = vadd.f32 %v1234, %v1439
    %v1441 = vpop.f32.mrf.mxu0
    %v1442 = vadd.f32 %v1238, %v1441
    %1443 = vdwg.mxu0
    %v1444 = vmax.f32 %v1436, 0.0
    %v1445 = vmax.f32 %v1438, 0.0
    %v1446 = vmax.f32 %v1440, 0.0
    %v1447 = vmax.f32 %v1442, 0.0
    %v1448 = vpack.c.bf16 %v1446, %v1444
    %v1449 = vpack.c.bf16 %v1447, %v1445
    %v1450 = vld [vmem:[#allocation7] sm:$0xff]
    %v1451 = vld [vmem:[#allocation7 + $0x8] sm:$0xff]
    %v1452 = vld [vmem:[#allocation7 + $0x10] sm:$0xff]
    %v1453 = vld [vmem:[#allocation7 + $0x18] sm:$0xff]
    %v1454 = vld [vmem:[#allocation7 + $0x20] sm:$0xff]
    %v1455 = vld [vmem:[#allocation7 + $0x28] sm:$0xff]
    %v1456 = vld [vmem:[#allocation7 + $0x30] sm:$0xff]
    %v1457 = vld [vmem:[#allocation7 + $0x38] sm:$0xff]
    %v1458 = vld [vmem:[#allocation7 + $0x40] sm:$0xff]
    %v1459 = vld [vmem:[#allocation7 + $0x48] sm:$0xff]
    %v1460 = vld [vmem:[#allocation7 + $0x50] sm:$0xff]
    %v1461 = vld [vmem:[#allocation7 + $0x58] sm:$0xff]
    %v1462 = vld [vmem:[#allocation7 + $0x60] sm:$0xff]
    %v1463 = vld [vmem:[#allocation7 + $0x68] sm:$0xff]
    %v1464 = vld [vmem:[#allocation7 + $0x70] sm:$0xff]
    %v1465 = vld [vmem:[#allocation7 + $0x78] sm:$0xff]
    %v1466 = vld [vmem:[#allocation7 + $0x80] sm:$0xff]
    %v1467 = vld [vmem:[#allocation7 + $0x88] sm:$0xff]
    %v1468 = vld [vmem:[#allocation7 + $0x90] sm:$0xff]
    %v1469 = vld [vmem:[#allocation7 + $0x98] sm:$0xff]
    %v1470 = vld [vmem:[#allocation7 + $0xa0] sm:$0xff]
    %v1471 = vld [vmem:[#allocation7 + $0xa8] sm:$0xff]
    %v1472 = vld [vmem:[#allocation7 + $0xb0] sm:$0xff]
    %v1473 = vld [vmem:[#allocation7 + $0xb8] sm:$0xff]
    %v1474 = vld [vmem:[#allocation7 + $0xc0] sm:$0xff]
    %v1475 = vld [vmem:[#allocation7 + $0xc8] sm:$0xff]
    %v1476 = vld [vmem:[#allocation7 + $0xd0] sm:$0xff]
    %v1477 = vld [vmem:[#allocation7 + $0xd8] sm:$0xff]
    %v1478 = vld [vmem:[#allocation7 + $0xe0] sm:$0xff]
    %v1479 = vld [vmem:[#allocation7 + $0xe8] sm:$0xff]
    %v1480 = vld [vmem:[#allocation7 + $0xf0] sm:$0xff]
    %v1481 = vld [vmem:[#allocation7 + $0xf8] sm:$0xff]
    %v1482 = vld [vmem:[%s10] sm:$0x3]
    %v1484 = vlaneseq
    %v1485 = vshrl.u32 %v1484, 7
    %v1486 = vsub.s32 0, %v1485
    %v1487 = vrot.slane %v1482, %v1486
    %v1488 = vlaneseq
    %v1489 = vshrl.u32 %v1488, 7
    %v1490 = vsub.s32 1, %v1489
    %v1491 = vrot.slane %v1482, %v1490
    %v1526 = vunpack.c.l.b16 %v1450
    %v1527 = vunpack.c.h.b16 %v1450
    %v1528 = vunpack.c.l.b16 %v1451
    %v1529 = vunpack.c.h.b16 %v1451
    %v1530 = vunpack.c.l.b16 %v1452
    %v1531 = vunpack.c.h.b16 %v1452
    %v1532 = vunpack.c.l.b16 %v1453
    %v1533 = vunpack.c.h.b16 %v1453
    %v1534 = vunpack.c.l.b16 %v1454
    %v1535 = vunpack.c.h.b16 %v1454
    %v1536 = vunpack.c.l.b16 %v1455
    %v1537 = vunpack.c.h.b16 %v1455
    %v1538 = vunpack.c.l.b16 %v1456
    %v1539 = vunpack.c.h.b16 %v1456
    %v1540 = vunpack.c.l.b16 %v1457
    %v1541 = vunpack.c.h.b16 %v1457
    %v1542 = vunpack.c.l.b16 %v1458
    %v1543 = vunpack.c.h.b16 %v1458
    %v1544 = vunpack.c.l.b16 %v1459
    %v1545 = vunpack.c.h.b16 %v1459
    %v1546 = vunpack.c.l.b16 %v1460
    %v1547 = vunpack.c.h.b16 %v1460
    %v1548 = vunpack.c.l.b16 %v1461
    %v1549 = vunpack.c.h.b16 %v1461
    %v1550 = vunpack.c.l.b16 %v1462
    %v1551 = vunpack.c.h.b16 %v1462
    %v1552 = vunpack.c.l.b16 %v1463
    %v1553 = vunpack.c.h.b16 %v1463
    %v1554 = vunpack.c.l.b16 %v1464
    %v1555 = vunpack.c.h.b16 %v1464
    %v1556 = vunpack.c.l.b16 %v1465
    %v1557 = vunpack.c.h.b16 %v1465
    %v1558 = vunpack.c.l.b16 %v1466
    %v1559 = vunpack.c.h.b16 %v1466
    %v1560 = vunpack.c.l.b16 %v1467
    %v1561 = vunpack.c.h.b16 %v1467
    %v1562 = vunpack.c.l.b16 %v1468
    %v1563 = vunpack.c.h.b16 %v1468
    %v1564 = vunpack.c.l.b16 %v1469
    %v1565 = vunpack.c.h.b16 %v1469
    %v1566 = vunpack.c.l.b16 %v1470
    %v1567 = vunpack.c.h.b16 %v1470
    %v1568 = vunpack.c.l.b16 %v1471
    %v1569 = vunpack.c.h.b16 %v1471
    %v1570 = vunpack.c.l.b16 %v1472
    %v1571 = vunpack.c.h.b16 %v1472
    %v1572 = vunpack.c.l.b16 %v1473
    %v1573 = vunpack.c.h.b16 %v1473
    %v1574 = vunpack.c.l.b16 %v1474
    %v1575 = vunpack.c.h.b16 %v1474
    %v1576 = vunpack.c.l.b16 %v1475
    %v1577 = vunpack.c.h.b16 %v1475
    %v1578 = vunpack.c.l.b16 %v1476
    %v1579 = vunpack.c.h.b16 %v1476
    %v1580 = vunpack.c.l.b16 %v1477
    %v1581 = vunpack.c.h.b16 %v1477
    %v1582 = vunpack.c.l.b16 %v1478
    %v1583 = vunpack.c.h.b16 %v1478
    %v1584 = vunpack.c.l.b16 %v1479
    %v1585 = vunpack.c.h.b16 %v1479
    %v1586 = vunpack.c.l.b16 %v1480
    %v1587 = vunpack.c.h.b16 %v1480
    %v1588 = vunpack.c.l.b16 %v1481
    %v1589 = vunpack.c.h.b16 %v1481
    %v1590 = vpack.c.b16 %v1528, %v1526
    %v1591 = vpack.c.b16 %v1529, %v1527
    %v1592 = vpack.c.b16 %v1532, %v1530
    %v1593 = vpack.c.b16 %v1533, %v1531
    %v1594 = vpack.c.b16 %v1536, %v1534
    %v1595 = vpack.c.b16 %v1537, %v1535
    %v1596 = vpack.c.b16 %v1540, %v1538
    %v1597 = vpack.c.b16 %v1541, %v1539
    %v1598 = vpack.c.b16 %v1544, %v1542
    %v1599 = vpack.c.b16 %v1545, %v1543
    %v1600 = vpack.c.b16 %v1548, %v1546
    %v1601 = vpack.c.b16 %v1549, %v1547
    %v1602 = vpack.c.b16 %v1552, %v1550
    %v1603 = vpack.c.b16 %v1553, %v1551
    %v1604 = vpack.c.b16 %v1556, %v1554
    %v1605 = vpack.c.b16 %v1557, %v1555
    %v1606 = vpack.c.b16 %v1560, %v1558
    %v1607 = vpack.c.b16 %v1561, %v1559
    %v1608 = vpack.c.b16 %v1564, %v1562
    %v1609 = vpack.c.b16 %v1565, %v1563
    %v1610 = vpack.c.b16 %v1568, %v1566
    %v1611 = vpack.c.b16 %v1569, %v1567
    %v1612 = vpack.c.b16 %v1572, %v1570
    %v1613 = vpack.c.b16 %v1573, %v1571
    %v1614 = vpack.c.b16 %v1576, %v1574
    %v1615 = vpack.c.b16 %v1577, %v1575
    %v1616 = vpack.c.b16 %v1580, %v1578
    %v1617 = vpack.c.b16 %v1581, %v1579
    %v1618 = vpack.c.b16 %v1584, %v1582
    %v1619 = vpack.c.b16 %v1585, %v1583
    %v1620 = vpack.c.b16 %v1588, %v1586
    %v1621 = vpack.c.b16 %v1589, %v1587
    %1654 = vmatprep.subr.bf16.mxu0 %v1605
    %1655 = vmatpush1.bf16.msra.mxu0 %v1604
    %1656 = vmatprep.subr.bf16.mxu0 %v1603
    %1657 = vmatpush1.bf16.msra.mxu0 %v1602
    %1658 = vmatprep.subr.bf16.mxu0 %v1601
    %1659 = vmatpush1.bf16.msra.mxu0 %v1600
    %1660 = vmatprep.subr.bf16.mxu0 %v1599
    %1661 = vmatpush1.bf16.msra.mxu0 %v1598
    %1662 = vmatprep.subr.bf16.mxu0 %v1597
    %1663 = vmatpush1.bf16.msra.mxu0 %v1596
    %1664 = vmatprep.subr.bf16.mxu0 %v1595
    %1665 = vmatpush1.bf16.msra.mxu0 %v1594
    %1666 = vmatprep.subr.bf16.mxu0 %v1593
    %1667 = vmatpush1.bf16.msra.mxu0 %v1592
    %1668 = vmatprep.subr.bf16.mxu0 %v1591
    %1669 = vmatpush1.bf16.msra.mxu0 %v1590
    %1670 = vmatprep.subr.bf16.mxu0 %v1621
    %1671 = vmatpush2.bf16.msra.mxu0 %v1620
    %1672 = vmatprep.subr.bf16.mxu0 %v1619
    %1673 = vmatpush2.bf16.msra.mxu0 %v1618
    %1674 = vmatprep.subr.bf16.mxu0 %v1617
    %1675 = vmatpush2.bf16.msra.mxu0 %v1616
    %1676 = vmatprep.subr.bf16.mxu0 %v1615
    %1677 = vmatpush2.bf16.msra.mxu0 %v1614
    %1678 = vmatprep.subr.bf16.mxu0 %v1613
    %1679 = vmatpush2.bf16.msra.mxu0 %v1612
    %1680 = vmatprep.subr.bf16.mxu0 %v1611
    %1681 = vmatpush2.bf16.msra.mxu0 %v1610
    %1682 = vmatprep.subr.bf16.mxu0 %v1609
    %1683 = vmatpush2.bf16.msra.mxu0 %v1608
    %1684 = vmatprep.subr.bf16.mxu0 %v1607
    %1685 = vmatpush2.bf16.msra.mxu0 %v1606
    %1686 = vmatprep.mubr.bf16.mxu0 %v1449
    %1687 = vmatmul.mubr.bf16.gmra.mxu0 %v1448
    %v1688 = vpop.f32.mrf.mxu0
    %v1689 = vadd.f32 %v1487, %v1688
    %v1690 = vpop.f32.mrf.mxu0
    %v1691 = vadd.f32 %v1491, %v1690
    %v1692 = vpop.f32.mrf.mxu0
    %v1693 = vadd.f32 %v1487, %v1692
    %v1694 = vpop.f32.mrf.mxu0
    %v1695 = vadd.f32 %v1491, %v1694
    %1696 = vdwg.mxu0
    %v1697 = vmax.f32 %v1689, 0.0
    %v1698 = vmax.f32 %v1691, 0.0
    %v1699 = vmax.f32 %v1693, 0.0
    %v1700 = vmax.f32 %v1695, 0.0
    %v1701 = vpack.c.bf16 %v1699, %v1697
    %v1702 = vpack.c.bf16 %v1700, %v1698
    %v1703 = vld [vmem:[#allocation9] sm:$0xff]
    %v1704 = vld [vmem:[#allocation9 + $0x8] sm:$0xff]
    %v1705 = vld [vmem:[#allocation9 + $0x10] sm:$0xff]
    %v1706 = vld [vmem:[#allocation9 + $0x18] sm:$0xff]
    %v1707 = vld [vmem:[#allocation9 + $0x20] sm:$0xff]
    %v1708 = vld [vmem:[#allocation9 + $0x28] sm:$0xff]
    %v1709 = vld [vmem:[#allocation9 + $0x30] sm:$0xff]
    %v1710 = vld [vmem:[#allocation9 + $0x38] sm:$0xff]
    %v1711 = vld [vmem:[#allocation9 + $0x40] sm:$0xff]
    %v1712 = vld [vmem:[#allocation9 + $0x48] sm:$0xff]
    %v1713 = vld [vmem:[#allocation9 + $0x50] sm:$0xff]
    %v1714 = vld [vmem:[#allocation9 + $0x58] sm:$0xff]
    %v1715 = vld [vmem:[#allocation9 + $0x60] sm:$0xff]
    %v1716 = vld [vmem:[#allocation9 + $0x68] sm:$0xff]
    %v1717 = vld [vmem:[#allocation9 + $0x70] sm:$0xff]
    %v1718 = vld [vmem:[#allocation9 + $0x78] sm:$0xff]
    %v1719 = vld [vmem:[#allocation9 + $0x80] sm:$0xff]
    %v1720 = vld [vmem:[#allocation9 + $0x88] sm:$0xff]
    %v1721 = vld [vmem:[#allocation9 + $0x90] sm:$0xff]
    %v1722 = vld [vmem:[#allocation9 + $0x98] sm:$0xff]
    %v1723 = vld [vmem:[#allocation9 + $0xa0] sm:$0xff]
    %v1724 = vld [vmem:[#allocation9 + $0xa8] sm:$0xff]
    %v1725 = vld [vmem:[#allocation9 + $0xb0] sm:$0xff]
    %v1726 = vld [vmem:[#allocation9 + $0xb8] sm:$0xff]
    %v1727 = vld [vmem:[#allocation9 + $0xc0] sm:$0xff]
    %v1728 = vld [vmem:[#allocation9 + $0xc8] sm:$0xff]
    %v1729 = vld [vmem:[#allocation9 + $0xd0] sm:$0xff]
    %v1730 = vld [vmem:[#allocation9 + $0xd8] sm:$0xff]
    %v1731 = vld [vmem:[#allocation9 + $0xe0] sm:$0xff]
    %v1732 = vld [vmem:[#allocation9 + $0xe8] sm:$0xff]
    %v1733 = vld [vmem:[#allocation9 + $0xf0] sm:$0xff]
    %v1734 = vld [vmem:[#allocation9 + $0xf8] sm:$0xff]
    %v1767 = vunpack.c.l.b16 %v1703
    %v1768 = vunpack.c.h.b16 %v1703
    %v1769 = vunpack.c.l.b16 %v1704
    %v1770 = vunpack.c.h.b16 %v1704
    %v1771 = vunpack.c.l.b16 %v1705
    %v1772 = vunpack.c.h.b16 %v1705
    %v1773 = vunpack.c.l.b16 %v1706
    %v1774 = vunpack.c.h.b16 %v1706
    %v1775 = vunpack.c.l.b16 %v1707
    %v1776 = vunpack.c.h.b16 %v1707
    %v1777 = vunpack.c.l.b16 %v1708
    %v1778 = vunpack.c.h.b16 %v1708
    %v1779 = vunpack.c.l.b16 %v1709
    %v1780 = vunpack.c.h.b16 %v1709
    %v1781 = vunpack.c.l.b16 %v1710
    %v1782 = vunpack.c.h.b16 %v1710
    %v1783 = vunpack.c.l.b16 %v1711
    %v1784 = vunpack.c.h.b16 %v1711
    %v1785 = vunpack.c.l.b16 %v1712
    %v1786 = vunpack.c.h.b16 %v1712
    %v1787 = vunpack.c.l.b16 %v1713
    %v1788 = vunpack.c.h.b16 %v1713
    %v1789 = vunpack.c.l.b16 %v1714
    %v1790 = vunpack.c.h.b16 %v1714
    %v1791 = vunpack.c.l.b16 %v1715
    %v1792 = vunpack.c.h.b16 %v1715
    %v1793 = vunpack.c.l.b16 %v1716
    %v1794 = vunpack.c.h.b16 %v1716
    %v1795 = vunpack.c.l.b16 %v1717
    %v1796 = vunpack.c.h.b16 %v1717
    %v1797 = vunpack.c.l.b16 %v1718
    %v1798 = vunpack.c.h.b16 %v1718
    %v1799 = vunpack.c.l.b16 %v1719
    %v1800 = vunpack.c.h.b16 %v1719
    %v1801 = vunpack.c.l.b16 %v1720
    %v1802 = vunpack.c.h.b16 %v1720
    %v1803 = vunpack.c.l.b16 %v1721
    %v1804 = vunpack.c.h.b16 %v1721
    %v1805 = vunpack.c.l.b16 %v1722
    %v1806 = vunpack.c.h.b16 %v1722
    %v1807 = vunpack.c.l.b16 %v1723
    %v1808 = vunpack.c.h.b16 %v1723
    %v1809 = vunpack.c.l.b16 %v1724
    %v1810 = vunpack.c.h.b16 %v1724
    %v1811 = vunpack.c.l.b16 %v1725
    %v1812 = vunpack.c.h.b16 %v1725
    %v1813 = vunpack.c.l.b16 %v1726
    %v1814 = vunpack.c.h.b16 %v1726
    %v1815 = vunpack.c.l.b16 %v1727
    %v1816 = vunpack.c.h.b16 %v1727
    %v1817 = vunpack.c.l.b16 %v1728
    %v1818 = vunpack.c.h.b16 %v1728
    %v1819 = vunpack.c.l.b16 %v1729
    %v1820 = vunpack.c.h.b16 %v1729
    %v1821 = vunpack.c.l.b16 %v1730
    %v1822 = vunpack.c.h.b16 %v1730
    %v1823 = vunpack.c.l.b16 %v1731
    %v1824 = vunpack.c.h.b16 %v1731
    %v1825 = vunpack.c.l.b16 %v1732
    %v1826 = vunpack.c.h.b16 %v1732
    %v1827 = vunpack.c.l.b16 %v1733
    %v1828 = vunpack.c.h.b16 %v1733
    %v1829 = vunpack.c.l.b16 %v1734
    %v1830 = vunpack.c.h.b16 %v1734
    %v1831 = vpack.c.b16 %v1769, %v1767
    %v1832 = vpack.c.b16 %v1770, %v1768
    %v1833 = vpack.c.b16 %v1773, %v1771
    %v1834 = vpack.c.b16 %v1774, %v1772
    %v1835 = vpack.c.b16 %v1777, %v1775
    %v1836 = vpack.c.b16 %v1778, %v1776
    %v1837 = vpack.c.b16 %v1781, %v1779
    %v1838 = vpack.c.b16 %v1782, %v1780
    %v1839 = vpack.c.b16 %v1785, %v1783
    %v1840 = vpack.c.b16 %v1786, %v1784
    %v1841 = vpack.c.b16 %v1789, %v1787
    %v1842 = vpack.c.b16 %v1790, %v1788
    %v1843 = vpack.c.b16 %v1793, %v1791
    %v1844 = vpack.c.b16 %v1794, %v1792
    %v1845 = vpack.c.b16 %v1797, %v1795
    %v1846 = vpack.c.b16 %v1798, %v1796
    %v1847 = vpack.c.b16 %v1801, %v1799
    %v1848 = vpack.c.b16 %v1802, %v1800
    %v1849 = vpack.c.b16 %v1805, %v1803
    %v1850 = vpack.c.b16 %v1806, %v1804
    %v1851 = vpack.c.b16 %v1809, %v1807
    %v1852 = vpack.c.b16 %v1810, %v1808
    %v1853 = vpack.c.b16 %v1813, %v1811
    %v1854 = vpack.c.b16 %v1814, %v1812
    %v1855 = vpack.c.b16 %v1817, %v1815
    %v1856 = vpack.c.b16 %v1818, %v1816
    %v1857 = vpack.c.b16 %v1821, %v1819
    %v1858 = vpack.c.b16 %v1822, %v1820
    %v1859 = vpack.c.b16 %v1825, %v1823
    %v1860 = vpack.c.b16 %v1826, %v1824
    %v1861 = vpack.c.b16 %v1829, %v1827
    %v1862 = vpack.c.b16 %v1830, %v1828
    %1895 = vmatprep.subr.bf16.mxu0 %v1846
    %1896 = vmatpush1.bf16.msra.mxu0 %v1845
    %1897 = vmatprep.subr.bf16.mxu0 %v1844
    %1898 = vmatpush1.bf16.msra.mxu0 %v1843
    %1899 = vmatprep.subr.bf16.mxu0 %v1842
    %1900 = vmatpush1.bf16.msra.mxu0 %v1841
    %1901 = vmatprep.subr.bf16.mxu0 %v1840
    %1902 = vmatpush1.bf16.msra.mxu0 %v1839
    %1903 = vmatprep.subr.bf16.mxu0 %v1838
    %1904 = vmatpush1.bf16.msra.mxu0 %v1837
    %1905 = vmatprep.subr.bf16.mxu0 %v1836
    %1906 = vmatpush1.bf16.msra.mxu0 %v1835
    %1907 = vmatprep.subr.bf16.mxu0 %v1834
    %1908 = vmatpush1.bf16.msra.mxu0 %v1833
    %1909 = vmatprep.subr.bf16.mxu0 %v1832
    %1910 = vmatpush1.bf16.msra.mxu0 %v1831
    %1911 = vmatprep.subr.bf16.mxu0 %v1862
    %1912 = vmatpush2.bf16.msra.mxu0 %v1861
    %1913 = vmatprep.subr.bf16.mxu0 %v1860
    %1914 = vmatpush2.bf16.msra.mxu0 %v1859
    %1915 = vmatprep.subr.bf16.mxu0 %v1858
    %1916 = vmatpush2.bf16.msra.mxu0 %v1857
    %1917 = vmatprep.subr.bf16.mxu0 %v1856
    %1918 = vmatpush2.bf16.msra.mxu0 %v1855
    %1919 = vmatprep.subr.bf16.mxu0 %v1854
    %1920 = vmatpush2.bf16.msra.mxu0 %v1853
    %1921 = vmatprep.subr.bf16.mxu0 %v1852
    %1922 = vmatpush2.bf16.msra.mxu0 %v1851
    %1923 = vmatprep.subr.bf16.mxu0 %v1850
    %1924 = vmatpush2.bf16.msra.mxu0 %v1849
    %1925 = vmatprep.subr.bf16.mxu0 %v1848
    %1926 = vmatpush2.bf16.msra.mxu0 %v1847
    %1927 = vmatprep.mubr.bf16.mxu0 %v1702
    %1928 = vmatmul.mubr.bf16.gmra.mxu0 %v1701
    %v1929 = vpop.f32.mrf.mxu0
    %v1930 = vadd.f32 0.0, %v1929
    %v1931 = vpop.f32.mrf.mxu0
    %v1932 = vadd.f32 0.0, %v1931
    %v1933 = vpop.f32.mrf.mxu0
    %v1934 = vadd.f32 0.0, %v1933
    %v1935 = vpop.f32.mrf.mxu0
    %v1936 = vadd.f32 0.0, %v1935
    %1937 = vdwg.mxu0
    %v1938 = vadd.f32 %v406, %v1930
    %v1939 = vadd.f32 %v407, %v1932
    %v1940 = vadd.f32 %v412, %v1934
    %v1941 = vadd.f32 %v413, %v1936
    %v1942 = vld [vmem:[%s12] sm:$0x3]
    %v1944 = vlaneseq
    %v1945 = vshrl.u32 %v1944, 7
    %v1946 = vsub.s32 0, %v1945
    %v1947 = vrot.slane %v1942, %v1946
    %v1948 = vlaneseq
    %v1949 = vshrl.u32 %v1948, 7
    %v1950 = vsub.s32 1, %v1949
    %v1951 = vrot.slane %v1942, %v1950
    %v1954 = vadd.f32 %v1938, %v1947
    %v1955 = vadd.f32 %v1939, %v1951
    %v1956 = vadd.f32 %v1940, %v1947
    %v1957 = vadd.f32 %v1941, %v1951
    %v1958 = vmax.f32 %v1954, 0.0
    %v1959 = vmax.f32 %v1955, 0.0
    %v1960 = vmax.f32 %v1956, 0.0
    %v1961 = vmax.f32 %v1957, 0.0
    %v1962 = vpack.c.bf16 %v1960, %v1958
    %v1963 = vpack.c.bf16 %v1961, %v1959
    %v1964 = vld [vmem:[#allocation10] sm:$0xff]
    %v1965 = vld [vmem:[#allocation10 + $0x8] sm:$0xff]
    %v1966 = vld [vmem:[#allocation10 + $0x10] sm:$0xff]
    %v1967 = vld [vmem:[#allocation10 + $0x18] sm:$0xff]
    %v1968 = vld [vmem:[#allocation10 + $0x20] sm:$0xff]
    %v1969 = vld [vmem:[#allocation10 + $0x28] sm:$0xff]
    %v1970 = vld [vmem:[#allocation10 + $0x30] sm:$0xff]
    %v1971 = vld [vmem:[#allocation10 + $0x38] sm:$0xff]
    %v1972 = vld [vmem:[#allocation10 + $0x40] sm:$0xff]
    %v1973 = vld [vmem:[#allocation10 + $0x48] sm:$0xff]
    %v1974 = vld [vmem:[#allocation10 + $0x50] sm:$0xff]
    %v1975 = vld [vmem:[#allocation10 + $0x58] sm:$0xff]
    %v1976 = vld [vmem:[#allocation10 + $0x60] sm:$0xff]
    %v1977 = vld [vmem:[#allocation10 + $0x68] sm:$0xff]
    %v1978 = vld [vmem:[#allocation10 + $0x70] sm:$0xff]
    %v1979 = vld [vmem:[#allocation10 + $0x78] sm:$0xff]
    %v1980 = vld [vmem:[#allocation10 + $0x80] sm:$0xff]
    %v1981 = vld [vmem:[#allocation10 + $0x88] sm:$0xff]
    %v1982 = vld [vmem:[#allocation10 + $0x90] sm:$0xff]
    %v1983 = vld [vmem:[#allocation10 + $0x98] sm:$0xff]
    %v1984 = vld [vmem:[#allocation10 + $0xa0] sm:$0xff]
    %v1985 = vld [vmem:[#allocation10 + $0xa8] sm:$0xff]
    %v1986 = vld [vmem:[#allocation10 + $0xb0] sm:$0xff]
    %v1987 = vld [vmem:[#allocation10 + $0xb8] sm:$0xff]
    %v1988 = vld [vmem:[#allocation10 + $0xc0] sm:$0xff]
    %v1989 = vld [vmem:[#allocation10 + $0xc8] sm:$0xff]
    %v1990 = vld [vmem:[#allocation10 + $0xd0] sm:$0xff]
    %v1991 = vld [vmem:[#allocation10 + $0xd8] sm:$0xff]
    %v1992 = vld [vmem:[#allocation10 + $0xe0] sm:$0xff]
    %v1993 = vld [vmem:[#allocation10 + $0xe8] sm:$0xff]
    %v1994 = vld [vmem:[#allocation10 + $0xf0] sm:$0xff]
    %v1995 = vld [vmem:[#allocation10 + $0xf8] sm:$0xff]
    %v1996 = vld [vmem:[%s14] sm:$0x3]
    %v1998 = vlaneseq
    %v1999 = vshrl.u32 %v1998, 7
    %v2000 = vsub.s32 0, %v1999
    %v2001 = vrot.slane %v1996, %v2000
    %v2002 = vlaneseq
    %v2003 = vshrl.u32 %v2002, 7
    %v2004 = vsub.s32 1, %v2003
    %v2005 = vrot.slane %v1996, %v2004
    %v2040 = vunpack.c.l.b16 %v1964
    %v2041 = vunpack.c.h.b16 %v1964
    %v2042 = vunpack.c.l.b16 %v1965
    %v2043 = vunpack.c.h.b16 %v1965
    %v2044 = vunpack.c.l.b16 %v1966
    %v2045 = vunpack.c.h.b16 %v1966
    %v2046 = vunpack.c.l.b16 %v1967
    %v2047 = vunpack.c.h.b16 %v1967
    %v2048 = vunpack.c.l.b16 %v1968
    %v2049 = vunpack.c.h.b16 %v1968
    %v2050 = vunpack.c.l.b16 %v1969
    %v2051 = vunpack.c.h.b16 %v1969
    %v2052 = vunpack.c.l.b16 %v1970
    %v2053 = vunpack.c.h.b16 %v1970
    %v2054 = vunpack.c.l.b16 %v1971
    %v2055 = vunpack.c.h.b16 %v1971
    %v2056 = vunpack.c.l.b16 %v1972
    %v2057 = vunpack.c.h.b16 %v1972
    %v2058 = vunpack.c.l.b16 %v1973
    %v2059 = vunpack.c.h.b16 %v1973
    %v2060 = vunpack.c.l.b16 %v1974
    %v2061 = vunpack.c.h.b16 %v1974
    %v2062 = vunpack.c.l.b16 %v1975
    %v2063 = vunpack.c.h.b16 %v1975
    %v2064 = vunpack.c.l.b16 %v1976
    %v2065 = vunpack.c.h.b16 %v1976
    %v2066 = vunpack.c.l.b16 %v1977
    %v2067 = vunpack.c.h.b16 %v1977
    %v2068 = vunpack.c.l.b16 %v1978
    %v2069 = vunpack.c.h.b16 %v1978
    %v2070 = vunpack.c.l.b16 %v1979
    %v2071 = vunpack.c.h.b16 %v1979
    %v2072 = vunpack.c.l.b16 %v1980
    %v2073 = vunpack.c.h.b16 %v1980
    %v2074 = vunpack.c.l.b16 %v1981
    %v2075 = vunpack.c.h.b16 %v1981
    %v2076 = vunpack.c.l.b16 %v1982
    %v2077 = vunpack.c.h.b16 %v1982
    %v2078 = vunpack.c.l.b16 %v1983
    %v2079 = vunpack.c.h.b16 %v1983
    %v2080 = vunpack.c.l.b16 %v1984
    %v2081 = vunpack.c.h.b16 %v1984
    %v2082 = vunpack.c.l.b16 %v1985
    %v2083 = vunpack.c.h.b16 %v1985
    %v2084 = vunpack.c.l.b16 %v1986
    %v2085 = vunpack.c.h.b16 %v1986
    %v2086 = vunpack.c.l.b16 %v1987
    %v2087 = vunpack.c.h.b16 %v1987
    %v2088 = vunpack.c.l.b16 %v1988
    %v2089 = vunpack.c.h.b16 %v1988
    %v2090 = vunpack.c.l.b16 %v1989
    %v2091 = vunpack.c.h.b16 %v1989
    %v2092 = vunpack.c.l.b16 %v1990
    %v2093 = vunpack.c.h.b16 %v1990
    %v2094 = vunpack.c.l.b16 %v1991
    %v2095 = vunpack.c.h.b16 %v1991
    %v2096 = vunpack.c.l.b16 %v1992
    %v2097 = vunpack.c.h.b16 %v1992
    %v2098 = vunpack.c.l.b16 %v1993
    %v2099 = vunpack.c.h.b16 %v1993
    %v2100 = vunpack.c.l.b16 %v1994
    %v2101 = vunpack.c.h.b16 %v1994
    %v2102 = vunpack.c.l.b16 %v1995
    %v2103 = vunpack.c.h.b16 %v1995
    %v2104 = vpack.c.b16 %v2042, %v2040
    %v2105 = vpack.c.b16 %v2043, %v2041
    %v2106 = vpack.c.b16 %v2046, %v2044
    %v2107 = vpack.c.b16 %v2047, %v2045
    %v2108 = vpack.c.b16 %v2050, %v2048
    %v2109 = vpack.c.b16 %v2051, %v2049
    %v2110 = vpack.c.b16 %v2054, %v2052
    %v2111 = vpack.c.b16 %v2055, %v2053
    %v2112 = vpack.c.b16 %v2058, %v2056
    %v2113 = vpack.c.b16 %v2059, %v2057
    %v2114 = vpack.c.b16 %v2062, %v2060
    %v2115 = vpack.c.b16 %v2063, %v2061
    %v2116 = vpack.c.b16 %v2066, %v2064
    %v2117 = vpack.c.b16 %v2067, %v2065
    %v2118 = vpack.c.b16 %v2070, %v2068
    %v2119 = vpack.c.b16 %v2071, %v2069
    %v2120 = vpack.c.b16 %v2074, %v2072
    %v2121 = vpack.c.b16 %v2075, %v2073
    %v2122 = vpack.c.b16 %v2078, %v2076
    %v2123 = vpack.c.b16 %v2079, %v2077
    %v2124 = vpack.c.b16 %v2082, %v2080
    %v2125 = vpack.c.b16 %v2083, %v2081
    %v2126 = vpack.c.b16 %v2086, %v2084
    %v2127 = vpack.c.b16 %v2087, %v2085
    %v2128 = vpack.c.b16 %v2090, %v2088
    %v2129 = vpack.c.b16 %v2091, %v2089
    %v2130 = vpack.c.b16 %v2094, %v2092
    %v2131 = vpack.c.b16 %v2095, %v2093
    %v2132 = vpack.c.b16 %v2098, %v2096
    %v2133 = vpack.c.b16 %v2099, %v2097
    %v2134 = vpack.c.b16 %v2102, %v2100
    %v2135 = vpack.c.b16 %v2103, %v2101
    %2168 = vmatprep.subr.bf16.mxu0 %v2119
    %2169 = vmatpush1.bf16.msra.mxu0 %v2118
    %2170 = vmatprep.subr.bf16.mxu0 %v2117
    %2171 = vmatpush1.bf16.msra.mxu0 %v2116
    %2172 = vmatprep.subr.bf16.mxu0 %v2115
    %2173 = vmatpush1.bf16.msra.mxu0 %v2114
    %2174 = vmatprep.subr.bf16.mxu0 %v2113
    %2175 = vmatpush1.bf16.msra.mxu0 %v2112
    %2176 = vmatprep.subr.bf16.mxu0 %v2111
    %2177 = vmatpush1.bf16.msra.mxu0 %v2110
    %2178 = vmatprep.subr.bf16.mxu0 %v2109
    %2179 = vmatpush1.bf16.msra.mxu0 %v2108
    %2180 = vmatprep.subr.bf16.mxu0 %v2107
    %2181 = vmatpush1.bf16.msra.mxu0 %v2106
    %2182 = vmatprep.subr.bf16.mxu0 %v2105
    %2183 = vmatpush1.bf16.msra.mxu0 %v2104
    %2184 = vmatprep.subr.bf16.mxu0 %v2135
    %2185 = vmatpush2.bf16.msra.mxu0 %v2134
    %2186 = vmatprep.subr.bf16.mxu0 %v2133
    %2187 = vmatpush2.bf16.msra.mxu0 %v2132
    %2188 = vmatprep.subr.bf16.mxu0 %v2131
    %2189 = vmatpush2.bf16.msra.mxu0 %v2130
    %2190 = vmatprep.subr.bf16.mxu0 %v2129
    %2191 = vmatpush2.bf16.msra.mxu0 %v2128
    %2192 = vmatprep.subr.bf16.mxu0 %v2127
    %2193 = vmatpush2.bf16.msra.mxu0 %v2126
    %2194 = vmatprep.subr.bf16.mxu0 %v2125
    %2195 = vmatpush2.bf16.msra.mxu0 %v2124
    %2196 = vmatprep.subr.bf16.mxu0 %v2123
    %2197 = vmatpush2.bf16.msra.mxu0 %v2122
    %2198 = vmatprep.subr.bf16.mxu0 %v2121
    %2199 = vmatpush2.bf16.msra.mxu0 %v2120
    %2200 = vmatprep.mubr.bf16.mxu0 %v1963
    %2201 = vmatmul.mubr.bf16.gmra.mxu0 %v1962
    %v2202 = vpop.f32.mrf.mxu0
    %v2203 = vadd.f32 %v2001, %v2202
    %v2204 = vpop.f32.mrf.mxu0
    %v2205 = vadd.f32 %v2005, %v2204
    %v2206 = vpop.f32.mrf.mxu0
    %v2207 = vadd.f32 %v2001, %v2206
    %v2208 = vpop.f32.mrf.mxu0
    %v2209 = vadd.f32 %v2005, %v2208
    %2210 = vdwg.mxu0
    %v2211 = vmax.f32 %v2203, 0.0
    %v2212 = vmax.f32 %v2205, 0.0
    %v2213 = vmax.f32 %v2207, 0.0
    %v2214 = vmax.f32 %v2209, 0.0
    %v2215 = vpack.c.bf16 %v2213, %v2211
    %v2216 = vpack.c.bf16 %v2214, %v2212
    %v2217 = vld [vmem:[#allocation12] sm:$0xff]
    %v2218 = vld [vmem:[#allocation12 + $0x8] sm:$0xff]
    %v2219 = vld [vmem:[#allocation12 + $0x10] sm:$0xff]
    %v2220 = vld [vmem:[#allocation12 + $0x18] sm:$0xff]
    %v2221 = vld [vmem:[#allocation12 + $0x20] sm:$0xff]
    %v2222 = vld [vmem:[#allocation12 + $0x28] sm:$0xff]
    %v2223 = vld [vmem:[#allocation12 + $0x30] sm:$0xff]
    %v2224 = vld [vmem:[#allocation12 + $0x38] sm:$0xff]
    %v2225 = vld [vmem:[#allocation12 + $0x40] sm:$0xff]
    %v2226 = vld [vmem:[#allocation12 + $0x48] sm:$0xff]
    %v2227 = vld [vmem:[#allocation12 + $0x50] sm:$0xff]
    %v2228 = vld [vmem:[#allocation12 + $0x58] sm:$0xff]
    %v2229 = vld [vmem:[#allocation12 + $0x60] sm:$0xff]
    %v2230 = vld [vmem:[#allocation12 + $0x68] sm:$0xff]
    %v2231 = vld [vmem:[#allocation12 + $0x70] sm:$0xff]
    %v2232 = vld [vmem:[#allocation12 + $0x78] sm:$0xff]
    %v2233 = vld [vmem:[#allocation12 + $0x80] sm:$0xff]
    %v2234 = vld [vmem:[#allocation12 + $0x88] sm:$0xff]
    %v2235 = vld [vmem:[#allocation12 + $0x90] sm:$0xff]
    %v2236 = vld [vmem:[#allocation12 + $0x98] sm:$0xff]
    %v2237 = vld [vmem:[#allocation12 + $0xa0] sm:$0xff]
    %v2238 = vld [vmem:[#allocation12 + $0xa8] sm:$0xff]
    %v2239 = vld [vmem:[#allocation12 + $0xb0] sm:$0xff]
    %v2240 = vld [vmem:[#allocation12 + $0xb8] sm:$0xff]
    %v2241 = vld [vmem:[#allocation12 + $0xc0] sm:$0xff]
    %v2242 = vld [vmem:[#allocation12 + $0xc8] sm:$0xff]
    %v2243 = vld [vmem:[#allocation12 + $0xd0] sm:$0xff]
    %v2244 = vld [vmem:[#allocation12 + $0xd8] sm:$0xff]
    %v2245 = vld [vmem:[#allocation12 + $0xe0] sm:$0xff]
    %v2246 = vld [vmem:[#allocation12 + $0xe8] sm:$0xff]
    %v2247 = vld [vmem:[#allocation12 + $0xf0] sm:$0xff]
    %v2248 = vld [vmem:[#allocation12 + $0xf8] sm:$0xff]
    %v2249 = vld [vmem:[%s16] sm:$0x3]
    %v2251 = vlaneseq
    %v2252 = vshrl.u32 %v2251, 7
    %v2253 = vsub.s32 0, %v2252
    %v2254 = vrot.slane %v2249, %v2253
    %v2255 = vlaneseq
    %v2256 = vshrl.u32 %v2255, 7
    %v2257 = vsub.s32 1, %v2256
    %v2258 = vrot.slane %v2249, %v2257
    %v2293 = vunpack.c.l.b16 %v2217
    %v2294 = vunpack.c.h.b16 %v2217
    %v2295 = vunpack.c.l.b16 %v2218
    %v2296 = vunpack.c.h.b16 %v2218
    %v2297 = vunpack.c.l.b16 %v2219
    %v2298 = vunpack.c.h.b16 %v2219
    %v2299 = vunpack.c.l.b16 %v2220
    %v2300 = vunpack.c.h.b16 %v2220
    %v2301 = vunpack.c.l.b16 %v2221
    %v2302 = vunpack.c.h.b16 %v2221
    %v2303 = vunpack.c.l.b16 %v2222
    %v2304 = vunpack.c.h.b16 %v2222
    %v2305 = vunpack.c.l.b16 %v2223
    %v2306 = vunpack.c.h.b16 %v2223
    %v2307 = vunpack.c.l.b16 %v2224
    %v2308 = vunpack.c.h.b16 %v2224
    %v2309 = vunpack.c.l.b16 %v2225
    %v2310 = vunpack.c.h.b16 %v2225
    %v2311 = vunpack.c.l.b16 %v2226
    %v2312 = vunpack.c.h.b16 %v2226
    %v2313 = vunpack.c.l.b16 %v2227
    %v2314 = vunpack.c.h.b16 %v2227
    %v2315 = vunpack.c.l.b16 %v2228
    %v2316 = vunpack.c.h.b16 %v2228
    %v2317 = vunpack.c.l.b16 %v2229
    %v2318 = vunpack.c.h.b16 %v2229
    %v2319 = vunpack.c.l.b16 %v2230
    %v2320 = vunpack.c.h.b16 %v2230
    %v2321 = vunpack.c.l.b16 %v2231
    %v2322 = vunpack.c.h.b16 %v2231
    %v2323 = vunpack.c.l.b16 %v2232
    %v2324 = vunpack.c.h.b16 %v2232
    %v2325 = vunpack.c.l.b16 %v2233
    %v2326 = vunpack.c.h.b16 %v2233
    %v2327 = vunpack.c.l.b16 %v2234
    %v2328 = vunpack.c.h.b16 %v2234
    %v2329 = vunpack.c.l.b16 %v2235
    %v2330 = vunpack.c.h.b16 %v2235
    %v2331 = vunpack.c.l.b16 %v2236
    %v2332 = vunpack.c.h.b16 %v2236
    %v2333 = vunpack.c.l.b16 %v2237
    %v2334 = vunpack.c.h.b16 %v2237
    %v2335 = vunpack.c.l.b16 %v2238
    %v2336 = vunpack.c.h.b16 %v2238
    %v2337 = vunpack.c.l.b16 %v2239
    %v2338 = vunpack.c.h.b16 %v2239
    %v2339 = vunpack.c.l.b16 %v2240
    %v2340 = vunpack.c.h.b16 %v2240
    %v2341 = vunpack.c.l.b16 %v2241
    %v2342 = vunpack.c.h.b16 %v2241
    %v2343 = vunpack.c.l.b16 %v2242
    %v2344 = vunpack.c.h.b16 %v2242
    %v2345 = vunpack.c.l.b16 %v2243
    %v2346 = vunpack.c.h.b16 %v2243
    %v2347 = vunpack.c.l.b16 %v2244
    %v2348 = vunpack.c.h.b16 %v2244
    %v2349 = vunpack.c.l.b16 %v2245
    %v2350 = vunpack.c.h.b16 %v2245
    %v2351 = vunpack.c.l.b16 %v2246
    %v2352 = vunpack.c.h.b16 %v2246
    %v2353 = vunpack.c.l.b16 %v2247
    %v2354 = vunpack.c.h.b16 %v2247
    %v2355 = vunpack.c.l.b16 %v2248
    %v2356 = vunpack.c.h.b16 %v2248
    %v2357 = vpack.c.b16 %v2295, %v2293
    %v2358 = vpack.c.b16 %v2296, %v2294
    %v2359 = vpack.c.b16 %v2299, %v2297
    %v2360 = vpack.c.b16 %v2300, %v2298
    %v2361 = vpack.c.b16 %v2303, %v2301
    %v2362 = vpack.c.b16 %v2304, %v2302
    %v2363 = vpack.c.b16 %v2307, %v2305
    %v2364 = vpack.c.b16 %v2308, %v2306
    %v2365 = vpack.c.b16 %v2311, %v2309
    %v2366 = vpack.c.b16 %v2312, %v2310
    %v2367 = vpack.c.b16 %v2315, %v2313
    %v2368 = vpack.c.b16 %v2316, %v2314
    %v2369 = vpack.c.b16 %v2319, %v2317
    %v2370 = vpack.c.b16 %v2320, %v2318
    %v2371 = vpack.c.b16 %v2323, %v2321
    %v2372 = vpack.c.b16 %v2324, %v2322
    %v2373 = vpack.c.b16 %v2327, %v2325
    %v2374 = vpack.c.b16 %v2328, %v2326
    %v2375 = vpack.c.b16 %v2331, %v2329
    %v2376 = vpack.c.b16 %v2332, %v2330
    %v2377 = vpack.c.b16 %v2335, %v2333
    %v2378 = vpack.c.b16 %v2336, %v2334
    %v2379 = vpack.c.b16 %v2339, %v2337
    %v2380 = vpack.c.b16 %v2340, %v2338
    %v2381 = vpack.c.b16 %v2343, %v2341
    %v2382 = vpack.c.b16 %v2344, %v2342
    %v2383 = vpack.c.b16 %v2347, %v2345
    %v2384 = vpack.c.b16 %v2348, %v2346
    %v2385 = vpack.c.b16 %v2351, %v2349
    %v2386 = vpack.c.b16 %v2352, %v2350
    %v2387 = vpack.c.b16 %v2355, %v2353
    %v2388 = vpack.c.b16 %v2356, %v2354
    %2421 = vmatprep.subr.bf16.mxu0 %v2372
    %2422 = vmatpush1.bf16.msra.mxu0 %v2371
    %2423 = vmatprep.subr.bf16.mxu0 %v2370
    %2424 = vmatpush1.bf16.msra.mxu0 %v2369
    %2425 = vmatprep.subr.bf16.mxu0 %v2368
    %2426 = vmatpush1.bf16.msra.mxu0 %v2367
    %2427 = vmatprep.subr.bf16.mxu0 %v2366
    %2428 = vmatpush1.bf16.msra.mxu0 %v2365
    %2429 = vmatprep.subr.bf16.mxu0 %v2364
    %2430 = vmatpush1.bf16.msra.mxu0 %v2363
    %2431 = vmatprep.subr.bf16.mxu0 %v2362
    %2432 = vmatpush1.bf16.msra.mxu0 %v2361
    %2433 = vmatprep.subr.bf16.mxu0 %v2360
    %2434 = vmatpush1.bf16.msra.mxu0 %v2359
    %2435 = vmatprep.subr.bf16.mxu0 %v2358
    %2436 = vmatpush1.bf16.msra.mxu0 %v2357
    %2437 = vmatprep.subr.bf16.mxu0 %v2388
    %2438 = vmatpush2.bf16.msra.mxu0 %v2387
    %2439 = vmatprep.subr.bf16.mxu0 %v2386
    %2440 = vmatpush2.bf16.msra.mxu0 %v2385
    %2441 = vmatprep.subr.bf16.mxu0 %v2384
    %2442 = vmatpush2.bf16.msra.mxu0 %v2383
    %2443 = vmatprep.subr.bf16.mxu0 %v2382
    %2444 = vmatpush2.bf16.msra.mxu0 %v2381
    %2445 = vmatprep.subr.bf16.mxu0 %v2380
    %2446 = vmatpush2.bf16.msra.mxu0 %v2379
    %2447 = vmatprep.subr.bf16.mxu0 %v2378
    %2448 = vmatpush2.bf16.msra.mxu0 %v2377
    %2449 = vmatprep.subr.bf16.mxu0 %v2376
    %2450 = vmatpush2.bf16.msra.mxu0 %v2375
    %2451 = vmatprep.subr.bf16.mxu0 %v2374
    %2452 = vmatpush2.bf16.msra.mxu0 %v2373
    %2453 = vmatprep.mubr.bf16.mxu0 %v2216
    %2454 = vmatmul.mubr.bf16.gmra.mxu0 %v2215
    %v2455 = vpop.f32.mrf.mxu0
    %v2456 = vadd.f32 %v2254, %v2455
    %v2457 = vpop.f32.mrf.mxu0
    %v2458 = vadd.f32 %v2258, %v2457
    %v2459 = vpop.f32.mrf.mxu0
    %v2460 = vadd.f32 %v2254, %v2459
    %v2461 = vpop.f32.mrf.mxu0
    %v2462 = vadd.f32 %v2258, %v2461
    %2463 = vdwg.mxu0
    %v2464 = vmax.f32 %v2456, 0.0
    %v2465 = vmax.f32 %v2458, 0.0
    %v2466 = vmax.f32 %v2460, 0.0
    %v2467 = vmax.f32 %v2462, 0.0
    %v2468 = vpack.c.bf16 %v2466, %v2464
    %v2469 = vpack.c.bf16 %v2467, %v2465
    %v2470 = vld [vmem:[%s17] sm:$0xf]
    %v2471 = vld [vmem:[%s17 + $0x4] sm:$0xf]
    %v2472 = vld [vmem:[%s17 + $0x8] sm:$0xf]
    %v2473 = vld [vmem:[%s17 + $0xc] sm:$0xf]
    %v2474 = vld [vmem:[%s17 + $0x10] sm:$0xf]
    %v2475 = vld [vmem:[%s17 + $0x14] sm:$0xf]
    %v2476 = vld [vmem:[%s17 + $0x18] sm:$0xf]
    %v2477 = vld [vmem:[%s17 + $0x1c] sm:$0xf]
    %v2478 = vld [vmem:[%s17 + $0x20] sm:$0xf]
    %v2479 = vld [vmem:[%s17 + $0x24] sm:$0xf]
    %v2480 = vld [vmem:[%s17 + $0x28] sm:$0xf]
    %v2481 = vld [vmem:[%s17 + $0x2c] sm:$0xf]
    %v2482 = vld [vmem:[%s17 + $0x30] sm:$0xf]
    %v2483 = vld [vmem:[%s17 + $0x34] sm:$0xf]
    %v2484 = vld [vmem:[%s17 + $0x38] sm:$0xf]
    %v2485 = vld [vmem:[%s17 + $0x3c] sm:$0xf]
    %v2486 = vld [vmem:[%s17 + $0x40] sm:$0xf]
    %v2487 = vld [vmem:[%s17 + $0x44] sm:$0xf]
    %v2488 = vld [vmem:[%s17 + $0x48] sm:$0xf]
    %v2489 = vld [vmem:[%s17 + $0x4c] sm:$0xf]
    %v2490 = vld [vmem:[%s17 + $0x50] sm:$0xf]
    %v2491 = vld [vmem:[%s17 + $0x54] sm:$0xf]
    %v2492 = vld [vmem:[%s17 + $0x58] sm:$0xf]
    %v2493 = vld [vmem:[%s17 + $0x5c] sm:$0xf]
    %v2494 = vld [vmem:[%s17 + $0x60] sm:$0xf]
    %v2495 = vld [vmem:[%s17 + $0x64] sm:$0xf]
    %v2496 = vld [vmem:[%s17 + $0x68] sm:$0xf]
    %v2497 = vld [vmem:[%s17 + $0x6c] sm:$0xf]
    %v2498 = vld [vmem:[%s17 + $0x70] sm:$0xf]
    %v2499 = vld [vmem:[%s17 + $0x74] sm:$0xf]
    %v2500 = vld [vmem:[%s17 + $0x78] sm:$0xf]
    %v2501 = vld [vmem:[%s17 + $0x7c] sm:$0xf]
    %v2502 = vld [vmem:[%s18] sm:$0x1]
    %v2504 = vlaneseq
    %v2505 = vshrl.u32 %v2504, 7
    %v2506 = vsub.s32 0, %v2505
    %v2507 = vrot.slane %v2502, %v2506
    %v2541 = vunpack.c.l.b16 %v2470
    %v2542 = vunpack.c.l.b16 %v2471
    %v2543 = vunpack.c.l.b16 %v2472
    %v2544 = vunpack.c.l.b16 %v2473
    %v2545 = vunpack.c.l.b16 %v2474
    %v2546 = vunpack.c.l.b16 %v2475
    %v2547 = vunpack.c.l.b16 %v2476
    %v2548 = vunpack.c.l.b16 %v2477
    %v2549 = vunpack.c.l.b16 %v2478
    %v2550 = vunpack.c.l.b16 %v2479
    %v2551 = vunpack.c.l.b16 %v2480
    %v2552 = vunpack.c.l.b16 %v2481
    %v2553 = vunpack.c.l.b16 %v2482
    %v2554 = vunpack.c.l.b16 %v2483
    %v2555 = vunpack.c.l.b16 %v2484
    %v2556 = vunpack.c.l.b16 %v2485
    %v2557 = vunpack.c.l.b16 %v2486
    %v2558 = vunpack.c.l.b16 %v2487
    %v2559 = vunpack.c.l.b16 %v2488
    %v2560 = vunpack.c.l.b16 %v2489
    %v2561 = vunpack.c.l.b16 %v2490
    %v2562 = vunpack.c.l.b16 %v2491
    %v2563 = vunpack.c.l.b16 %v2492
    %v2564 = vunpack.c.l.b16 %v2493
    %v2565 = vunpack.c.l.b16 %v2494
    %v2566 = vunpack.c.l.b16 %v2495
    %v2567 = vunpack.c.l.b16 %v2496
    %v2568 = vunpack.c.l.b16 %v2497
    %v2569 = vunpack.c.l.b16 %v2498
    %v2570 = vunpack.c.l.b16 %v2499
    %v2571 = vunpack.c.l.b16 %v2500
    %v2572 = vunpack.c.l.b16 %v2501
    %v2573 = vpack.c.b16 %v2542, %v2541
    %v2574 = vpack.c.b16 %v2544, %v2543
    %v2575 = vpack.c.b16 %v2546, %v2545
    %v2576 = vpack.c.b16 %v2548, %v2547
    %v2577 = vpack.c.b16 %v2550, %v2549
    %v2578 = vpack.c.b16 %v2552, %v2551
    %v2579 = vpack.c.b16 %v2554, %v2553
    %v2580 = vpack.c.b16 %v2556, %v2555
    %v2581 = vpack.c.b16 %v2558, %v2557
    %v2582 = vpack.c.b16 %v2560, %v2559
    %v2583 = vpack.c.b16 %v2562, %v2561
    %v2584 = vpack.c.b16 %v2564, %v2563
    %v2585 = vpack.c.b16 %v2566, %v2565
    %v2586 = vpack.c.b16 %v2568, %v2567
    %v2587 = vpack.c.b16 %v2570, %v2569
    %v2588 = vpack.c.b16 %v2572, %v2571
    %2605 = vmatprep.subr.bf16.mxu0 0
    %2606 = vmatpush1.bf16.msra.mxu0 %v2580
    %2607 = vmatprep.subr.bf16.mxu0 0
    %2608 = vmatpush1.bf16.msra.mxu0 %v2579
    %2609 = vmatprep.subr.bf16.mxu0 0
    %2610 = vmatpush1.bf16.msra.mxu0 %v2578
    %2611 = vmatprep.subr.bf16.mxu0 0
    %2612 = vmatpush1.bf16.msra.mxu0 %v2577
    %2613 = vmatprep.subr.bf16.mxu0 0
    %2614 = vmatpush1.bf16.msra.mxu0 %v2576
    %2615 = vmatprep.subr.bf16.mxu0 0
    %2616 = vmatpush1.bf16.msra.mxu0 %v2575
    %2617 = vmatprep.subr.bf16.mxu0 0
    %2618 = vmatpush1.bf16.msra.mxu0 %v2574
    %2619 = vmatprep.subr.bf16.mxu0 0
    %2620 = vmatpush1.bf16.msra.mxu0 %v2573
    %2621 = vmatprep.subr.bf16.mxu0 0
    %2622 = vmatpush2.bf16.msra.mxu0 %v2588
    %2623 = vmatprep.subr.bf16.mxu0 0
    %2624 = vmatpush2.bf16.msra.mxu0 %v2587
    %2625 = vmatprep.subr.bf16.mxu0 0
    %2626 = vmatpush2.bf16.msra.mxu0 %v2586
    %2627 = vmatprep.subr.bf16.mxu0 0
    %2628 = vmatpush2.bf16.msra.mxu0 %v2585
    %2629 = vmatprep.subr.bf16.mxu0 0
    %2630 = vmatpush2.bf16.msra.mxu0 %v2584
    %2631 = vmatprep.subr.bf16.mxu0 0
    %2632 = vmatpush2.bf16.msra.mxu0 %v2583
    %2633 = vmatprep.subr.bf16.mxu0 0
    %2634 = vmatpush2.bf16.msra.mxu0 %v2582
    %2635 = vmatprep.subr.bf16.mxu0 0
    %2636 = vmatpush2.bf16.msra.mxu0 %v2581
    %2637 = vmatprep.mubr.bf16.mxu0 %v2469
    %2638 = vmatmul.mubr.bf16.gmra.mxu0 %v2468
    %v2639 = vpop.f32.mrf.mxu0
    %v2640 = vadd.f32 %v2507, %v2639
    %v2641 = vpop.f32.mrf.mxu0
    %v2642 = vpop.f32.mrf.mxu0
    %v2643 = vadd.f32 %v2507, %v2642
    %v2644 = vpop.f32.mrf.mxu0
    %2645 = vdwg.mxu0
    %vm2646 = vcmask 31744
    %2647 = vst.msk [vmem:[%s19] sm:$0xff] %vm2646, %v2640
    %2648 = vst.msk [vmem:[%s19 + $0x8] sm:$0xff] %vm2646, %v2643
    // Predicated region
    $region106: #{tpu_custom_call.1} parent=1 // pred_check
      _
    $region107: #{tpu_custom_call.1} parent=1 // pred_check_branch
      %2650 = sbr.rel (0) target = $region109
    $region108: #{tpu_custom_call.1} parent=1 // pred_region
      _
    $region109: #{tpu_custom_call.1} parent=1 // pred_fallthru
      _
    // Predicated region
    $region110: #{tpu_custom_call.1} parent=1 // pred_check
      _
    $region111: #{tpu_custom_call.1} parent=1 // pred_check_branch
      %2652 = sbr.rel (0) target = $region113
    $region112: #{tpu_custom_call.1} parent=1 // pred_region
      _
    $region113: #{tpu_custom_call.1} parent=1 // pred_fallthru
      _
    %2653 = vsyncpa [#allocation3], 1
    %2654 = vsyncpa [#allocation5], 1
    %2655 = vsyncpa [#allocation8], 1
    %2656 = vsyncpa [#allocation11], 1

</llo_original>
